<compile_context>
chip_gen: v7x
topology: tpu7x:2x2x1
jax: 0.10.0
libtpu: 0.0.40
codegen_flags: <defaults>
</compile_context>

<pallas_src>
import functools

import jax
import jax.numpy as jnp
from jax.experimental import pallas as pl
from jax.experimental.pallas import tpu as pltpu

# ---------------------------------------------------------------------------
# Small "roberta-base"-like configuration (scaled down; shapes consistent with
# the module's forward: pooler output (B, H), features (B, 1, F),
# classifier input (B, 2*H)).
# ---------------------------------------------------------------------------
VOCAB = 100
MAX_POS = 32
HIDDEN = 128          # stands in for 768
LAYERS = 2
HEADS = 4
HEAD_DIM = HIDDEN // HEADS
INTERMEDIATE = 256
SEQ = 8
BATCH = 2
NUM_FEATURES = 8
NUM_LABELS = 4
LN_EPS = 1e-5
BS = BATCH * SEQ


def _ln(x, g, b):
    mu = jnp.mean(x, axis=-1, keepdims=True)
    xc = x - mu
    var = jnp.mean(xc * xc, axis=-1, keepdims=True)
    return xc * jax.lax.rsqrt(var + LN_EPS) * g + b


# ---------------------------------------------------------------------------
# Fused encoder: embeddings-LN + LAYERS x (QKV, attention, out-proj, add+LN,
# FFN, add+LN).  grid=(LAYERS,), activations resident in the output block.
# ---------------------------------------------------------------------------
def _encoder_kernel(h0_ref, mask_ref, emb_g_ref, emb_b_ref,
                    wqkv_ref, bqkv_ref, wo_ref, bo_ref,
                    ln1_g_ref, ln1_b_ref,
                    wi_ref, bi_ref, wf_ref, bf_ref,
                    ln2_g_ref, ln2_b_ref,
                    o_ref):
    # Layer 0: seed the resident activation slab with LayerNorm(embeddings).
    @pl.when(pl.program_id(0) == 0)
    def _():
        o_ref[...] = _ln(h0_ref[...], emb_g_ref[...], emb_b_ref[...])

    x = o_ref[...]                                             # (BS, HIDDEN)

    # ---- fused Q/K/V projection: one (HIDDEN, 3*HIDDEN) matmul ----
    qkv = jnp.dot(x, wqkv_ref[0], preferred_element_type=jnp.float32)
    qkv = qkv + bqkv_ref[0]                                    # (BS, 3*HIDDEN)
    q = qkv[:, 0:HIDDEN]
    k = qkv[:, HIDDEN:2 * HIDDEN]
    v = qkv[:, 2 * HIDDEN:3 * HIDDEN]

    # ---- attention, entirely in VMEM (no HBM transposes) ----
    scale = 1.0 / (HEAD_DIM ** 0.5)
    batch_ctx = []
    for b in range(BATCH):
        m = mask_ref[b]                                        # (1, SEQ) bias
        r0 = b * SEQ
        head_outs = []
        for hd in range(HEADS):
            c0 = hd * HEAD_DIM
            qh = q[r0:r0 + SEQ, c0:c0 + HEAD_DIM]              # (S, Dh)
            kh = k[r0:r0 + SEQ, c0:c0 + HEAD_DIM]
            vh = v[r0:r0 + SEQ, c0:c0 + HEAD_DIM]
            s = jax.lax.dot_general(qh, kh, (((1,), (1,)), ((), ())),
                                    preferred_element_type=jnp.float32)
            s = s * scale + m                                  # (S, S) + (1, S)
            s = s - jnp.max(s, axis=-1, keepdims=True)
            p = jnp.exp(s)
            p = p * pl.reciprocal(jnp.sum(p, axis=-1, keepdims=True),
                                  approx=True)
            head_outs.append(jnp.dot(p, vh,
                                     preferred_element_type=jnp.float32))
        batch_ctx.append(jnp.concatenate(head_outs, axis=-1))  # (S, HIDDEN)
    ctx = jnp.concatenate(batch_ctx, axis=0)                   # (BS, HIDDEN)

    # ---- output projection + fused residual-add + LayerNorm ----
    attn_out = jnp.dot(ctx, wo_ref[0], preferred_element_type=jnp.float32)
    attn_out = attn_out + bo_ref[0]
    h1 = _ln(x + attn_out, ln1_g_ref[0], ln1_b_ref[0])

    # ---- FFN + fused residual-add + LayerNorm ----
    inter = jnp.dot(h1, wi_ref[0], preferred_element_type=jnp.float32)
    inter = inter + bi_ref[0]
    # TODO(synk): HF RoBERTa uses exact (erf) GELU; tanh approximation used here.
    inter = jax.nn.gelu(inter, approximate=True)
    ffn = jnp.dot(inter, wf_ref[0], preferred_element_type=jnp.float32)
    ffn = ffn + bf_ref[0]
    o_ref[...] = _ln(h1 + ffn, ln2_g_ref[0], ln2_b_ref[0])


def encoder_forward(emb, mask_bias, p):
    flops = LAYERS * (2 * BS * HIDDEN * (4 * HIDDEN + 2 * INTERMEDIATE)
                      + 4 * BATCH * HEADS * SEQ * SEQ * HEAD_DIM)
    transcendentals = LAYERS * (BATCH * HEADS * SEQ * SEQ + BS * INTERMEDIATE)
    bytes_accessed = 4 * (LAYERS * HIDDEN * (3 * HIDDEN + HIDDEN
                                             + 2 * INTERMEDIATE)
                          + 4 * BS * HIDDEN)

    grid_spec = pltpu.PrefetchScalarGridSpec(
        num_scalar_prefetch=0,
        grid=(LAYERS,),
        in_specs=[
            pl.BlockSpec((BS, HIDDEN), lambda l: (0, 0)),          # embeddings
            pl.BlockSpec((BATCH, 1, SEQ), lambda l: (0, 0, 0)),    # mask bias
            pl.BlockSpec((1, HIDDEN), lambda l: (0, 0)),           # emb LN g
            pl.BlockSpec((1, HIDDEN), lambda l: (0, 0)),           # emb LN b
            pl.BlockSpec((1, HIDDEN, 3 * HIDDEN), lambda l: (l, 0, 0)),
            pl.BlockSpec((1, 1, 3 * HIDDEN), lambda l: (l, 0, 0)),
            pl.BlockSpec((1, HIDDEN, HIDDEN), lambda l: (l, 0, 0)),
            pl.BlockSpec((1, 1, HIDDEN), lambda l: (l, 0, 0)),
            pl.BlockSpec((1, 1, HIDDEN), lambda l: (l, 0, 0)),
            pl.BlockSpec((1, 1, HIDDEN), lambda l: (l, 0, 0)),
            pl.BlockSpec((1, HIDDEN, INTERMEDIATE), lambda l: (l, 0, 0)),
            pl.BlockSpec((1, 1, INTERMEDIATE), lambda l: (l, 0, 0)),
            pl.BlockSpec((1, INTERMEDIATE, HIDDEN), lambda l: (l, 0, 0)),
            pl.BlockSpec((1, 1, HIDDEN), lambda l: (l, 0, 0)),
            pl.BlockSpec((1, 1, HIDDEN), lambda l: (l, 0, 0)),
            pl.BlockSpec((1, 1, HIDDEN), lambda l: (l, 0, 0)),
        ],
        out_specs=pl.BlockSpec((BS, HIDDEN), lambda l: (0, 0)),
    )
    return pl.pallas_call(
        _encoder_kernel,
        out_shape=jax.ShapeDtypeStruct((BS, HIDDEN), jnp.float32),
        grid_spec=grid_spec,
        compiler_params=pltpu.CompilerParams(
            dimension_semantics=("arbitrary",)),
        cost_estimate=pl.CostEstimate(flops=flops,
                                      transcendentals=transcendentals,
                                      bytes_accessed=bytes_accessed),
    )(emb, mask_bias, p["emb_ln_g"], p["emb_ln_b"],
      p["wqkv"], p["bqkv"], p["wo"], p["bo"],
      p["ln1_g"], p["ln1_b"], p["wi"], p["bi"],
      p["wf"], p["bf"], p["ln2_g"], p["ln2_b"])


# ---------------------------------------------------------------------------
# Fused tail: pooler (tanh dense on token 0) + feature projection + concat +
# classifier, all in one pallas_call.
# ---------------------------------------------------------------------------
def _tail_kernel(h_ref, feat_ref, pw_ref, pb_ref, fw_ref, fb_ref,
                 cw_ref, cb_ref, o_ref):
    # gather the first-token row of each batch element (rows 0, SEQ, ...)
    first = jnp.concatenate(
        [h_ref[pl.ds(b * SEQ, 1), :] for b in range(BATCH)], axis=0)  # (B, H)
    pooled = jnp.tanh(
        jnp.dot(first, pw_ref[...], preferred_element_type=jnp.float32)
        + pb_ref[...])
    feats_proc = (jnp.dot(feat_ref[...], fw_ref[...],
                          preferred_element_type=jnp.float32) + fb_ref[...])
    combined = jnp.concatenate([pooled, feats_proc], axis=1)          # (B, 2H)
    o_ref[...] = (jnp.dot(combined, cw_ref[...],
                          preferred_element_type=jnp.float32) + cb_ref[...])


def tail_forward(h, feats2d, p):
    return pl.pallas_call(
        _tail_kernel,
        out_shape=jax.ShapeDtypeStruct((BATCH, NUM_LABELS), jnp.float32),
        grid=(1,),
        in_specs=[
            pl.BlockSpec((BS, HIDDEN), lambda i: (0, 0)),
            pl.BlockSpec((BATCH, NUM_FEATURES), lambda i: (0, 0)),
            pl.BlockSpec((HIDDEN, HIDDEN), lambda i: (0, 0)),
            pl.BlockSpec((1, HIDDEN), lambda i: (0, 0)),
            pl.BlockSpec((NUM_FEATURES, HIDDEN), lambda i: (0, 0)),
            pl.BlockSpec((1, HIDDEN), lambda i: (0, 0)),
            pl.BlockSpec((2 * HIDDEN, NUM_LABELS), lambda i: (0, 0)),
            pl.BlockSpec((1, NUM_LABELS), lambda i: (0, 0)),
        ],
        out_specs=pl.BlockSpec((BATCH, NUM_LABELS), lambda i: (0, 0)),
        compiler_params=pltpu.CompilerParams(
            dimension_semantics=("arbitrary",)),
    )(h, feats2d, p["pool_w"], p["pool_b"], p["feat_w"], p["feat_b"],
      p["cls_w"], p["cls_b"])


# ---------------------------------------------------------------------------
# Parameter construction (deterministic, synthetic).  Per-layer weights are
# stacked along a leading layer axis; Q/K/V are pre-fused into one matrix.
# ---------------------------------------------------------------------------
def init_params(key):
    std = 0.02
    keys = iter(jax.random.split(key, 10))

    def w(k, *shape):
        return jax.random.normal(k, shape, jnp.float32) * std

    p = {}
    p["word_emb"] = w(next(keys), VOCAB, HIDDEN)
    p["pos_emb"] = w(next(keys), MAX_POS, HIDDEN)
    p["type_emb"] = w(next(keys), 1, HIDDEN)
    p["emb_ln_g"] = jnp.ones((1, HIDDEN), jnp.float32)
    p["emb_ln_b"] = jnp.zeros((1, HIDDEN), jnp.float32)

    # encoder (stacked over layers)
    p["wqkv"] = w(next(keys), LAYERS, HIDDEN, 3 * HIDDEN)   # fused Q|K|V
    p["bqkv"] = jnp.zeros((LAYERS, 1, 3 * HIDDEN), jnp.float32)
    p["wo"] = w(next(keys), LAYERS, HIDDEN, HIDDEN)
    p["bo"] = jnp.zeros((LAYERS, 1, HIDDEN), jnp.float32)
    p["ln1_g"] = jnp.ones((LAYERS, 1, HIDDEN), jnp.float32)
    p["ln1_b"] = jnp.zeros((LAYERS, 1, HIDDEN), jnp.float32)
    p["wi"] = w(next(keys), LAYERS, HIDDEN, INTERMEDIATE)
    p["bi"] = jnp.zeros((LAYERS, 1, INTERMEDIATE), jnp.float32)
    p["wf"] = w(next(keys), LAYERS, INTERMEDIATE, HIDDEN)
    p["bf"] = jnp.zeros((LAYERS, 1, HIDDEN), jnp.float32)
    p["ln2_g"] = jnp.ones((LAYERS, 1, HIDDEN), jnp.float32)
    p["ln2_b"] = jnp.zeros((LAYERS, 1, HIDDEN), jnp.float32)

    # tail: pooler, feature_processor (F -> 768), classifier (2*768 -> labels)
    p["pool_w"] = w(next(keys), HIDDEN, HIDDEN)
    p["pool_b"] = jnp.zeros((1, HIDDEN), jnp.float32)
    p["feat_w"] = w(next(keys), NUM_FEATURES, HIDDEN)
    p["feat_b"] = jnp.zeros((1, HIDDEN), jnp.float32)
    p["cls_w"] = w(next(keys), 2 * HIDDEN, NUM_LABELS)
    p["cls_b"] = jnp.zeros((1, NUM_LABELS), jnp.float32)
    return p


# ---------------------------------------------------------------------------
# Forward pass (glue = embedding gather + mask arithmetic; hot path = 2 kernels)
# ---------------------------------------------------------------------------
def roberta_with_features(params, input_ids, attention_mask, features):
    B, S = input_ids.shape

    # embeddings (gather = glue)
    positions = jnp.arange(S, dtype=jnp.int32)
    emb = (params["word_emb"][input_ids]
           + params["pos_emb"][positions][None, :, :]
           + params["type_emb"][0][None, None, :])
    emb = emb.reshape(B * S, HIDDEN)

    # additive key mask bias: 0 where attended, -1e9 where masked
    mask_bias = ((1.0 - attention_mask.astype(jnp.float32)) * -1e9
                 ).reshape(B, 1, S)

    h = encoder_forward(emb, mask_bias, params)            # (B*S, HIDDEN)

    feats2d = features.reshape(B, NUM_FEATURES)            # (B,1,F) -> (B,F)
    logits = tail_forward(h, feats2d, params)              # (B, NUM_LABELS)
    return logits


# ---------------------------------------------------------------------------
if __name__ == "__main__":
    key = jax.random.PRNGKey(0)
    k_param, k_ids, k_feat = jax.random.split(key, 3)

    params = init_params(k_param)

    input_ids = jax.random.randint(k_ids, (BATCH, SEQ), 0, VOCAB,
                                   dtype=jnp.int32)
    attention_mask = jnp.ones((BATCH, SEQ), dtype=jnp.int32)
    attention_mask = attention_mask.at[1, SEQ - 2:].set(0)   # some padding
    features = jax.random.normal(k_feat, (BATCH, 1, NUM_FEATURES), jnp.float32)

    fwd = jax.jit(roberta_with_features)
    logits = fwd(params, input_ids, attention_mask, features)
    logits = jax.block_until_ready(logits)

    assert logits.shape == (BATCH, NUM_LABELS)
    assert bool(jnp.all(jnp.isfinite(logits)))
    print("KERNEL_OK")
</pallas_src>

<mosaic_0001>
module attributes {stable_mosaic.version = 11 : i64} {
  func.func @_tail_kernel(%arg0: i32, %arg1: memref<16x128xf32, #tpu.memory_space<vmem>>, %arg2: memref<2x8xf32, #tpu.memory_space<vmem>>, %arg3: memref<128x128xf32, #tpu.memory_space<vmem>>, %arg4: memref<1x128xf32, #tpu.memory_space<vmem>>, %arg5: memref<8x128xf32, #tpu.memory_space<vmem>>, %arg6: memref<1x128xf32, #tpu.memory_space<vmem>>, %arg7: memref<256x4xf32, #tpu.memory_space<vmem>>, %arg8: memref<1x4xf32, #tpu.memory_space<vmem>>, %arg9: memref<2x4xf32, #tpu.memory_space<vmem>>) attributes {dimension_semantics = [#tpu.dimension_semantics<arbitrary>], iteration_bounds = array<i64: 1>, scalar_prefetch = 0 : i64, scratch_operands = 0 : i64, tpu.core_type = #tpu.core_type<tc>, window_params = [{pipeline_mode = #tpu.pipeline_mode<synchronous>, transform_indices = @transform_0, window_bounds = array<i64: 16, 128>}, {pipeline_mode = #tpu.pipeline_mode<synchronous>, transform_indices = @transform_1, window_bounds = array<i64: 2, 8>}, {pipeline_mode = #tpu.pipeline_mode<synchronous>, transform_indices = @transform_2, window_bounds = array<i64: 128, 128>}, {pipeline_mode = #tpu.pipeline_mode<synchronous>, transform_indices = @transform_3, window_bounds = array<i64: 1, 128>}, {pipeline_mode = #tpu.pipeline_mode<synchronous>, transform_indices = @transform_4, window_bounds = array<i64: 8, 128>}, {pipeline_mode = #tpu.pipeline_mode<synchronous>, transform_indices = @transform_5, window_bounds = array<i64: 1, 128>}, {pipeline_mode = #tpu.pipeline_mode<synchronous>, transform_indices = @transform_6, window_bounds = array<i64: 256, 4>}, {pipeline_mode = #tpu.pipeline_mode<synchronous>, transform_indices = @transform_7, window_bounds = array<i64: 1, 4>}, {pipeline_mode = #tpu.pipeline_mode<synchronous>, transform_indices = @transform_8, window_bounds = array<i64: 2, 4>}]} {
    %c0 = arith.constant 0 : index
    %c0_0 = arith.constant 0 : index
    %0 = vector.load %arg1[%c0, %c0_0] : memref<16x128xf32, #tpu.memory_space<vmem>>, vector<1x128xf32>
    %c8 = arith.constant 8 : index
    %c0_1 = arith.constant 0 : index
    %1 = vector.load %arg1[%c8, %c0_1] : memref<16x128xf32, #tpu.memory_space<vmem>>, vector<1x128xf32>
    %2 = tpu.concatenate %0, %1 in 0 : vector<1x128xf32>, vector<1x128xf32> -> vector<2x128xf32>
    %c0_2 = arith.constant 0 : index
    %c0_3 = arith.constant 0 : index
    %3 = vector.load %arg3[%c0_2, %c0_3] : memref<128x128xf32, #tpu.memory_space<vmem>>, vector<128x128xf32>
    %cst = arith.constant dense<0.000000e+00> : vector<2x128xf32>
    %4 = tpu.matmul %2, %3, %cst {dimension_numbers = #tpu.dot_dimension_numbers<[1], [0], [0], [1], [0, 0, 1, 1], [], []>} : vector<2x128xf32>, vector<128x128xf32>, vector<2x128xf32> -> vector<2x128xf32>
    %c0_4 = arith.constant 0 : index
    %c0_5 = arith.constant 0 : index
    %5 = vector.load %arg4[%c0_4, %c0_5] : memref<1x128xf32, #tpu.memory_space<vmem>>, vector<1x128xf32>
    %6 = vector.broadcast %5 : vector<1x128xf32> to vector<2x128xf32>
    %7 = arith.addf %4, %6 : vector<2x128xf32>
    %8 = math.tanh %7 : vector<2x128xf32>
    %c0_6 = arith.constant 0 : index
    %c0_7 = arith.constant 0 : index
    %9 = vector.load %arg2[%c0_6, %c0_7] : memref<2x8xf32, #tpu.memory_space<vmem>>, vector<2x8xf32>
    %c0_8 = arith.constant 0 : index
    %c0_9 = arith.constant 0 : index
    %10 = vector.load %arg5[%c0_8, %c0_9] : memref<8x128xf32, #tpu.memory_space<vmem>>, vector<8x128xf32>
    %cst_10 = arith.constant dense<0.000000e+00> : vector<2x128xf32>
    %11 = tpu.matmul %9, %10, %cst_10 {dimension_numbers = #tpu.dot_dimension_numbers<[1], [0], [0], [1], [0, 0, 1, 1], [], []>} : vector<2x8xf32>, vector<8x128xf32>, vector<2x128xf32> -> vector<2x128xf32>
    %c0_11 = arith.constant 0 : index
    %c0_12 = arith.constant 0 : index
    %12 = vector.load %arg6[%c0_11, %c0_12] : memref<1x128xf32, #tpu.memory_space<vmem>>, vector<1x128xf32>
    %13 = vector.broadcast %12 : vector<1x128xf32> to vector<2x128xf32>
    %14 = arith.addf %11, %13 : vector<2x128xf32>
    %15 = tpu.concatenate %8, %14 in 1 : vector<2x128xf32>, vector<2x128xf32> -> vector<2x256xf32>
    %c0_13 = arith.constant 0 : index
    %c0_14 = arith.constant 0 : index
    %16 = vector.load %arg7[%c0_13, %c0_14] : memref<256x4xf32, #tpu.memory_space<vmem>>, vector<256x4xf32>
    %cst_15 = arith.constant dense<0.000000e+00> : vector<2x4xf32>
    %17 = tpu.matmul %15, %16, %cst_15 {dimension_numbers = #tpu.dot_dimension_numbers<[1], [0], [0], [1], [0, 0, 1, 1], [], []>} : vector<2x256xf32>, vector<256x4xf32>, vector<2x4xf32> -> vector<2x4xf32>
    %c0_16 = arith.constant 0 : index
    %c0_17 = arith.constant 0 : index
    %18 = vector.load %arg8[%c0_16, %c0_17] : memref<1x4xf32, #tpu.memory_space<vmem>>, vector<1x4xf32>
    %19 = vector.broadcast %18 : vector<1x4xf32> to vector<2x4xf32>
    %20 = arith.addf %17, %19 : vector<2x4xf32>
    %c0_18 = arith.constant 0 : index
    %c0_19 = arith.constant 0 : index
    %21 = vector.load %arg9[%c0_18, %c0_19] : memref<2x4xf32, #tpu.memory_space<vmem>>, vector<2x4xf32>
    tpu.vector_store %arg9[%c0_18, %c0_19], %20 {strides = array<i32>} : memref<2x4xf32, #tpu.memory_space<vmem>>, vector<2x4xf32>,
    return
  }
  func.func @transform_0(%arg0: i32) -> (i32, i32) {
    %c0_i32 = arith.constant 0 : i32
    %c0_i32_0 = arith.constant 0 : i32
    %c0_i32_1 = arith.constant 0 : i32
    return %c0_i32, %c0_i32_0 : i32, i32
  }
  func.func @transform_1(%arg0: i32) -> (i32, i32) {
    %c0_i32 = arith.constant 0 : i32
    %c0_i32_0 = arith.constant 0 : i32
    %c0_i32_1 = arith.constant 0 : i32
    return %c0_i32, %c0_i32_0 : i32, i32
  }
  func.func @transform_2(%arg0: i32) -> (i32, i32) {
    %c0_i32 = arith.constant 0 : i32
    %c0_i32_0 = arith.constant 0 : i32
    %c0_i32_1 = arith.constant 0 : i32
    return %c0_i32, %c0_i32_0 : i32, i32
  }
  func.func @transform_3(%arg0: i32) -> (i32, i32) {
    %c0_i32 = arith.constant 0 : i32
    %c0_i32_0 = arith.constant 0 : i32
    %c0_i32_1 = arith.constant 0 : i32
    return %c0_i32, %c0_i32_0 : i32, i32
  }
  func.func @transform_4(%arg0: i32) -> (i32, i32) {
    %c0_i32 = arith.constant 0 : i32
    %c0_i32_0 = arith.constant 0 : i32
    %c0_i32_1 = arith.constant 0 : i32
    return %c0_i32, %c0_i32_0 : i32, i32
  }
  func.func @transform_5(%arg0: i32) -> (i32, i32) {
    %c0_i32 = arith.constant 0 : i32
    %c0_i32_0 = arith.constant 0 : i32
    %c0_i32_1 = arith.constant 0 : i32
    return %c0_i32, %c0_i32_0 : i32, i32
  }
  func.func @transform_6(%arg0: i32) -> (i32, i32) {
    %c0_i32 = arith.constant 0 : i32
    %c0_i32_0 = arith.constant 0 : i32
    %c0_i32_1 = arith.constant 0 : i32
    return %c0_i32, %c0_i32_0 : i32, i32
  }
  func.func @transform_7(%arg0: i32) -> (i32, i32) {
    %c0_i32 = arith.constant 0 : i32
    %c0_i32_0 = arith.constant 0 : i32
    %c0_i32_1 = arith.constant 0 : i32
    return %c0_i32, %c0_i32_0 : i32, i32
  }
  func.func @transform_8(%arg0: i32) -> (i32, i32) {
    %c0_i32 = arith.constant 0 : i32
    %c0_i32_0 = arith.constant 0 : i32
    %c0_i32_1 = arith.constant 0 : i32
    return %c0_i32, %c0_i32_0 : i32, i32
  }
}

module attributes {stable_mosaic.version = 11 : i64} {
  func.func @_encoder_kernel(%arg0: i32, %arg1: memref<16x128xf32, #tpu.memory_space<vmem>>, %arg2: memref<2x1x8xf32, #tpu.memory_space<vmem>>, %arg3: memref<1x128xf32, #tpu.memory_space<vmem>>, %arg4: memref<1x128xf32, #tpu.memory_space<vmem>>, %arg5: memref<1x128x384xf32, #tpu.memory_space<vmem>>, %arg6: memref<1x1x384xf32, #tpu.memory_space<vmem>>, %arg7: memref<1x128x128xf32, #tpu.memory_space<vmem>>, %arg8: memref<1x1x128xf32, #tpu.memory_space<vmem>>, %arg9: memref<1x1x128xf32, #tpu.memory_space<vmem>>, %arg10: memref<1x1x128xf32, #tpu.memory_space<vmem>>, %arg11: memref<1x128x256xf32, #tpu.memory_space<vmem>>, %arg12: memref<1x1x256xf32, #tpu.memory_space<vmem>>, %arg13: memref<1x256x128xf32, #tpu.memory_space<vmem>>, %arg14: memref<1x1x128xf32, #tpu.memory_space<vmem>>, %arg15: memref<1x1x128xf32, #tpu.memory_space<vmem>>, %arg16: memref<1x1x128xf32, #tpu.memory_space<vmem>>, %arg17: memref<16x128xf32, #tpu.memory_space<vmem>>) attributes {dimension_semantics = [#tpu.dimension_semantics<arbitrary>], iteration_bounds = array<i64: 2>, scalar_prefetch = 0 : i64, scratch_operands = 0 : i64, tpu.core_type = #tpu.core_type<tc>, window_params = [{pipeline_mode = #tpu.pipeline_mode<synchronous>, transform_indices = @transform_0, window_bounds = array<i64: 16, 128>}, {pipeline_mode = #tpu.pipeline_mode<synchronous>, transform_indices = @transform_1, window_bounds = array<i64: 2, 1, 8>}, {pipeline_mode = #tpu.pipeline_mode<synchronous>, transform_indices = @transform_2, window_bounds = array<i64: 1, 128>}, {pipeline_mode = #tpu.pipeline_mode<synchronous>, transform_indices = @transform_3, window_bounds = array<i64: 1, 128>}, {transform_indices = @transform_4, window_bounds = array<i64: 1, 128, 384>}, {transform_indices = @transform_5, window_bounds = array<i64: 1, 1, 384>}, {transform_indices = @transform_6, window_bounds = array<i64: 1, 128, 128>}, {transform_indices = @transform_7, window_bounds = array<i64: 1, 1, 128>}, {transform_indices = @transform_8, window_bounds = array<i64: 1, 1, 128>}, {transform_indices = @transform_9, window_bounds = array<i64: 1, 1, 128>}, {transform_indices = @transform_10, window_bounds = array<i64: 1, 128, 256>}, {transform_indices = @transform_11, window_bounds = array<i64: 1, 1, 256>}, {transform_indices = @transform_12, window_bounds = array<i64: 1, 256, 128>}, {transform_indices = @transform_13, window_bounds = array<i64: 1, 1, 128>}, {transform_indices = @transform_14, window_bounds = array<i64: 1, 1, 128>}, {transform_indices = @transform_15, window_bounds = array<i64: 1, 1, 128>}, {pipeline_mode = #tpu.pipeline_mode<synchronous>, transform_indices = @transform_16, window_bounds = array<i64: 16, 128>}]} {
    %c0_i32 = arith.constant 0 : i32
    %0 = arith.cmpi eq, %arg0, %c0_i32 : i32
    %1 = arith.extui %0 : i1 to i32
    %c0_i32_0 = arith.constant 0 : i32
    %2 = arith.cmpi ne, %1, %c0_i32_0 : i32
    scf.if %2 {
      %c0_102 = arith.constant 0 : index
      %c0_103 = arith.constant 0 : index
      %258 = vector.load %arg1[%c0_102, %c0_103] : memref<16x128xf32, #tpu.memory_space<vmem>>, vector<16x128xf32>
      %c0_104 = arith.constant 0 : index
      %c0_105 = arith.constant 0 : index
      %259 = vector.load %arg3[%c0_104, %c0_105] : memref<1x128xf32, #tpu.memory_space<vmem>>, vector<1x128xf32>
      %c0_106 = arith.constant 0 : index
      %c0_107 = arith.constant 0 : index
      %260 = vector.load %arg4[%c0_106, %c0_107] : memref<1x128xf32, #tpu.memory_space<vmem>>, vector<1x128xf32>
      %cst_108 = arith.constant dense<0.000000e+00> : vector<16xf32>
      %261 = vector.multi_reduction <add>, %258, %cst_108 [1] : vector<16x128xf32> to vector<16xf32>
      %262 = vector.shape_cast %261 : vector<16xf32> to vector<16x1xf32>
      %cst_109 = arith.constant 1.280000e+02 : f32
      %263 = vector.broadcast %cst_109 : f32 to vector<16x1xf32>
      %264 = arith.divf %262, %263 : vector<16x1xf32>
      %265 = vector.broadcast %264 : vector<16x1xf32> to vector<16x128xf32>
      %266 = arith.subf %258, %265 : vector<16x128xf32>
      %267 = arith.mulf %266, %266 : vector<16x128xf32>
      %cst_110 = arith.constant dense<0.000000e+00> : vector<16xf32>
      %268 = vector.multi_reduction <add>, %267, %cst_110 [1] : vector<16x128xf32> to vector<16xf32>
      %269 = vector.shape_cast %268 : vector<16xf32> to vector<16x1xf32>
      %cst_111 = arith.constant 1.280000e+02 : f32
      %270 = vector.broadcast %cst_111 : f32 to vector<16x1xf32>
      %271 = arith.divf %269, %270 : vector<16x1xf32>
      %cst_112 = arith.constant 9.99999974E-6 : f32
      %272 = vector.broadcast %cst_112 : f32 to vector<16x1xf32>
      %273 = arith.addf %271, %272 : vector<16x1xf32>
      %274 = math.rsqrt %273 : vector<16x1xf32>
      %275 = vector.broadcast %274 : vector<16x1xf32> to vector<16x128xf32>
      %276 = arith.mulf %266, %275 : vector<16x128xf32>
      %277 = vector.broadcast %259 : vector<1x128xf32> to vector<16x128xf32>
      %278 = arith.mulf %276, %277 : vector<16x128xf32>
      %279 = vector.broadcast %260 : vector<1x128xf32> to vector<16x128xf32>
      %280 = arith.addf %278, %279 : vector<16x128xf32>
      %c0_113 = arith.constant 0 : index
      %c0_114 = arith.constant 0 : index
      %281 = vector.load %arg17[%c0_113, %c0_114] : memref<16x128xf32, #tpu.memory_space<vmem>>, vector<16x128xf32>
      tpu.vector_store %arg17[%c0_113, %c0_114], %280 {strides = array<i32>} : memref<16x128xf32, #tpu.memory_space<vmem>>, vector<16x128xf32>,
    } else {
    }
    %c0 = arith.constant 0 : index
    %c0_1 = arith.constant 0 : index
    %3 = vector.load %arg17[%c0, %c0_1] : memref<16x128xf32, #tpu.memory_space<vmem>>, vector<16x128xf32>
    %c0_2 = arith.constant 0 : index
    %c0_3 = arith.constant 0 : index
    %c0_4 = arith.constant 0 : index
    %4 = vector.load %arg5[%c0_2, %c0_3, %c0_4] : memref<1x128x384xf32, #tpu.memory_space<vmem>>, vector<1x128x384xf32>
    %5 = vector.shape_cast %4 : vector<1x128x384xf32> to vector<128x384xf32>
    %cst = arith.constant dense<0.000000e+00> : vector<16x384xf32>
    %6 = tpu.matmul %3, %5, %cst {dimension_numbers = #tpu.dot_dimension_numbers<[1], [0], [0], [1], [0, 0, 1, 1], [], []>} : vector<16x128xf32>, vector<128x384xf32>, vector<16x384xf32> -> vector<16x384xf32>
    %c0_5 = arith.constant 0 : index
    %c0_6 = arith.constant 0 : index
    %c0_7 = arith.constant 0 : index
    %7 = vector.load %arg6[%c0_5, %c0_6, %c0_7] : memref<1x1x384xf32, #tpu.memory_space<vmem>>, vector<1x1x384xf32>
    %8 = vector.shape_cast %7 : vector<1x1x384xf32> to vector<1x384xf32>
    %9 = vector.broadcast %8 : vector<1x384xf32> to vector<16x384xf32>
    %10 = arith.addf %6, %9 : vector<16x384xf32>
    %11 = vector.extract_strided_slice %10 {offsets = [0, 0], sizes = [16, 128], strides = [1, 1]} : vector<16x384xf32> to vector<16x128xf32>
    %12 = vector.extract_strided_slice %10 {offsets = [0, 128], sizes = [16, 128], strides = [1, 1]} : vector<16x384xf32> to vector<16x128xf32>
    %13 = vector.extract_strided_slice %10 {offsets = [0, 256], sizes = [16, 128], strides = [1, 1]} : vector<16x384xf32> to vector<16x128xf32>
    %c0_8 = arith.constant 0 : index
    %c0_9 = arith.constant 0 : index
    %c0_10 = arith.constant 0 : index
    %14 = vector.load %arg2[%c0_8, %c0_9, %c0_10] : memref<2x1x8xf32, #tpu.memory_space<vmem>>, vector<1x1x8xf32>
    %15 = vector.shape_cast %14 : vector<1x1x8xf32> to vector<1x8xf32>
    %16 = vector.extract_strided_slice %11 {offsets = [0, 0], sizes = [8, 32], strides = [1, 1]} : vector<16x128xf32> to vector<8x32xf32>
    %17 = vector.extract_strided_slice %12 {offsets = [0, 0], sizes = [8, 32], strides = [1, 1]} : vector<16x128xf32> to vector<8x32xf32>
    %18 = vector.extract_strided_slice %13 {offsets = [0, 0], sizes = [8, 32], strides = [1, 1]} : vector<16x128xf32> to vector<8x32xf32>
    %cst_11 = arith.constant dense<0.000000e+00> : vector<8x8xf32>
    %19 = tpu.matmul %16, %17, %cst_11 {dimension_numbers = #tpu.dot_dimension_numbers<[1], [1], [0], [0], [0, 0, 1, 0], [], []>} : vector<8x32xf32>, vector<8x32xf32>, vector<8x8xf32> -> vector<8x8xf32>
    %cst_12 = arith.constant 0.176776692 : f32
    %20 = vector.broadcast %cst_12 : f32 to vector<8x8xf32>
    %21 = arith.mulf %19, %20 : vector<8x8xf32>
    %22 = vector.broadcast %15 : vector<1x8xf32> to vector<8x8xf32>
    %23 = arith.addf %21, %22 : vector<8x8xf32>
    %cst_13 = arith.constant dense<0xFF800000> : vector<8xf32>
    %24 = vector.multi_reduction <maximumf>, %23, %cst_13 [1] : vector<8x8xf32> to vector<8xf32>
    %25 = vector.shape_cast %24 : vector<8xf32> to vector<8x1xf32>
    %26 = vector.broadcast %25 : vector<8x1xf32> to vector<8x8xf32>
    %27 = arith.subf %23, %26 : vector<8x8xf32>
    %28 = math.exp %27 : vector<8x8xf32>
    %cst_14 = arith.constant dense<0.000000e+00> : vector<8xf32>
    %29 = vector.multi_reduction <add>, %28, %cst_14 [1] : vector<8x8xf32> to vector<8xf32>
    %30 = vector.shape_cast %29 : vector<8xf32> to vector<8x1xf32>
    %31 = tpu.reciprocal %30 {approx = true} : vector<8x1xf32> -> vector<8x1xf32>
    %32 = vector.broadcast %31 : vector<8x1xf32> to vector<8x8xf32>
    %33 = arith.mulf %28, %32 : vector<8x8xf32>
    %cst_15 = arith.constant dense<0.000000e+00> : vector<8x32xf32>
    %34 = tpu.matmul %33, %18, %cst_15 {dimension_numbers = #tpu.dot_dimension_numbers<[1], [0], [0], [1], [0, 0, 1, 1], [], []>} : vector<8x8xf32>, vector<8x32xf32>, vector<8x32xf32> -> vector<8x32xf32>
    %35 = vector.extract_strided_slice %11 {offsets = [0, 32], sizes = [8, 32], strides = [1, 1]} : vector<16x128xf32> to vector<8x32xf32>
    %36 = vector.extract_strided_slice %12 {offsets = [0, 32], sizes = [8, 32], strides = [1, 1]} : vector<16x128xf32> to vector<8x32xf32>
    %37 = vector.extract_strided_slice %13 {offsets = [0, 32], sizes = [8, 32], strides = [1, 1]} : vector<16x128xf32> to vector<8x32xf32>
    %cst_16 = arith.constant dense<0.000000e+00> : vector<8x8xf32>
    %38 = tpu.matmul %35, %36, %cst_16 {dimension_numbers = #tpu.dot_dimension_numbers<[1], [1], [0], [0], [0, 0, 1, 0], [], []>} : vector<8x32xf32>, vector<8x32xf32>, vector<8x8xf32> -> vector<8x8xf32>
    %cst_17 = arith.constant 0.176776692 : f32
    %39 = vector.broadcast %cst_17 : f32 to vector<8x8xf32>
    %40 = arith.mulf %38, %39 : vector<8x8xf32>
    %41 = vector.broadcast %15 : vector<1x8xf32> to vector<8x8xf32>
    %42 = arith.addf %40, %41 : vector<8x8xf32>
    %cst_18 = arith.constant dense<0xFF800000> : vector<8xf32>
    %43 = vector.multi_reduction <maximumf>, %42, %cst_18 [1] : vector<8x8xf32> to vector<8xf32>
    %44 = vector.shape_cast %43 : vector<8xf32> to vector<8x1xf32>
    %45 = vector.broadcast %44 : vector<8x1xf32> to vector<8x8xf32>
    %46 = arith.subf %42, %45 : vector<8x8xf32>
    %47 = math.exp %46 : vector<8x8xf32>
    %cst_19 = arith.constant dense<0.000000e+00> : vector<8xf32>
    %48 = vector.multi_reduction <add>, %47, %cst_19 [1] : vector<8x8xf32> to vector<8xf32>
    %49 = vector.shape_cast %48 : vector<8xf32> to vector<8x1xf32>
    %50 = tpu.reciprocal %49 {approx = true} : vector<8x1xf32> -> vector<8x1xf32>
    %51 = vector.broadcast %50 : vector<8x1xf32> to vector<8x8xf32>
    %52 = arith.mulf %47, %51 : vector<8x8xf32>
    %cst_20 = arith.constant dense<0.000000e+00> : vector<8x32xf32>
    %53 = tpu.matmul %52, %37, %cst_20 {dimension_numbers = #tpu.dot_dimension_numbers<[1], [0], [0], [1], [0, 0, 1, 1], [], []>} : vector<8x8xf32>, vector<8x32xf32>, vector<8x32xf32> -> vector<8x32xf32>
    %54 = vector.extract_strided_slice %11 {offsets = [0, 64], sizes = [8, 32], strides = [1, 1]} : vector<16x128xf32> to vector<8x32xf32>
    %55 = vector.extract_strided_slice %12 {offsets = [0, 64], sizes = [8, 32], strides = [1, 1]} : vector<16x128xf32> to vector<8x32xf32>
    %56 = vector.extract_strided_slice %13 {offsets = [0, 64], sizes = [8, 32], strides = [1, 1]} : vector<16x128xf32> to vector<8x32xf32>
    %cst_21 = arith.constant dense<0.000000e+00> : vector<8x8xf32>
    %57 = tpu.matmul %54, %55, %cst_21 {dimension_numbers = #tpu.dot_dimension_numbers<[1], [1], [0], [0], [0, 0, 1, 0], [], []>} : vector<8x32xf32>, vector<8x32xf32>, vector<8x8xf32> -> vector<8x8xf32>
    %cst_22 = arith.constant 0.176776692 : f32
    %58 = vector.broadcast %cst_22 : f32 to vector<8x8xf32>
    %59 = arith.mulf %57, %58 : vector<8x8xf32>
    %60 = vector.broadcast %15 : vector<1x8xf32> to vector<8x8xf32>
    %61 = arith.addf %59, %60 : vector<8x8xf32>
    %cst_23 = arith.constant dense<0xFF800000> : vector<8xf32>
    %62 = vector.multi_reduction <maximumf>, %61, %cst_23 [1] : vector<8x8xf32> to vector<8xf32>
    %63 = vector.shape_cast %62 : vector<8xf32> to vector<8x1xf32>
    %64 = vector.broadcast %63 : vector<8x1xf32> to vector<8x8xf32>
    %65 = arith.subf %61, %64 : vector<8x8xf32>
    %66 = math.exp %65 : vector<8x8xf32>
    %cst_24 = arith.constant dense<0.000000e+00> : vector<8xf32>
    %67 = vector.multi_reduction <add>, %66, %cst_24 [1] : vector<8x8xf32> to vector<8xf32>
    %68 = vector.shape_cast %67 : vector<8xf32> to vector<8x1xf32>
    %69 = tpu.reciprocal %68 {approx = true} : vector<8x1xf32> -> vector<8x1xf32>
    %70 = vector.broadcast %69 : vector<8x1xf32> to vector<8x8xf32>
    %71 = arith.mulf %66, %70 : vector<8x8xf32>
    %cst_25 = arith.constant dense<0.000000e+00> : vector<8x32xf32>
    %72 = tpu.matmul %71, %56, %cst_25 {dimension_numbers = #tpu.dot_dimension_numbers<[1], [0], [0], [1], [0, 0, 1, 1], [], []>} : vector<8x8xf32>, vector<8x32xf32>, vector<8x32xf32> -> vector<8x32xf32>
    %73 = vector.extract_strided_slice %11 {offsets = [0, 96], sizes = [8, 32], strides = [1, 1]} : vector<16x128xf32> to vector<8x32xf32>
    %74 = vector.extract_strided_slice %12 {offsets = [0, 96], sizes = [8, 32], strides = [1, 1]} : vector<16x128xf32> to vector<8x32xf32>
    %75 = vector.extract_strided_slice %13 {offsets = [0, 96], sizes = [8, 32], strides = [1, 1]} : vector<16x128xf32> to vector<8x32xf32>
    %cst_26 = arith.constant dense<0.000000e+00> : vector<8x8xf32>
    %76 = tpu.matmul %73, %74, %cst_26 {dimension_numbers = #tpu.dot_dimension_numbers<[1], [1], [0], [0], [0, 0, 1, 0], [], []>} : vector<8x32xf32>, vector<8x32xf32>, vector<8x8xf32> -> vector<8x8xf32>
    %cst_27 = arith.constant 0.176776692 : f32
    %77 = vector.broadcast %cst_27 : f32 to vector<8x8xf32>
    %78 = arith.mulf %76, %77 : vector<8x8xf32>
    %79 = vector.broadcast %15 : vector<1x8xf32> to vector<8x8xf32>
    %80 = arith.addf %78, %79 : vector<8x8xf32>
    %cst_28 = arith.constant dense<0xFF800000> : vector<8xf32>
    %81 = vector.multi_reduction <maximumf>, %80, %cst_28 [1] : vector<8x8xf32> to vector<8xf32>
    %82 = vector.shape_cast %81 : vector<8xf32> to vector<8x1xf32>
    %83 = vector.broadcast %82 : vector<8x1xf32> to vector<8x8xf32>
    %84 = arith.subf %80, %83 : vector<8x8xf32>
    %85 = math.exp %84 : vector<8x8xf32>
    %cst_29 = arith.constant dense<0.000000e+00> : vector<8xf32>
    %86 = vector.multi_reduction <add>, %85, %cst_29 [1] : vector<8x8xf32> to vector<8xf32>
    %87 = vector.shape_cast %86 : vector<8xf32> to vector<8x1xf32>
    %88 = tpu.reciprocal %87 {approx = true} : vector<8x1xf32> -> vector<8x1xf32>
    %89 = vector.broadcast %88 : vector<8x1xf32> to vector<8x8xf32>
    %90 = arith.mulf %85, %89 : vector<8x8xf32>
    %cst_30 = arith.constant dense<0.000000e+00> : vector<8x32xf32>
    %91 = tpu.matmul %90, %75, %cst_30 {dimension_numbers = #tpu.dot_dimension_numbers<[1], [0], [0], [1], [0, 0, 1, 1], [], []>} : vector<8x8xf32>, vector<8x32xf32>, vector<8x32xf32> -> vector<8x32xf32>
    %92 = tpu.concatenate %34, %53, %72, %91 in 1 : vector<8x32xf32>, vector<8x32xf32>, vector<8x32xf32>, vector<8x32xf32> -> vector<8x128xf32>
    %c1 = arith.constant 1 : index
    %c0_31 = arith.constant 0 : index
    %c0_32 = arith.constant 0 : index
    %93 = vector.load %arg2[%c1, %c0_31, %c0_32] : memref<2x1x8xf32, #tpu.memory_space<vmem>>, vector<1x1x8xf32>
    %94 = vector.shape_cast %93 : vector<1x1x8xf32> to vector<1x8xf32>
    %95 = vector.extract_strided_slice %11 {offsets = [8, 0], sizes = [8, 32], strides = [1, 1]} : vector<16x128xf32> to vector<8x32xf32>
    %96 = vector.extract_strided_slice %12 {offsets = [8, 0], sizes = [8, 32], strides = [1, 1]} : vector<16x128xf32> to vector<8x32xf32>
    %97 = vector.extract_strided_slice %13 {offsets = [8, 0], sizes = [8, 32], strides = [1, 1]} : vector<16x128xf32> to vector<8x32xf32>
    %cst_33 = arith.constant dense<0.000000e+00> : vector<8x8xf32>
    %98 = tpu.matmul %95, %96, %cst_33 {dimension_numbers = #tpu.dot_dimension_numbers<[1], [1], [0], [0], [0, 0, 1, 0], [], []>} : vector<8x32xf32>, vector<8x32xf32>, vector<8x8xf32> -> vector<8x8xf32>
    %cst_34 = arith.constant 0.176776692 : f32
    %99 = vector.broadcast %cst_34 : f32 to vector<8x8xf32>
    %100 = arith.mulf %98, %99 : vector<8x8xf32>
    %101 = vector.broadcast %94 : vector<1x8xf32> to vector<8x8xf32>
    %102 = arith.addf %100, %101 : vector<8x8xf32>
    %cst_35 = arith.constant dense<0xFF800000> : vector<8xf32>
    %103 = vector.multi_reduction <maximumf>, %102, %cst_35 [1] : vector<8x8xf32> to vector<8xf32>
    %104 = vector.shape_cast %103 : vector<8xf32> to vector<8x1xf32>
    %105 = vector.broadcast %104 : vector<8x1xf32> to vector<8x8xf32>
    %106 = arith.subf %102, %105 : vector<8x8xf32>
    %107 = math.exp %106 : vector<8x8xf32>
    %cst_36 = arith.constant dense<0.000000e+00> : vector<8xf32>
    %108 = vector.multi_reduction <add>, %107, %cst_36 [1] : vector<8x8xf32> to vector<8xf32>
    %109 = vector.shape_cast %108 : vector<8xf32> to vector<8x1xf32>
    %110 = tpu.reciprocal %109 {approx = true} : vector<8x1xf32> -> vector<8x1xf32>
    %111 = vector.broadcast %110 : vector<8x1xf32> to vector<8x8xf32>
    %112 = arith.mulf %107, %111 : vector<8x8xf32>
    %cst_37 = arith.constant dense<0.000000e+00> : vector<8x32xf32>
    %113 = tpu.matmul %112, %97, %cst_37 {dimension_numbers = #tpu.dot_dimension_numbers<[1], [0], [0], [1], [0, 0, 1, 1], [], []>} : vector<8x8xf32>, vector<8x32xf32>, vector<8x32xf32> -> vector<8x32xf32>
    %114 = vector.extract_strided_slice %11 {offsets = [8, 32], sizes = [8, 32], strides = [1, 1]} : vector<16x128xf32> to vector<8x32xf32>
    %115 = vector.extract_strided_slice %12 {offsets = [8, 32], sizes = [8, 32], strides = [1, 1]} : vector<16x128xf32> to vector<8x32xf32>
    %116 = vector.extract_strided_slice %13 {offsets = [8, 32], sizes = [8, 32], strides = [1, 1]} : vector<16x128xf32> to vector<8x32xf32>
    %cst_38 = arith.constant dense<0.000000e+00> : vector<8x8xf32>
    %117 = tpu.matmul %114, %115, %cst_38 {dimension_numbers = #tpu.dot_dimension_numbers<[1], [1], [0], [0], [0, 0, 1, 0], [], []>} : vector<8x32xf32>, vector<8x32xf32>, vector<8x8xf32> -> vector<8x8xf32>
    %cst_39 = arith.constant 0.176776692 : f32
    %118 = vector.broadcast %cst_39 : f32 to vector<8x8xf32>
    %119 = arith.mulf %117, %118 : vector<8x8xf32>
    %120 = vector.broadcast %94 : vector<1x8xf32> to vector<8x8xf32>
    %121 = arith.addf %119, %120 : vector<8x8xf32>
    %cst_40 = arith.constant dense<0xFF800000> : vector<8xf32>
    %122 = vector.multi_reduction <maximumf>, %121, %cst_40 [1] : vector<8x8xf32> to vector<8xf32>
    %123 = vector.shape_cast %122 : vector<8xf32> to vector<8x1xf32>
    %124 = vector.broadcast %123 : vector<8x1xf32> to vector<8x8xf32>
    %125 = arith.subf %121, %124 : vector<8x8xf32>
    %126 = math.exp %125 : vector<8x8xf32>
    %cst_41 = arith.constant dense<0.000000e+00> : vector<8xf32>
    %127 = vector.multi_reduction <add>, %126, %cst_41 [1] : vector<8x8xf32> to vector<8xf32>
    %128 = vector.shape_cast %127 : vector<8xf32> to vector<8x1xf32>
    %129 = tpu.reciprocal %128 {approx = true} : vector<8x1xf32> -> vector<8x1xf32>
    %130 = vector.broadcast %129 : vector<8x1xf32> to vector<8x8xf32>
    %131 = arith.mulf %126, %130 : vector<8x8xf32>
    %cst_42 = arith.constant dense<0.000000e+00> : vector<8x32xf32>
    %132 = tpu.matmul %131, %116, %cst_42 {dimension_numbers = #tpu.dot_dimension_numbers<[1], [0], [0], [1], [0, 0, 1, 1], [], []>} : vector<8x8xf32>, vector<8x32xf32>, vector<8x32xf32> -> vector<8x32xf32>
    %133 = vector.extract_strided_slice %11 {offsets = [8, 64], sizes = [8, 32], strides = [1, 1]} : vector<16x128xf32> to vector<8x32xf32>
    %134 = vector.extract_strided_slice %12 {offsets = [8, 64], sizes = [8, 32], strides = [1, 1]} : vector<16x128xf32> to vector<8x32xf32>
    %135 = vector.extract_strided_slice %13 {offsets = [8, 64], sizes = [8, 32], strides = [1, 1]} : vector<16x128xf32> to vector<8x32xf32>
    %cst_43 = arith.constant dense<0.000000e+00> : vector<8x8xf32>
    %136 = tpu.matmul %133, %134, %cst_43 {dimension_numbers = #tpu.dot_dimension_numbers<[1], [1], [0], [0], [0, 0, 1, 0], [], []>} : vector<8x32xf32>, vector<8x32xf32>, vector<8x8xf32> -> vector<8x8xf32>
    %cst_44 = arith.constant 0.176776692 : f32
    %137 = vector.broadcast %cst_44 : f32 to vector<8x8xf32>
    %138 = arith.mulf %136, %137 : vector<8x8xf32>
    %139 = vector.broadcast %94 : vector<1x8xf32> to vector<8x8xf32>
    %140 = arith.addf %138, %139 : vector<8x8xf32>
    %cst_45 = arith.constant dense<0xFF800000> : vector<8xf32>
    %141 = vector.multi_reduction <maximumf>, %140, %cst_45 [1] : vector<8x8xf32> to vector<8xf32>
    %142 = vector.shape_cast %141 : vector<8xf32> to vector<8x1xf32>
    %143 = vector.broadcast %142 : vector<8x1xf32> to vector<8x8xf32>
    %144 = arith.subf %140, %143 : vector<8x8xf32>
    %145 = math.exp %144 : vector<8x8xf32>
    %cst_46 = arith.constant dense<0.000000e+00> : vector<8xf32>
    %146 = vector.multi_reduction <add>, %145, %cst_46 [1] : vector<8x8xf32> to vector<8xf32>
    %147 = vector.shape_cast %146 : vector<8xf32> to vector<8x1xf32>
    %148 = tpu.reciprocal %147 {approx = true} : vector<8x1xf32> -> vector<8x1xf32>
    %149 = vector.broadcast %148 : vector<8x1xf32> to vector<8x8xf32>
    %150 = arith.mulf %145, %149 : vector<8x8xf32>
    %cst_47 = arith.constant dense<0.000000e+00> : vector<8x32xf32>
    %151 = tpu.matmul %150, %135, %cst_47 {dimension_numbers = #tpu.dot_dimension_numbers<[1], [0], [0], [1], [0, 0, 1, 1], [], []>} : vector<8x8xf32>, vector<8x32xf32>, vector<8x32xf32> -> vector<8x32xf32>
    %152 = vector.extract_strided_slice %11 {offsets = [8, 96], sizes = [8, 32], strides = [1, 1]} : vector<16x128xf32> to vector<8x32xf32>
    %153 = vector.extract_strided_slice %12 {offsets = [8, 96], sizes = [8, 32], strides = [1, 1]} : vector<16x128xf32> to vector<8x32xf32>
    %154 = vector.extract_strided_slice %13 {offsets = [8, 96], sizes = [8, 32], strides = [1, 1]} : vector<16x128xf32> to vector<8x32xf32>
    %cst_48 = arith.constant dense<0.000000e+00> : vector<8x8xf32>
    %155 = tpu.matmul %152, %153, %cst_48 {dimension_numbers = #tpu.dot_dimension_numbers<[1], [1], [0], [0], [0, 0, 1, 0], [], []>} : vector<8x32xf32>, vector<8x32xf32>, vector<8x8xf32> -> vector<8x8xf32>
    %cst_49 = arith.constant 0.176776692 : f32
    %156 = vector.broadcast %cst_49 : f32 to vector<8x8xf32>
    %157 = arith.mulf %155, %156 : vector<8x8xf32>
    %158 = vector.broadcast %94 : vector<1x8xf32> to vector<8x8xf32>
    %159 = arith.addf %157, %158 : vector<8x8xf32>
    %cst_50 = arith.constant dense<0xFF800000> : vector<8xf32>
    %160 = vector.multi_reduction <maximumf>, %159, %cst_50 [1] : vector<8x8xf32> to vector<8xf32>
    %161 = vector.shape_cast %160 : vector<8xf32> to vector<8x1xf32>
    %162 = vector.broadcast %161 : vector<8x1xf32> to vector<8x8xf32>
    %163 = arith.subf %159, %162 : vector<8x8xf32>
    %164 = math.exp %163 : vector<8x8xf32>
    %cst_51 = arith.constant dense<0.000000e+00> : vector<8xf32>
    %165 = vector.multi_reduction <add>, %164, %cst_51 [1] : vector<8x8xf32> to vector<8xf32>
    %166 = vector.shape_cast %165 : vector<8xf32> to vector<8x1xf32>
    %167 = tpu.reciprocal %166 {approx = true} : vector<8x1xf32> -> vector<8x1xf32>
    %168 = vector.broadcast %167 : vector<8x1xf32> to vector<8x8xf32>
    %169 = arith.mulf %164, %168 : vector<8x8xf32>
    %cst_52 = arith.constant dense<0.000000e+00> : vector<8x32xf32>
    %170 = tpu.matmul %169, %154, %cst_52 {dimension_numbers = #tpu.dot_dimension_numbers<[1], [0], [0], [1], [0, 0, 1, 1], [], []>} : vector<8x8xf32>, vector<8x32xf32>, vector<8x32xf32> -> vector<8x32xf32>
    %171 = tpu.concatenate %113, %132, %151, %170 in 1 : vector<8x32xf32>, vector<8x32xf32>, vector<8x32xf32>, vector<8x32xf32> -> vector<8x128xf32>
    %172 = tpu.concatenate %92, %171 in 0 : vector<8x128xf32>, vector<8x128xf32> -> vector<16x128xf32>
    %c0_53 = arith.constant 0 : index
    %c0_54 = arith.constant 0 : index
    %c0_55 = arith.constant 0 : index
    %173 = vector.load %arg7[%c0_53, %c0_54, %c0_55] : memref<1x128x128xf32, #tpu.memory_space<vmem>>, vector<1x128x128xf32>
    %174 = vector.shape_cast %173 : vector<1x128x128xf32> to vector<128x128xf32>
    %cst_56 = arith.constant dense<0.000000e+00> : vector<16x128xf32>
    %175 = tpu.matmul %172, %174, %cst_56 {dimension_numbers = #tpu.dot_dimension_numbers<[1], [0], [0], [1], [0, 0, 1, 1], [], []>} : vector<16x128xf32>, vector<128x128xf32>, vector<16x128xf32> -> vector<16x128xf32>
    %c0_57 = arith.constant 0 : index
    %c0_58 = arith.constant 0 : index
    %c0_59 = arith.constant 0 : index
    %176 = vector.load %arg8[%c0_57, %c0_58, %c0_59] : memref<1x1x128xf32, #tpu.memory_space<vmem>>, vector<1x1x128xf32>
    %177 = vector.shape_cast %176 : vector<1x1x128xf32> to vector<1x128xf32>
    %178 = vector.broadcast %177 : vector<1x128xf32> to vector<16x128xf32>
    %179 = arith.addf %175, %178 : vector<16x128xf32>
    %180 = arith.addf %3, %179 : vector<16x128xf32>
    %c0_60 = arith.constant 0 : index
    %c0_61 = arith.constant 0 : index
    %c0_62 = arith.constant 0 : index
    %181 = vector.load %arg9[%c0_60, %c0_61, %c0_62] : memref<1x1x128xf32, #tpu.memory_space<vmem>>, vector<1x1x128xf32>
    %182 = vector.shape_cast %181 : vector<1x1x128xf32> to vector<1x128xf32>
    %c0_63 = arith.constant 0 : index
    %c0_64 = arith.constant 0 : index
    %c0_65 = arith.constant 0 : index
    %183 = vector.load %arg10[%c0_63, %c0_64, %c0_65] : memref<1x1x128xf32, #tpu.memory_space<vmem>>, vector<1x1x128xf32>
    %184 = vector.shape_cast %183 : vector<1x1x128xf32> to vector<1x128xf32>
    %cst_66 = arith.constant dense<0.000000e+00> : vector<16xf32>
    %185 = vector.multi_reduction <add>, %180, %cst_66 [1] : vector<16x128xf32> to vector<16xf32>
    %186 = vector.shape_cast %185 : vector<16xf32> to vector<16x1xf32>
    %cst_67 = arith.constant 1.280000e+02 : f32
    %187 = vector.broadcast %cst_67 : f32 to vector<16x1xf32>
    %188 = arith.divf %186, %187 : vector<16x1xf32>
    %189 = vector.broadcast %188 : vector<16x1xf32> to vector<16x128xf32>
    %190 = arith.subf %180, %189 : vector<16x128xf32>
    %191 = arith.mulf %190, %190 : vector<16x128xf32>
    %cst_68 = arith.constant dense<0.000000e+00> : vector<16xf32>
    %192 = vector.multi_reduction <add>, %191, %cst_68 [1] : vector<16x128xf32> to vector<16xf32>
    %193 = vector.shape_cast %192 : vector<16xf32> to vector<16x1xf32>
    %cst_69 = arith.constant 1.280000e+02 : f32
    %194 = vector.broadcast %cst_69 : f32 to vector<16x1xf32>
    %195 = arith.divf %193, %194 : vector<16x1xf32>
    %cst_70 = arith.constant 9.99999974E-6 : f32
    %196 = vector.broadcast %cst_70 : f32 to vector<16x1xf32>
    %197 = arith.addf %195, %196 : vector<16x1xf32>
    %198 = math.rsqrt %197 : vector<16x1xf32>
    %199 = vector.broadcast %198 : vector<16x1xf32> to vector<16x128xf32>
    %200 = arith.mulf %190, %199 : vector<16x128xf32>
    %201 = vector.broadcast %182 : vector<1x128xf32> to vector<16x128xf32>
    %202 = arith.mulf %200, %201 : vector<16x128xf32>
    %203 = vector.broadcast %184 : vector<1x128xf32> to vector<16x128xf32>
    %204 = arith.addf %202, %203 : vector<16x128xf32>
    %c0_71 = arith.constant 0 : index
    %c0_72 = arith.constant 0 : index
    %c0_73 = arith.constant 0 : index
    %205 = vector.load %arg11[%c0_71, %c0_72, %c0_73] : memref<1x128x256xf32, #tpu.memory_space<vmem>>, vector<1x128x256xf32>
    %206 = vector.shape_cast %205 : vector<1x128x256xf32> to vector<128x256xf32>
    %cst_74 = arith.constant dense<0.000000e+00> : vector<16x256xf32>
    %207 = tpu.matmul %204, %206, %cst_74 {dimension_numbers = #tpu.dot_dimension_numbers<[1], [0], [0], [1], [0, 0, 1, 1], [], []>} : vector<16x128xf32>, vector<128x256xf32>, vector<16x256xf32> -> vector<16x256xf32>
    %c0_75 = arith.constant 0 : index
    %c0_76 = arith.constant 0 : index
    %c0_77 = arith.constant 0 : index
    %208 = vector.load %arg12[%c0_75, %c0_76, %c0_77] : memref<1x1x256xf32, #tpu.memory_space<vmem>>, vector<1x1x256xf32>
    %209 = vector.shape_cast %208 : vector<1x1x256xf32> to vector<1x256xf32>
    %210 = vector.broadcast %209 : vector<1x256xf32> to vector<16x256xf32>
    %211 = arith.addf %207, %210 : vector<16x256xf32>
    %212 = arith.mulf %211, %211 : vector<16x256xf32>
    %213 = arith.mulf %211, %212 : vector<16x256xf32>
    %cst_78 = arith.constant 4.471500e-02 : f32
    %214 = vector.broadcast %cst_78 : f32 to vector<16x256xf32>
    %215 = arith.mulf %214, %213 : vector<16x256xf32>
    %216 = arith.addf %211, %215 : vector<16x256xf32>
    %cst_79 = arith.constant 0.797884583 : f32
    %217 = vector.broadcast %cst_79 : f32 to vector<16x256xf32>
    %218 = arith.mulf %217, %216 : vector<16x256xf32>
    %219 = math.tanh %218 : vector<16x256xf32>
    %cst_80 = arith.constant 1.000000e+00 : f32
    %220 = vector.broadcast %cst_80 : f32 to vector<16x256xf32>
    %221 = arith.addf %220, %219 : vector<16x256xf32>
    %cst_81 = arith.constant 5.000000e-01 : f32
    %222 = vector.broadcast %cst_81 : f32 to vector<16x256xf32>
    %223 = arith.mulf %222, %221 : vector<16x256xf32>
    %224 = arith.mulf %211, %223 : vector<16x256xf32>
    %c0_82 = arith.constant 0 : index
    %c0_83 = arith.constant 0 : index
    %c0_84 = arith.constant 0 : index
    %225 = vector.load %arg13[%c0_82, %c0_83, %c0_84] : memref<1x256x128xf32, #tpu.memory_space<vmem>>, vector<1x256x128xf32>
    %226 = vector.shape_cast %225 : vector<1x256x128xf32> to vector<256x128xf32>
    %cst_85 = arith.constant dense<0.000000e+00> : vector<16x128xf32>
    %227 = tpu.matmul %224, %226, %cst_85 {dimension_numbers = #tpu.dot_dimension_numbers<[1], [0], [0], [1], [0, 0, 1, 1], [], []>} : vector<16x256xf32>, vector<256x128xf32>, vector<16x128xf32> -> vector<16x128xf32>
    %c0_86 = arith.constant 0 : index
    %c0_87 = arith.constant 0 : index
    %c0_88 = arith.constant 0 : index
    %228 = vector.load %arg14[%c0_86, %c0_87, %c0_88] : memref<1x1x128xf32, #tpu.memory_space<vmem>>, vector<1x1x128xf32>
    %229 = vector.shape_cast %228 : vector<1x1x128xf32> to vector<1x128xf32>
    %230 = vector.broadcast %229 : vector<1x128xf32> to vector<16x128xf32>
    %231 = arith.addf %227, %230 : vector<16x128xf32>
    %232 = arith.addf %204, %231 : vector<16x128xf32>
    %c0_89 = arith.constant 0 : index
    %c0_90 = arith.constant 0 : index
    %c0_91 = arith.constant 0 : index
    %233 = vector.load %arg15[%c0_89, %c0_90, %c0_91] : memref<1x1x128xf32, #tpu.memory_space<vmem>>, vector<1x1x128xf32>
    %234 = vector.shape_cast %233 : vector<1x1x128xf32> to vector<1x128xf32>
    %c0_92 = arith.constant 0 : index
    %c0_93 = arith.constant 0 : index
    %c0_94 = arith.constant 0 : index
    %235 = vector.load %arg16[%c0_92, %c0_93, %c0_94] : memref<1x1x128xf32, #tpu.memory_space<vmem>>, vector<1x1x128xf32>
    %236 = vector.shape_cast %235 : vector<1x1x128xf32> to vector<1x128xf32>
    %cst_95 = arith.constant dense<0.000000e+00> : vector<16xf32>
    %237 = vector.multi_reduction <add>, %232, %cst_95 [1] : vector<16x128xf32> to vector<16xf32>
    %238 = vector.shape_cast %237 : vector<16xf32> to vector<16x1xf32>
    %cst_96 = arith.constant 1.280000e+02 : f32
    %239 = vector.broadcast %cst_96 : f32 to vector<16x1xf32>
    %240 = arith.divf %238, %239 : vector<16x1xf32>
    %241 = vector.broadcast %240 : vector<16x1xf32> to vector<16x128xf32>
    %242 = arith.subf %232, %241 : vector<16x128xf32>
    %243 = arith.mulf %242, %242 : vector<16x128xf32>
    %cst_97 = arith.constant dense<0.000000e+00> : vector<16xf32>
    %244 = vector.multi_reduction <add>, %243, %cst_97 [1] : vector<16x128xf32> to vector<16xf32>
    %245 = vector.shape_cast %244 : vector<16xf32> to vector<16x1xf32>
    %cst_98 = arith.constant 1.280000e+02 : f32
    %246 = vector.broadcast %cst_98 : f32 to vector<16x1xf32>
    %247 = arith.divf %245, %246 : vector<16x1xf32>
    %cst_99 = arith.constant 9.99999974E-6 : f32
    %248 = vector.broadcast %cst_99 : f32 to vector<16x1xf32>
    %249 = arith.addf %247, %248 : vector<16x1xf32>
    %250 = math.rsqrt %249 : vector<16x1xf32>
    %251 = vector.broadcast %250 : vector<16x1xf32> to vector<16x128xf32>
    %252 = arith.mulf %242, %251 : vector<16x128xf32>
    %253 = vector.broadcast %234 : vector<1x128xf32> to vector<16x128xf32>
    %254 = arith.mulf %252, %253 : vector<16x128xf32>
    %255 = vector.broadcast %236 : vector<1x128xf32> to vector<16x128xf32>
    %256 = arith.addf %254, %255 : vector<16x128xf32>
    %c0_100 = arith.constant 0 : index
    %c0_101 = arith.constant 0 : index
    %257 = vector.load %arg17[%c0_100, %c0_101] : memref<16x128xf32, #tpu.memory_space<vmem>>, vector<16x128xf32>
    tpu.vector_store %arg17[%c0_100, %c0_101], %256 {strides = array<i32>} : memref<16x128xf32, #tpu.memory_space<vmem>>, vector<16x128xf32>,
    return
  }
  func.func @transform_0(%arg0: i32) -> (i32, i32) {
    %c0_i32 = arith.constant 0 : i32
    %c0_i32_0 = arith.constant 0 : i32
    %c0_i32_1 = arith.constant 0 : i32
    return %c0_i32, %c0_i32_0 : i32, i32
  }
  func.func @transform_1(%arg0: i32) -> (i32, i32, i32) {
    %c0_i32 = arith.constant 0 : i32
    %c0_i32_0 = arith.constant 0 : i32
    %c0_i32_1 = arith.constant 0 : i32
    %c0_i32_2 = arith.constant 0 : i32
    return %c0_i32, %c0_i32_0, %c0_i32_1 : i32, i32, i32
  }
  func.func @transform_2(%arg0: i32) -> (i32, i32) {
    %c0_i32 = arith.constant 0 : i32
    %c0_i32_0 = arith.constant 0 : i32
    %c0_i32_1 = arith.constant 0 : i32
    return %c0_i32, %c0_i32_0 : i32, i32
  }
  func.func @transform_3(%arg0: i32) -> (i32, i32) {
    %c0_i32 = arith.constant 0 : i32
    %c0_i32_0 = arith.constant 0 : i32
    %c0_i32_1 = arith.constant 0 : i32
    return %c0_i32, %c0_i32_0 : i32, i32
  }
  func.func @transform_4(%arg0: i32) -> (i32, i32, i32) {
    %c0_i32 = arith.constant 0 : i32
    %c0_i32_0 = arith.constant 0 : i32
    %c0_i32_1 = arith.constant 0 : i32
    return %arg0, %c0_i32, %c0_i32_0 : i32, i32, i32
  }
  func.func @transform_5(%arg0: i32) -> (i32, i32, i32) {
    %c0_i32 = arith.constant 0 : i32
    %c0_i32_0 = arith.constant 0 : i32
    %c0_i32_1 = arith.constant 0 : i32
    return %arg0, %c0_i32, %c0_i32_0 : i32, i32, i32
  }
  func.func @transform_6(%arg0: i32) -> (i32, i32, i32) {
    %c0_i32 = arith.constant 0 : i32
    %c0_i32_0 = arith.constant 0 : i32
    %c0_i32_1 = arith.constant 0 : i32
    return %arg0, %c0_i32, %c0_i32_0 : i32, i32, i32
  }
  func.func @transform_7(%arg0: i32) -> (i32, i32, i32) {
    %c0_i32 = arith.constant 0 : i32
    %c0_i32_0 = arith.constant 0 : i32
    %c0_i32_1 = arith.constant 0 : i32
    return %arg0, %c0_i32, %c0_i32_0 : i32, i32, i32
  }
  func.func @transform_8(%arg0: i32) -> (i32, i32, i32) {
    %c0_i32 = arith.constant 0 : i32
    %c0_i32_0 = arith.constant 0 : i32
    %c0_i32_1 = arith.constant 0 : i32
    return %arg0, %c0_i32, %c0_i32_0 : i32, i32, i32
  }
  func.func @transform_9(%arg0: i32) -> (i32, i32, i32) {
    %c0_i32 = arith.constant 0 : i32
    %c0_i32_0 = arith.constant 0 : i32
    %c0_i32_1 = arith.constant 0 : i32
    return %arg0, %c0_i32, %c0_i32_0 : i32, i32, i32
  }
  func.func @transform_10(%arg0: i32) -> (i32, i32, i32) {
    %c0_i32 = arith.constant 0 : i32
    %c0_i32_0 = arith.constant 0 : i32
    %c0_i32_1 = arith.constant 0 : i32
    return %arg0, %c0_i32, %c0_i32_0 : i32, i32, i32
  }
  func.func @transform_11(%arg0: i32) -> (i32, i32, i32) {
    %c0_i32 = arith.constant 0 : i32
    %c0_i32_0 = arith.constant 0 : i32
    %c0_i32_1 = arith.constant 0 : i32
    return %arg0, %c0_i32, %c0_i32_0 : i32, i32, i32
  }
  func.func @transform_12(%arg0: i32) -> (i32, i32, i32) {
    %c0_i32 = arith.constant 0 : i32
    %c0_i32_0 = arith.constant 0 : i32
    %c0_i32_1 = arith.constant 0 : i32
    return %arg0, %c0_i32, %c0_i32_0 : i32, i32, i32
  }
  func.func @transform_13(%arg0: i32) -> (i32, i32, i32) {
    %c0_i32 = arith.constant 0 : i32
    %c0_i32_0 = arith.constant 0 : i32
    %c0_i32_1 = arith.constant 0 : i32
    return %arg0, %c0_i32, %c0_i32_0 : i32, i32, i32
  }
  func.func @transform_14(%arg0: i32) -> (i32, i32, i32) {
    %c0_i32 = arith.constant 0 : i32
    %c0_i32_0 = arith.constant 0 : i32
    %c0_i32_1 = arith.constant 0 : i32
    return %arg0, %c0_i32, %c0_i32_0 : i32, i32, i32
  }
  func.func @transform_15(%arg0: i32) -> (i32, i32, i32) {
    %c0_i32 = arith.constant 0 : i32
    %c0_i32_0 = arith.constant 0 : i32
    %c0_i32_1 = arith.constant 0 : i32
    return %arg0, %c0_i32, %c0_i32_0 : i32, i32, i32
  }
  func.func @transform_16(%arg0: i32) -> (i32, i32) {
    %c0_i32 = arith.constant 0 : i32
    %c0_i32_0 = arith.constant 0 : i32
    %c0_i32_1 = arith.constant 0 : i32
    return %c0_i32, %c0_i32_0 : i32, i32
  }
}

</mosaic_0001>

<llo_original>
// kernel: roberta_with_features.3
$region0: #{roberta_with_features.3}
  #allocation0 [shape = 'u32[]', space=smem, size = 0x4, offset = 0x4, fixed_abs, tag = 'smem constant byte address 0x4 - core index']
  #allocation1 [shape = 'u32[144,128]{1,0:T(1,128)}', space=vmem, size = 0x12000, scoped, tag = 'internal scratch']
  %s0 = inlined_call_operand.vmem [shape: f32[16,128], index: 0, kind: input, shape index: {}]
  %s1 = inlined_call_operand.vmem [shape: f32[2,8], index: 1, kind: input, shape index: {}]
  %s2 = inlined_call_operand.vmem [shape: f32[128,128], index: 2, kind: input, shape index: {}]
  %s3 = inlined_call_operand.vmem [shape: f32[1,128], index: 3, kind: input, shape index: {}]
  %s4 = inlined_call_operand.vmem [shape: f32[8,128], index: 4, kind: input, shape index: {}]
  %s5 = inlined_call_operand.vmem [shape: f32[1,128], index: 5, kind: input, shape index: {}]
  %s6 = inlined_call_operand.vmem [shape: f32[256,4], index: 6, kind: input, shape index: {}]
  %s7 = inlined_call_operand.vmem [shape: f32[1,4], index: 7, kind: input, shape index: {}]
  %s8 = inlined_call_operand.hbm [shape: f32[2,4], index: 8, kind: output, shape index: {}]
  %s9 = sld [smem:[#allocation0]]
  $region42: #{roberta_with_features.3} parent=0
    _
  %s11 = ssub.s32 1, %s9
  %s12 = scalar_select 0, %s11, %s9
  $region1: #{roberta_with_features.3} parent=0
    #allocation2 [shape = 'u8[1024]{0}', space=vmem, size = 0x400, scoped, tag = 'output window, operand 0, single buffered']
    #allocation3 [shape = 's32[1]{0}', space=sflag, size = 0x4, scoped, tag = 'scoped memory for roberta_with_features.3']
    %13 = vsyncpa [#allocation3], 0
    // Predicated region
    $region2: #{roberta_with_features.3} parent=1 // pred_check
      _
    $region3: #{roberta_with_features.3} parent=1 // pred_check_branch
      %15 = sbr.rel (0) target = $region5
    $region4: #{roberta_with_features.3} parent=1 // pred_region
      _
    $region5: #{roberta_with_features.3} parent=1 // pred_fallthru
      _
    // Predicated region
    $region6: #{roberta_with_features.3} parent=1 // pred_check
      _
    $region7: #{roberta_with_features.3} parent=1 // pred_check_branch
      %17 = sbr.rel (0) target = $region9
    $region8: #{roberta_with_features.3} parent=1 // pred_region
      _
    $region9: #{roberta_with_features.3} parent=1 // pred_fallthru
      _
    // Predicated region
    $region10: #{roberta_with_features.3} parent=1 // pred_check
      _
    $region11: #{roberta_with_features.3} parent=1 // pred_check_branch
      %19 = sbr.rel (0) target = $region13
    $region12: #{roberta_with_features.3} parent=1 // pred_region
      _
    $region13: #{roberta_with_features.3} parent=1 // pred_fallthru
      _
    // Predicated region
    $region14: #{roberta_with_features.3} parent=1 // pred_check
      _
    $region15: #{roberta_with_features.3} parent=1 // pred_check_branch
      %21 = sbr.rel (0) target = $region17
    $region16: #{roberta_with_features.3} parent=1 // pred_region
      _
    $region17: #{roberta_with_features.3} parent=1 // pred_fallthru
      _
    // Predicated region
    $region18: #{roberta_with_features.3} parent=1 // pred_check
      _
    $region19: #{roberta_with_features.3} parent=1 // pred_check_branch
      %23 = sbr.rel (0) target = $region21
    $region20: #{roberta_with_features.3} parent=1 // pred_region
      _
    $region21: #{roberta_with_features.3} parent=1 // pred_fallthru
      _
    // Predicated region
    $region22: #{roberta_with_features.3} parent=1 // pred_check
      _
    $region23: #{roberta_with_features.3} parent=1 // pred_check_branch
      %25 = sbr.rel (0) target = $region25
    $region24: #{roberta_with_features.3} parent=1 // pred_region
      _
    $region25: #{roberta_with_features.3} parent=1 // pred_fallthru
      _
    // Predicated region
    $region26: #{roberta_with_features.3} parent=1 // pred_check
      _
    $region27: #{roberta_with_features.3} parent=1 // pred_check_branch
      %27 = sbr.rel (0) target = $region29
    $region28: #{roberta_with_features.3} parent=1 // pred_region
      _
    $region29: #{roberta_with_features.3} parent=1 // pred_fallthru
      _
    // Predicated region
    $region30: #{roberta_with_features.3} parent=1 // pred_check
      _
    $region31: #{roberta_with_features.3} parent=1 // pred_check_branch
      %29 = sbr.rel (0) target = $region33
    $region32: #{roberta_with_features.3} parent=1 // pred_region
      _
    $region33: #{roberta_with_features.3} parent=1 // pred_fallthru
      _
    %v30 = vld [vmem:[%s0] sm:$0x1]
    %v31 = vld [vmem:[%s0 + $0x8] sm:$0x1]
    %v33 = vrot.slane %v31, 7
    %vm35 = vcmask 1040384
    %v36 = vsel %vm35, %v30, %v33
    %v37 = vld [vmem:[%s2] sm:$0xff]
    %v38 = vld [vmem:[%s2 + $0x8] sm:$0xff]
    %v39 = vld [vmem:[%s2 + $0x10] sm:$0xff]
    %v40 = vld [vmem:[%s2 + $0x18] sm:$0xff]
    %v41 = vld [vmem:[%s2 + $0x20] sm:$0xff]
    %v42 = vld [vmem:[%s2 + $0x28] sm:$0xff]
    %v43 = vld [vmem:[%s2 + $0x30] sm:$0xff]
    %v44 = vld [vmem:[%s2 + $0x38] sm:$0xff]
    %v45 = vld [vmem:[%s2 + $0x40] sm:$0xff]
    %v46 = vld [vmem:[%s2 + $0x48] sm:$0xff]
    %v47 = vld [vmem:[%s2 + $0x50] sm:$0xff]
    %v48 = vld [vmem:[%s2 + $0x58] sm:$0xff]
    %v49 = vld [vmem:[%s2 + $0x60] sm:$0xff]
    %v50 = vld [vmem:[%s2 + $0x68] sm:$0xff]
    %v51 = vld [vmem:[%s2 + $0x70] sm:$0xff]
    %v52 = vld [vmem:[%s2 + $0x78] sm:$0xff]
    %v53 = vld [vmem:[%s3] sm:$0x1]
    %v55 = vlaneseq
    %v56 = vshrl.u32 %v55, 7
    %v57 = vsub.s32 0, %v56
    %v58 = vrot.slane %v53, %v57
    %60 = vmatprep.subr.mxu0 0.0
    %61 = vmatpush1.msra.mxu0 %v37
    %62 = vmatprep.subr.mxu0 0.0
    %63 = vmatpush1.msra.mxu0 %v38
    %64 = vmatprep.subr.mxu0 0.0
    %65 = vmatpush1.msra.mxu0 %v39
    %66 = vmatprep.subr.mxu0 0.0
    %67 = vmatpush1.msra.mxu0 %v40
    %68 = vmatprep.subr.mxu0 0.0
    %69 = vmatpush1.msra.mxu0 %v41
    %70 = vmatprep.subr.mxu0 0.0
    %71 = vmatpush1.msra.mxu0 %v42
    %72 = vmatprep.subr.mxu0 0.0
    %73 = vmatpush1.msra.mxu0 %v43
    %74 = vmatprep.subr.mxu0 0.0
    %75 = vmatpush1.msra.mxu0 %v44
    %76 = vmatprep.subr.mxu0 0.0
    %77 = vmatpush1.msra.mxu0 %v45
    %78 = vmatprep.subr.mxu0 0.0
    %79 = vmatpush1.msra.mxu0 %v46
    %80 = vmatprep.subr.mxu0 0.0
    %81 = vmatpush1.msra.mxu0 %v47
    %82 = vmatprep.subr.mxu0 0.0
    %83 = vmatpush1.msra.mxu0 %v48
    %84 = vmatprep.subr.mxu0 0.0
    %85 = vmatpush1.msra.mxu0 %v49
    %86 = vmatprep.subr.mxu0 0.0
    %87 = vmatpush1.msra.mxu0 %v50
    %88 = vmatprep.subr.mxu0 0.0
    %89 = vmatpush1.msra.mxu0 %v51
    %90 = vmatprep.subr.mxu0 0.0
    %91 = vmatpush1.msra.mxu0 %v52
    %92 = vmatprep.subr.mxu0 0.0
    %93 = vmatpush1.msra.mxu0 0.0
    %94 = vmatprep.subr.mxu0 0.0
    %95 = vmatpush1.msra.mxu0 0.0
    %96 = vmatprep.subr.mxu0 0.0
    %97 = vmatpush1.msra.mxu0 0.0
    %98 = vmatprep.subr.mxu0 0.0
    %99 = vmatpush1.msra.mxu0 0.0
    %100 = vmatprep.subr.mxu0 0.0
    %101 = vmatpush1.msra.mxu0 0.0
    %102 = vmatprep.subr.mxu0 0.0
    %103 = vmatpush1.msra.mxu0 0.0
    %104 = vmatprep.subr.mxu0 0.0
    %105 = vmatpush1.msra.mxu0 0.0
    %106 = vmatprep.subr.mxu0 0.0
    %107 = vmatpush1.msra.mxu0 0.0
    %108 = vmatprep.subr.mxu0 0.0
    %109 = vmatpush1.msra.mxu0 0.0
    %110 = vmatprep.subr.mxu0 0.0
    %111 = vmatpush1.msra.mxu0 0.0
    %112 = vmatprep.subr.mxu0 0.0
    %113 = vmatpush1.msra.mxu0 0.0
    %114 = vmatprep.subr.mxu0 0.0
    %115 = vmatpush1.msra.mxu0 0.0
    %116 = vmatprep.subr.mxu0 0.0
    %117 = vmatpush1.msra.mxu0 0.0
    %118 = vmatprep.subr.mxu0 0.0
    %119 = vmatpush1.msra.mxu0 0.0
    %120 = vmatprep.subr.mxu0 0.0
    %121 = vmatpush1.msra.mxu0 0.0
    %122 = vmatprep.subr.mxu0 0.0
    %123 = vmatpush1.msra.mxu0 0.0
    %124 = vmatprep.mubr.f32.mxu0 0.0
    %125 = vmatmul.mubr.f32.gmra.mrb[0].mxu0 %v36
    %v126 = vpop.f32.mrb[0].mxu0
    %v127 = vadd.f32 %v58, %v126
    %v128 = vpop.f32.mrb[0].mxu0
    %129 = vdwg.mxu0
    %v130 = vtanh.pop %v127
    %v131 = vld [vmem:[%s1] sm:$0x3]
    %v132 = vld [vmem:[%s4] sm:$0xff]
    %v133 = vld [vmem:[%s5] sm:$0x1]
    %v135 = vlaneseq
    %v136 = vshrl.u32 %v135, 7
    %v137 = vsub.s32 0, %v136
    %v138 = vrot.slane %v133, %v137
    %vm140 = vcmask 64512
    %v142 = vsel %vm140, %v131, 0
    %144 = vmatprep.subr.mxu0 0.0
    %145 = vmatpush1.msra.mxu0 %v132
    %146 = vmatprep.subr.mxu0 0.0
    %147 = vmatpush1.msra.mxu0 0.0
    %148 = vmatprep.subr.mxu0 0.0
    %149 = vmatpush1.msra.mxu0 0.0
    %150 = vmatprep.subr.mxu0 0.0
    %151 = vmatpush1.msra.mxu0 0.0
    %152 = vmatprep.subr.mxu0 0.0
    %153 = vmatpush1.msra.mxu0 0.0
    %154 = vmatprep.subr.mxu0 0.0
    %155 = vmatpush1.msra.mxu0 0.0
    %156 = vmatprep.subr.mxu0 0.0
    %157 = vmatpush1.msra.mxu0 0.0
    %158 = vmatprep.subr.mxu0 0.0
    %159 = vmatpush1.msra.mxu0 0.0
    %160 = vmatprep.subr.mxu0 0.0
    %161 = vmatpush1.msra.mxu0 0.0
    %162 = vmatprep.subr.mxu0 0.0
    %163 = vmatpush1.msra.mxu0 0.0
    %164 = vmatprep.subr.mxu0 0.0
    %165 = vmatpush1.msra.mxu0 0.0
    %166 = vmatprep.subr.mxu0 0.0
    %167 = vmatpush1.msra.mxu0 0.0
    %168 = vmatprep.subr.mxu0 0.0
    %169 = vmatpush1.msra.mxu0 0.0
    %170 = vmatprep.subr.mxu0 0.0
    %171 = vmatpush1.msra.mxu0 0.0
    %172 = vmatprep.subr.mxu0 0.0
    %173 = vmatpush1.msra.mxu0 0.0
    %174 = vmatprep.subr.mxu0 0.0
    %175 = vmatpush1.msra.mxu0 0.0
    %176 = vmatprep.subr.mxu0 0.0
    %177 = vmatpush1.msra.mxu0 0.0
    %178 = vmatprep.subr.mxu0 0.0
    %179 = vmatpush1.msra.mxu0 0.0
    %180 = vmatprep.subr.mxu0 0.0
    %181 = vmatpush1.msra.mxu0 0.0
    %182 = vmatprep.subr.mxu0 0.0
    %183 = vmatpush1.msra.mxu0 0.0
    %184 = vmatprep.subr.mxu0 0.0
    %185 = vmatpush1.msra.mxu0 0.0
    %186 = vmatprep.subr.mxu0 0.0
    %187 = vmatpush1.msra.mxu0 0.0
    %188 = vmatprep.subr.mxu0 0.0
    %189 = vmatpush1.msra.mxu0 0.0
    %190 = vmatprep.subr.mxu0 0.0
    %191 = vmatpush1.msra.mxu0 0.0
    %192 = vmatprep.subr.mxu0 0.0
    %193 = vmatpush1.msra.mxu0 0.0
    %194 = vmatprep.subr.mxu0 0.0
    %195 = vmatpush1.msra.mxu0 0.0
    %196 = vmatprep.subr.mxu0 0.0
    %197 = vmatpush1.msra.mxu0 0.0
    %198 = vmatprep.subr.mxu0 0.0
    %199 = vmatpush1.msra.mxu0 0.0
    %200 = vmatprep.subr.mxu0 0.0
    %201 = vmatpush1.msra.mxu0 0.0
    %202 = vmatprep.subr.mxu0 0.0
    %203 = vmatpush1.msra.mxu0 0.0
    %204 = vmatprep.subr.mxu0 0.0
    %205 = vmatpush1.msra.mxu0 0.0
    %206 = vmatprep.subr.mxu0 0.0
    %207 = vmatpush1.msra.mxu0 0.0
    %208 = vmatprep.mubr.f32.mxu0 0.0
    %209 = vmatmul.mubr.f32.gmra.mrb[0].mxu0 %v142
    %v210 = vpop.f32.mrb[0].mxu0
    %v211 = vadd.f32 %v138, %v210
    %v212 = vpop.f32.mrb[0].mxu0
    %213 = vdwg.mxu0
    %v214 = vld [vmem:[%s6] sm:$0xff]
    %v215 = vld [vmem:[%s6 + $0x8] sm:$0xff]
    %v216 = vld [vmem:[%s6 + $0x10] sm:$0xff]
    %v217 = vld [vmem:[%s6 + $0x18] sm:$0xff]
    %v218 = vld [vmem:[%s6 + $0x20] sm:$0xff]
    %v219 = vld [vmem:[%s6 + $0x28] sm:$0xff]
    %v220 = vld [vmem:[%s6 + $0x30] sm:$0xff]
    %v221 = vld [vmem:[%s6 + $0x38] sm:$0xff]
    %v222 = vld [vmem:[%s6 + $0x40] sm:$0xff]
    %v223 = vld [vmem:[%s6 + $0x48] sm:$0xff]
    %v224 = vld [vmem:[%s6 + $0x50] sm:$0xff]
    %v225 = vld [vmem:[%s6 + $0x58] sm:$0xff]
    %v226 = vld [vmem:[%s6 + $0x60] sm:$0xff]
    %v227 = vld [vmem:[%s6 + $0x68] sm:$0xff]
    %v228 = vld [vmem:[%s6 + $0x70] sm:$0xff]
    %v229 = vld [vmem:[%s6 + $0x78] sm:$0xff]
    %v230 = vld [vmem:[%s6 + $0x80] sm:$0xff]
    %v231 = vld [vmem:[%s6 + $0x88] sm:$0xff]
    %v232 = vld [vmem:[%s6 + $0x90] sm:$0xff]
    %v233 = vld [vmem:[%s6 + $0x98] sm:$0xff]
    %v234 = vld [vmem:[%s6 + $0xa0] sm:$0xff]
    %v235 = vld [vmem:[%s6 + $0xa8] sm:$0xff]
    %v236 = vld [vmem:[%s6 + $0xb0] sm:$0xff]
    %v237 = vld [vmem:[%s6 + $0xb8] sm:$0xff]
    %v238 = vld [vmem:[%s6 + $0xc0] sm:$0xff]
    %v239 = vld [vmem:[%s6 + $0xc8] sm:$0xff]
    %v240 = vld [vmem:[%s6 + $0xd0] sm:$0xff]
    %v241 = vld [vmem:[%s6 + $0xd8] sm:$0xff]
    %v242 = vld [vmem:[%s6 + $0xe0] sm:$0xff]
    %v243 = vld [vmem:[%s6 + $0xe8] sm:$0xff]
    %v244 = vld [vmem:[%s6 + $0xf0] sm:$0xff]
    %v245 = vld [vmem:[%s6 + $0xf8] sm:$0xff]
    %v246 = vld [vmem:[%s7] sm:$0x1]
    %v248 = vlaneseq
    %v249 = vshrl.u32 %v248, 7
    %v250 = vsub.s32 0, %v249
    %v251 = vrot.slane %v246, %v250
    %253 = vmatprep.subr.mxu0 0.0
    %254 = vmatpush1.msra.mxu0 %v214
    %255 = vmatprep.subr.mxu0 0.0
    %256 = vmatpush1.msra.mxu0 %v215
    %257 = vmatprep.subr.mxu0 0.0
    %258 = vmatpush1.msra.mxu0 %v216
    %259 = vmatprep.subr.mxu0 0.0
    %260 = vmatpush1.msra.mxu0 %v217
    %261 = vmatprep.subr.mxu0 0.0
    %262 = vmatpush1.msra.mxu0 %v218
    %263 = vmatprep.subr.mxu0 0.0
    %264 = vmatpush1.msra.mxu0 %v219
    %265 = vmatprep.subr.mxu0 0.0
    %266 = vmatpush1.msra.mxu0 %v220
    %267 = vmatprep.subr.mxu0 0.0
    %268 = vmatpush1.msra.mxu0 %v221
    %269 = vmatprep.subr.mxu0 0.0
    %270 = vmatpush1.msra.mxu0 %v222
    %271 = vmatprep.subr.mxu0 0.0
    %272 = vmatpush1.msra.mxu0 %v223
    %273 = vmatprep.subr.mxu0 0.0
    %274 = vmatpush1.msra.mxu0 %v224
    %275 = vmatprep.subr.mxu0 0.0
    %276 = vmatpush1.msra.mxu0 %v225
    %277 = vmatprep.subr.mxu0 0.0
    %278 = vmatpush1.msra.mxu0 %v226
    %279 = vmatprep.subr.mxu0 0.0
    %280 = vmatpush1.msra.mxu0 %v227
    %281 = vmatprep.subr.mxu0 0.0
    %282 = vmatpush1.msra.mxu0 %v228
    %283 = vmatprep.subr.mxu0 0.0
    %284 = vmatpush1.msra.mxu0 %v229
    %285 = vmatprep.subr.mxu0 0.0
    %286 = vmatpush1.msra.mxu0 %v230
    %287 = vmatprep.subr.mxu0 0.0
    %288 = vmatpush1.msra.mxu0 %v231
    %289 = vmatprep.subr.mxu0 0.0
    %290 = vmatpush1.msra.mxu0 %v232
    %291 = vmatprep.subr.mxu0 0.0
    %292 = vmatpush1.msra.mxu0 %v233
    %293 = vmatprep.subr.mxu0 0.0
    %294 = vmatpush1.msra.mxu0 %v234
    %295 = vmatprep.subr.mxu0 0.0
    %296 = vmatpush1.msra.mxu0 %v235
    %297 = vmatprep.subr.mxu0 0.0
    %298 = vmatpush1.msra.mxu0 %v236
    %299 = vmatprep.subr.mxu0 0.0
    %300 = vmatpush1.msra.mxu0 %v237
    %301 = vmatprep.subr.mxu0 0.0
    %302 = vmatpush1.msra.mxu0 %v238
    %303 = vmatprep.subr.mxu0 0.0
    %304 = vmatpush1.msra.mxu0 %v239
    %305 = vmatprep.subr.mxu0 0.0
    %306 = vmatpush1.msra.mxu0 %v240
    %307 = vmatprep.subr.mxu0 0.0
    %308 = vmatpush1.msra.mxu0 %v241
    %309 = vmatprep.subr.mxu0 0.0
    %310 = vmatpush1.msra.mxu0 %v242
    %311 = vmatprep.subr.mxu0 0.0
    %312 = vmatpush1.msra.mxu0 %v243
    %313 = vmatprep.subr.mxu0 0.0
    %314 = vmatpush1.msra.mxu0 %v244
    %315 = vmatprep.subr.mxu0 0.0
    %316 = vmatpush1.msra.mxu0 %v245
    %317 = vmatprep.mubr.f32.mxu0 %v211
    %318 = vmatmul.mubr.f32.gmra.mrb[0].mxu0 %v130
    %v319 = vpop.f32.mrb[0].mxu0
    %v320 = vadd.f32 %v251, %v319
    %v321 = vpop.f32.mrb[0].mxu0
    %322 = vdwg.mxu0
    %vm323 = vcmask 25600
    %324 = vst.msk [vmem:[#allocation2] sm:$0x3] %vm323, %v320
    // Predicated region
    $region34: #{roberta_with_features.3} parent=1 // pred_check
      _
    $region35: #{roberta_with_features.3} parent=1 // pred_check_branch
      %326 = sbr.rel (0) target = $region37
    $region36: #{roberta_with_features.3} parent=1 // pred_region
      %s328 = ssub.s32 32, 32
      %329 = vsyncadd [#allocation3], %s328
      %s331 = sshll.u32 [#allocation2], 4
      %s332 = int_to_ptr.vmem [resolvable:$true] %s331
      %334 = dma.vmem_to_hbm [thread:$0]  %s332, 32, %s8, [#allocation3]
    $region37: #{roberta_with_features.3} parent=1 // pred_fallthru
      _
    // Predicated region
    $region38: #{roberta_with_features.3} parent=1 // pred_check
      _
    $region39: #{roberta_with_features.3} parent=1 // pred_check_branch
      %336 = sbr.rel (0) target = $region41
    $region40: #{roberta_with_features.3} parent=1 // pred_region
      %337 = dma.done [#allocation3], 32
    $region41: #{roberta_with_features.3} parent=1 // pred_fallthru
      _
    %338 = vsyncpa [#allocation3], 1

// kernel: roberta_with_features.2
$region0: #{roberta_with_features.2}
  #allocation0 [shape = 'u32[]', space=smem, size = 0x4, offset = 0x4, fixed_abs, tag = 'smem constant byte address 0x4 - core index']
  #allocation1 [shape = 'u32[144,128]{1,0:T(1,128)}', space=vmem, size = 0x12000, scoped, tag = 'internal scratch']
  %s0 = inlined_call_operand.vmem [shape: f32[16,128], index: 0, kind: input, shape index: {}]
  %s1 = inlined_call_operand.vmem [shape: f32[2,1,8], index: 1, kind: input, shape index: {}]
  %s2 = inlined_call_operand.vmem [shape: f32[1,128], index: 2, kind: input, shape index: {}]
  %s3 = inlined_call_operand.vmem [shape: f32[1,128], index: 3, kind: input, shape index: {}]
  %s4 = inlined_call_operand.hbm [shape: f32[2,128,384], index: 4, kind: input, shape index: {}]
  %s5 = inlined_call_operand.vmem [shape: f32[2,1,384], index: 5, kind: input, shape index: {}]
  %s6 = inlined_call_operand.vmem [shape: f32[2,128,128], index: 6, kind: input, shape index: {}]
  %s7 = inlined_call_operand.vmem [shape: f32[2,1,128], index: 7, kind: input, shape index: {}]
  %s8 = inlined_call_operand.vmem [shape: f32[2,1,128], index: 8, kind: input, shape index: {}]
  %s9 = inlined_call_operand.vmem [shape: f32[2,1,128], index: 9, kind: input, shape index: {}]
  %s10 = inlined_call_operand.hbm [shape: f32[2,128,256], index: 10, kind: input, shape index: {}]
  %s11 = inlined_call_operand.vmem [shape: f32[2,1,256], index: 11, kind: input, shape index: {}]
  %s12 = inlined_call_operand.hbm [shape: f32[2,256,128], index: 12, kind: input, shape index: {}]
  %s13 = inlined_call_operand.vmem [shape: f32[2,1,128], index: 13, kind: input, shape index: {}]
  %s14 = inlined_call_operand.vmem [shape: f32[2,1,128], index: 14, kind: input, shape index: {}]
  %s15 = inlined_call_operand.vmem [shape: f32[2,1,128], index: 15, kind: input, shape index: {}]
  %s16 = inlined_call_operand.vmem [shape: f32[16,128], index: 16, kind: output, shape index: {}]
  %s17 = sld [smem:[#allocation0]]
  $region113: #{roberta_with_features.2} parent=0
    _
  %s19 = ssub.s32 1, %s17
  %s20 = scalar_select 0, %s19, %s17
  $region1: #{roberta_with_features.2} parent=0
    #allocation2 [shape = 'u8[393216]{0}', space=vmem, size = 0x60000, scoped, tag = 'input window, operand 4']
    #allocation3 [shape = 's32[2]{0}', space=sflag, size = 0x8, scoped, tag = 'scoped memory for roberta_with_features.2']
    #allocation4 [shape = 'u8[262144]{0}', space=vmem, size = 0x40000, scoped, tag = 'input window, operand 10']
    #allocation5 [shape = 's32[2]{0}', space=sflag, size = 0x8, scoped, tag = 'scoped memory for roberta_with_features.2']
    #allocation6 [shape = 'u8[262144]{0}', space=vmem, size = 0x40000, scoped, tag = 'input window, operand 12']
    %21 = vsyncpa [#allocation3], 0
    %s22 = scalar_lea.sflag [#allocation3], 1
    %23 = vsyncpa %s22, 0
    %24 = vsyncpa [#allocation5], 0
    %s25 = scalar_lea.sflag [#allocation5], 1
    %26 = vsyncpa %s25, 0
    loop: start=0, step=1, limit=4
    $region2: #{roberta_with_features.2} parent=1 // loop_pre_header
      _
    $region3: #{roberta_with_features.2} parent=1 // loop_header
      %s28 = sphi 0, %s32
      %p29 = scmp.ge.s32.totalorder %s28, 4
      %s36 = sphi 0, %s36
      %s38 = sphi 0, %s36
      %s39 = sphi 0, %s38
      %s53 = sphi 0, %s39
      %s57 = sphi 0, %s57
      %s59 = sphi 0, %s57
      %s60 = sphi 0, %s59
      %s74 = sphi 0, %s60
      %s78 = sphi 0, %s78
      %s80 = sphi 0, %s78
      %s81 = sphi 0, %s80
      %s95 = sphi 0, %s81
      %s99 = sphi 0, %s99
      %s101 = sphi 0, %s99
      %s102 = sphi 0, %s101
      %s116 = sphi 0, %s102
      %s122 = sphi 0, %s124
      %s125 = sphi 0, %s122
      %s126 = sphi 0, %s125
      %s142 = sphi 0, %s126
      %s148 = sphi 0, %s150
      %s151 = sphi 0, %s148
      %s152 = sphi 0, %s151
      %s168 = sphi 0, %s152
      %s174 = sphi 0, %s176
      %s177 = sphi 0, %s174
      %s178 = sphi 0, %s177
      %s194 = sphi 0, %s178
      %s200 = sphi 0, %s202
      %s203 = sphi 0, %s200
      %s204 = sphi 0, %s203
      %s220 = sphi 0, %s204
      %s226 = sphi 0, %s228
      %s229 = sphi 0, %s226
      %s230 = sphi 0, %s229
      %s246 = sphi 0, %s230
      %s252 = sphi 0, %s254
      %s255 = sphi 0, %s252
      %s256 = sphi 0, %s255
      %s272 = sphi 0, %s256
      %s278 = sphi 0, %s280
      %s281 = sphi 0, %s278
      %s282 = sphi 0, %s281
      %s298 = sphi 0, %s282
      %s304 = sphi 0, %s306
      %s307 = sphi 0, %s304
      %s308 = sphi 0, %s307
      %s324 = sphi 0, %s308
      %s330 = sphi 0, %s332
      %s333 = sphi 0, %s330
      %s334 = sphi 0, %s333
      %s350 = sphi 0, %s334
      %s356 = sphi 0, %s358
      %s359 = sphi 0, %s356
      %s360 = sphi 0, %s359
      %s376 = sphi 0, %s360
      %s382 = sphi 0, %s384
      %s385 = sphi 0, %s382
      %s386 = sphi 0, %s385
      %s402 = sphi 0, %s386
      %s408 = sphi 0, %s410
      %s411 = sphi 0, %s408
      %s412 = sphi 0, %s411
      %s428 = sphi 0, %s412
      %s432 = sphi 0, %s432
      %s434 = sphi 0, %s432
      %s435 = sphi 0, %s434
      %s449 = sphi 0, %s435
    $region4: #{roberta_with_features.2} parent=1 // loop_header_branch
      %31 = sbr.rel (%p29) target = $region8
    $region5: #{roberta_with_features.2} parent=1 // loop_body
      %s33 = ssub.s32 %s28, 1
      %s34 = ssub.s32 %s28, 2
      %s35 = sadd.s32 %s28, 1
      %s37 = sadd.s32 %s36, 1
      %p40 = scmp.eq.s32.totalorder %s28, 1
      %p41 = scmp.ne.s32.totalorder %s36, %s38
      %p42 = scmp.eq.s32.totalorder %s28, 0
      %p43 = por %p41, %p42
      %p44 = scmp.ne.s32.totalorder %s36, %s38
      %p45 = scmp.eq.s32.totalorder %s33, 1
      %p46 = por %p44, %p45
      %p47 = scmp.ne.s32.totalorder %s38, %s39
      %p48 = scmp.eq.s32.totalorder %s33, 0
      %p49 = por %p47, %p48
      %p50 = scmp.ne.s32.totalorder %s38, %s39
      %p51 = scmp.eq.s32.totalorder %s34, 1
      %p52 = por %p50, %p51
      %p54 = scmp.ne.s32.totalorder %s39, %s53
      %p55 = scmp.eq.s32.totalorder %s34, 0
      %p56 = por %p54, %p55
      %s58 = sadd.s32 %s57, 1
      %p61 = scmp.eq.s32.totalorder %s28, 1
      %p62 = scmp.ne.s32.totalorder %s57, %s59
      %p63 = scmp.eq.s32.totalorder %s28, 0
      %p64 = por %p62, %p63
      %p65 = scmp.ne.s32.totalorder %s57, %s59
      %p66 = scmp.eq.s32.totalorder %s33, 1
      %p67 = por %p65, %p66
      %p68 = scmp.ne.s32.totalorder %s59, %s60
      %p69 = scmp.eq.s32.totalorder %s33, 0
      %p70 = por %p68, %p69
      %p71 = scmp.ne.s32.totalorder %s59, %s60
      %p72 = scmp.eq.s32.totalorder %s34, 1
      %p73 = por %p71, %p72
      %p75 = scmp.ne.s32.totalorder %s60, %s74
      %p76 = scmp.eq.s32.totalorder %s34, 0
      %p77 = por %p75, %p76
      %s79 = sadd.s32 %s78, 1
      %p82 = scmp.eq.s32.totalorder %s28, 1
      %p83 = scmp.ne.s32.totalorder %s78, %s80
      %p84 = scmp.eq.s32.totalorder %s28, 0
      %p85 = por %p83, %p84
      %p86 = scmp.ne.s32.totalorder %s78, %s80
      %p87 = scmp.eq.s32.totalorder %s33, 1
      %p88 = por %p86, %p87
      %p89 = scmp.ne.s32.totalorder %s80, %s81
      %p90 = scmp.eq.s32.totalorder %s33, 0
      %p91 = por %p89, %p90
      %p92 = scmp.ne.s32.totalorder %s80, %s81
      %p93 = scmp.eq.s32.totalorder %s34, 1
      %p94 = por %p92, %p93
      %p96 = scmp.ne.s32.totalorder %s81, %s95
      %p97 = scmp.eq.s32.totalorder %s34, 0
      %p98 = por %p96, %p97
      %s100 = sadd.s32 %s99, 1
      %p103 = scmp.eq.s32.totalorder %s28, 1
      %p104 = scmp.ne.s32.totalorder %s99, %s101
      %p105 = scmp.eq.s32.totalorder %s28, 0
      %p106 = por %p104, %p105
      %p107 = scmp.ne.s32.totalorder %s99, %s101
      %p108 = scmp.eq.s32.totalorder %s33, 1
      %p109 = por %p107, %p108
      %p110 = scmp.ne.s32.totalorder %s101, %s102
      %p111 = scmp.eq.s32.totalorder %s33, 0
      %p112 = por %p110, %p111
      %p113 = scmp.ne.s32.totalorder %s101, %s102
      %p114 = scmp.eq.s32.totalorder %s34, 1
      %p115 = por %p113, %p114
      %p117 = scmp.ne.s32.totalorder %s102, %s116
      %p118 = scmp.eq.s32.totalorder %s34, 0
      %p119 = por %p117, %p118
      %s120 = ssub.s32 %s28, %s35
      %p121 = scmp.eq.s32.totalorder %s120, 0
      %s123 = sadd.s32 %s122, 1
      %s124 = scalar_select %p121, %s122, %s123
      %p127 = pneg %p121
      %p128 = scmp.eq.s32.totalorder %s28, 1
      %p129 = por %p127, %p128
      %p130 = scmp.ne.s32.totalorder %s122, %s125
      %p131 = scmp.eq.s32.totalorder %s28, 0
      %p132 = por %p130, %p131
      %p133 = scmp.ne.s32.totalorder %s122, %s125
      %p134 = scmp.eq.s32.totalorder %s33, 1
      %p135 = por %p133, %p134
      %p136 = scmp.ne.s32.totalorder %s125, %s126
      %p137 = scmp.eq.s32.totalorder %s33, 0
      %p138 = por %p136, %p137
      %p139 = scmp.ne.s32.totalorder %s125, %s126
      %p140 = scmp.eq.s32.totalorder %s34, 1
      %p141 = por %p139, %p140
      %p143 = scmp.ne.s32.totalorder %s126, %s142
      %p144 = scmp.eq.s32.totalorder %s34, 0
      %p145 = por %p143, %p144
      %s146 = ssub.s32 %s28, %s35
      %p147 = scmp.eq.s32.totalorder %s146, 0
      %s149 = sadd.s32 %s148, 1
      %s150 = scalar_select %p147, %s148, %s149
      %p153 = pneg %p147
      %p154 = scmp.eq.s32.totalorder %s28, 1
      %p155 = por %p153, %p154
      %p156 = scmp.ne.s32.totalorder %s148, %s151
      %p157 = scmp.eq.s32.totalorder %s28, 0
      %p158 = por %p156, %p157
      %p159 = scmp.ne.s32.totalorder %s148, %s151
      %p160 = scmp.eq.s32.totalorder %s33, 1
      %p161 = por %p159, %p160
      %p162 = scmp.ne.s32.totalorder %s151, %s152
      %p163 = scmp.eq.s32.totalorder %s33, 0
      %p164 = por %p162, %p163
      %p165 = scmp.ne.s32.totalorder %s151, %s152
      %p166 = scmp.eq.s32.totalorder %s34, 1
      %p167 = por %p165, %p166
      %p169 = scmp.ne.s32.totalorder %s152, %s168
      %p170 = scmp.eq.s32.totalorder %s34, 0
      %p171 = por %p169, %p170
      %s172 = ssub.s32 %s28, %s35
      %p173 = scmp.eq.s32.totalorder %s172, 0
      %s175 = sadd.s32 %s174, 1
      %s176 = scalar_select %p173, %s174, %s175
      %p179 = pneg %p173
      %p180 = scmp.eq.s32.totalorder %s28, 1
      %p181 = por %p179, %p180
      %p182 = scmp.ne.s32.totalorder %s174, %s177
      %p183 = scmp.eq.s32.totalorder %s28, 0
      %p184 = por %p182, %p183
      %p185 = scmp.ne.s32.totalorder %s174, %s177
      %p186 = scmp.eq.s32.totalorder %s33, 1
      %p187 = por %p185, %p186
      %p188 = scmp.ne.s32.totalorder %s177, %s178
      %p189 = scmp.eq.s32.totalorder %s33, 0
      %p190 = por %p188, %p189
      %p191 = scmp.ne.s32.totalorder %s177, %s178
      %p192 = scmp.eq.s32.totalorder %s34, 1
      %p193 = por %p191, %p192
      %p195 = scmp.ne.s32.totalorder %s178, %s194
      %p196 = scmp.eq.s32.totalorder %s34, 0
      %p197 = por %p195, %p196
      %s198 = ssub.s32 %s28, %s35
      %p199 = scmp.eq.s32.totalorder %s198, 0
      %s201 = sadd.s32 %s200, 1
      %s202 = scalar_select %p199, %s200, %s201
      %p205 = pneg %p199
      %p206 = scmp.eq.s32.totalorder %s28, 1
      %p207 = por %p205, %p206
      %p208 = scmp.ne.s32.totalorder %s200, %s203
      %p209 = scmp.eq.s32.totalorder %s28, 0
      %p210 = por %p208, %p209
      %p211 = scmp.ne.s32.totalorder %s200, %s203
      %p212 = scmp.eq.s32.totalorder %s33, 1
      %p213 = por %p211, %p212
      %p214 = scmp.ne.s32.totalorder %s203, %s204
      %p215 = scmp.eq.s32.totalorder %s33, 0
      %p216 = por %p214, %p215
      %p217 = scmp.ne.s32.totalorder %s203, %s204
      %p218 = scmp.eq.s32.totalorder %s34, 1
      %p219 = por %p217, %p218
      %p221 = scmp.ne.s32.totalorder %s204, %s220
      %p222 = scmp.eq.s32.totalorder %s34, 0
      %p223 = por %p221, %p222
      %s224 = ssub.s32 %s28, %s35
      %p225 = scmp.eq.s32.totalorder %s224, 0
      %s227 = sadd.s32 %s226, 1
      %s228 = scalar_select %p225, %s226, %s227
      %p231 = pneg %p225
      %p232 = scmp.eq.s32.totalorder %s28, 1
      %p233 = por %p231, %p232
      %p234 = scmp.ne.s32.totalorder %s226, %s229
      %p235 = scmp.eq.s32.totalorder %s28, 0
      %p236 = por %p234, %p235
      %p237 = scmp.ne.s32.totalorder %s226, %s229
      %p238 = scmp.eq.s32.totalorder %s33, 1
      %p239 = por %p237, %p238
      %p240 = scmp.ne.s32.totalorder %s229, %s230
      %p241 = scmp.eq.s32.totalorder %s33, 0
      %p242 = por %p240, %p241
      %p243 = scmp.ne.s32.totalorder %s229, %s230
      %p244 = scmp.eq.s32.totalorder %s34, 1
      %p245 = por %p243, %p244
      %p247 = scmp.ne.s32.totalorder %s230, %s246
      %p248 = scmp.eq.s32.totalorder %s34, 0
      %p249 = por %p247, %p248
      %s250 = ssub.s32 %s28, %s35
      %p251 = scmp.eq.s32.totalorder %s250, 0
      %s253 = sadd.s32 %s252, 1
      %s254 = scalar_select %p251, %s252, %s253
      %p257 = pneg %p251
      %p258 = scmp.eq.s32.totalorder %s28, 1
      %p259 = por %p257, %p258
      %p260 = scmp.ne.s32.totalorder %s252, %s255
      %p261 = scmp.eq.s32.totalorder %s28, 0
      %p262 = por %p260, %p261
      %p263 = scmp.ne.s32.totalorder %s252, %s255
      %p264 = scmp.eq.s32.totalorder %s33, 1
      %p265 = por %p263, %p264
      %p266 = scmp.ne.s32.totalorder %s255, %s256
      %p267 = scmp.eq.s32.totalorder %s33, 0
      %p268 = por %p266, %p267
      %p269 = scmp.ne.s32.totalorder %s255, %s256
      %p270 = scmp.eq.s32.totalorder %s34, 1
      %p271 = por %p269, %p270
      %p273 = scmp.ne.s32.totalorder %s256, %s272
      %p274 = scmp.eq.s32.totalorder %s34, 0
      %p275 = por %p273, %p274
      %s276 = ssub.s32 %s28, %s35
      %p277 = scmp.eq.s32.totalorder %s276, 0
      %s279 = sadd.s32 %s278, 1
      %s280 = scalar_select %p277, %s278, %s279
      %p283 = pneg %p277
      %p284 = scmp.eq.s32.totalorder %s28, 1
      %p285 = por %p283, %p284
      %p286 = scmp.ne.s32.totalorder %s278, %s281
      %p287 = scmp.eq.s32.totalorder %s28, 0
      %p288 = por %p286, %p287
      %p289 = scmp.ne.s32.totalorder %s278, %s281
      %p290 = scmp.eq.s32.totalorder %s33, 1
      %p291 = por %p289, %p290
      %p292 = scmp.ne.s32.totalorder %s281, %s282
      %p293 = scmp.eq.s32.totalorder %s33, 0
      %p294 = por %p292, %p293
      %p295 = scmp.ne.s32.totalorder %s281, %s282
      %p296 = scmp.eq.s32.totalorder %s34, 1
      %p297 = por %p295, %p296
      %p299 = scmp.ne.s32.totalorder %s282, %s298
      %p300 = scmp.eq.s32.totalorder %s34, 0
      %p301 = por %p299, %p300
      %s302 = ssub.s32 %s28, %s35
      %p303 = scmp.eq.s32.totalorder %s302, 0
      %s305 = sadd.s32 %s304, 1
      %s306 = scalar_select %p303, %s304, %s305
      %p309 = pneg %p303
      %p310 = scmp.eq.s32.totalorder %s28, 1
      %p311 = por %p309, %p310
      %p312 = scmp.ne.s32.totalorder %s304, %s307
      %p313 = scmp.eq.s32.totalorder %s28, 0
      %p314 = por %p312, %p313
      %p315 = scmp.ne.s32.totalorder %s304, %s307
      %p316 = scmp.eq.s32.totalorder %s33, 1
      %p317 = por %p315, %p316
      %p318 = scmp.ne.s32.totalorder %s307, %s308
      %p319 = scmp.eq.s32.totalorder %s33, 0
      %p320 = por %p318, %p319
      %p321 = scmp.ne.s32.totalorder %s307, %s308
      %p322 = scmp.eq.s32.totalorder %s34, 1
      %p323 = por %p321, %p322
      %p325 = scmp.ne.s32.totalorder %s308, %s324
      %p326 = scmp.eq.s32.totalorder %s34, 0
      %p327 = por %p325, %p326
      %s328 = ssub.s32 %s28, %s35
      %p329 = scmp.eq.s32.totalorder %s328, 0
      %s331 = sadd.s32 %s330, 1
      %s332 = scalar_select %p329, %s330, %s331
      %p335 = pneg %p329
      %p336 = scmp.eq.s32.totalorder %s28, 1
      %p337 = por %p335, %p336
      %p338 = scmp.ne.s32.totalorder %s330, %s333
      %p339 = scmp.eq.s32.totalorder %s28, 0
      %p340 = por %p338, %p339
      %p341 = scmp.ne.s32.totalorder %s330, %s333
      %p342 = scmp.eq.s32.totalorder %s33, 1
      %p343 = por %p341, %p342
      %p344 = scmp.ne.s32.totalorder %s333, %s334
      %p345 = scmp.eq.s32.totalorder %s33, 0
      %p346 = por %p344, %p345
      %p347 = scmp.ne.s32.totalorder %s333, %s334
      %p348 = scmp.eq.s32.totalorder %s34, 1
      %p349 = por %p347, %p348
      %p351 = scmp.ne.s32.totalorder %s334, %s350
      %p352 = scmp.eq.s32.totalorder %s34, 0
      %p353 = por %p351, %p352
      %s354 = ssub.s32 %s28, %s35
      %p355 = scmp.eq.s32.totalorder %s354, 0
      %s357 = sadd.s32 %s356, 1
      %s358 = scalar_select %p355, %s356, %s357
      %p361 = pneg %p355
      %p362 = scmp.eq.s32.totalorder %s28, 1
      %p363 = por %p361, %p362
      %p364 = scmp.ne.s32.totalorder %s356, %s359
      %p365 = scmp.eq.s32.totalorder %s28, 0
      %p366 = por %p364, %p365
      %p367 = scmp.ne.s32.totalorder %s356, %s359
      %p368 = scmp.eq.s32.totalorder %s33, 1
      %p369 = por %p367, %p368
      %p370 = scmp.ne.s32.totalorder %s359, %s360
      %p371 = scmp.eq.s32.totalorder %s33, 0
      %p372 = por %p370, %p371
      %p373 = scmp.ne.s32.totalorder %s359, %s360
      %p374 = scmp.eq.s32.totalorder %s34, 1
      %p375 = por %p373, %p374
      %p377 = scmp.ne.s32.totalorder %s360, %s376
      %p378 = scmp.eq.s32.totalorder %s34, 0
      %p379 = por %p377, %p378
      %s380 = ssub.s32 %s28, %s35
      %p381 = scmp.eq.s32.totalorder %s380, 0
      %s383 = sadd.s32 %s382, 1
      %s384 = scalar_select %p381, %s382, %s383
      %p387 = pneg %p381
      %p388 = scmp.eq.s32.totalorder %s28, 1
      %p389 = por %p387, %p388
      %p390 = scmp.ne.s32.totalorder %s382, %s385
      %p391 = scmp.eq.s32.totalorder %s28, 0
      %p392 = por %p390, %p391
      %p393 = scmp.ne.s32.totalorder %s382, %s385
      %p394 = scmp.eq.s32.totalorder %s33, 1
      %p395 = por %p393, %p394
      %p396 = scmp.ne.s32.totalorder %s385, %s386
      %p397 = scmp.eq.s32.totalorder %s33, 0
      %p398 = por %p396, %p397
      %p399 = scmp.ne.s32.totalorder %s385, %s386
      %p400 = scmp.eq.s32.totalorder %s34, 1
      %p401 = por %p399, %p400
      %p403 = scmp.ne.s32.totalorder %s386, %s402
      %p404 = scmp.eq.s32.totalorder %s34, 0
      %p405 = por %p403, %p404
      %s406 = ssub.s32 %s28, %s35
      %p407 = scmp.eq.s32.totalorder %s406, 0
      %s409 = sadd.s32 %s408, 1
      %s410 = scalar_select %p407, %s408, %s409
      %p413 = pneg %p407
      %p414 = scmp.eq.s32.totalorder %s28, 1
      %p415 = por %p413, %p414
      %p416 = scmp.ne.s32.totalorder %s408, %s411
      %p417 = scmp.eq.s32.totalorder %s28, 0
      %p418 = por %p416, %p417
      %p419 = scmp.ne.s32.totalorder %s408, %s411
      %p420 = scmp.eq.s32.totalorder %s33, 1
      %p421 = por %p419, %p420
      %p422 = scmp.ne.s32.totalorder %s411, %s412
      %p423 = scmp.eq.s32.totalorder %s33, 0
      %p424 = por %p422, %p423
      %p425 = scmp.ne.s32.totalorder %s411, %s412
      %p426 = scmp.eq.s32.totalorder %s34, 1
      %p427 = por %p425, %p426
      %p429 = scmp.ne.s32.totalorder %s412, %s428
      %p430 = scmp.eq.s32.totalorder %s34, 0
      %p431 = por %p429, %p430
      %s433 = sadd.s32 %s432, 1
      %p436 = scmp.eq.s32.totalorder %s28, 1
      %p437 = scmp.ne.s32.totalorder %s432, %s434
      %p438 = scmp.eq.s32.totalorder %s28, 0
      %p439 = por %p437, %p438
      %p440 = scmp.ne.s32.totalorder %s432, %s434
      %p441 = scmp.eq.s32.totalorder %s33, 1
      %p442 = por %p440, %p441
      %p443 = scmp.ne.s32.totalorder %s434, %s435
      %p444 = scmp.eq.s32.totalorder %s33, 0
      %p445 = por %p443, %p444
      %p446 = scmp.ne.s32.totalorder %s434, %s435
      %p447 = scmp.eq.s32.totalorder %s34, 1
      %p448 = por %p446, %p447
      %p450 = scmp.ne.s32.totalorder %s435, %s449
      %p451 = scmp.eq.s32.totalorder %s34, 0
      %p452 = por %p450, %p451
      %p453 = scmp.le.s32.totalorder 1, %s28
      %p454 = scmp.lt.s32.totalorder %s28, 3
      %p455 = pnand %p453, %p454
      %p456 = pneg %p455
      // Predicated region
      $region9: #{roberta_with_features.2} parent=5 // pred_check
        _
      $region10: #{roberta_with_features.2} parent=5 // pred_check_branch
        %458 = sbr.rel (%p455) target = $region12
      $region11: #{roberta_with_features.2} parent=5 // pred_region
        %s459 = ssub.s32 %s28, 1
        // Predicated region
        $region13: #{roberta_with_features.2} parent=11 // pred_check
          %p460 = pneg %p49
        $region14: #{roberta_with_features.2} parent=11 // pred_check_branch
          %462 = sbr.rel (%p460) target = $region16
        $region15: #{roberta_with_features.2} parent=11 // pred_region
          _
        $region16: #{roberta_with_features.2} parent=11 // pred_fallthru
          _
        // Predicated region
        $region17: #{roberta_with_features.2} parent=11 // pred_check
          %p463 = pneg %p70
        $region18: #{roberta_with_features.2} parent=11 // pred_check_branch
          %465 = sbr.rel (%p463) target = $region20
        $region19: #{roberta_with_features.2} parent=11 // pred_region
          _
        $region20: #{roberta_with_features.2} parent=11 // pred_fallthru
          _
        // Predicated region
        $region21: #{roberta_with_features.2} parent=11 // pred_check
          %p466 = pneg %p91
        $region22: #{roberta_with_features.2} parent=11 // pred_check_branch
          %468 = sbr.rel (%p466) target = $region24
        $region23: #{roberta_with_features.2} parent=11 // pred_region
          _
        $region24: #{roberta_with_features.2} parent=11 // pred_fallthru
          _
        // Predicated region
        $region25: #{roberta_with_features.2} parent=11 // pred_check
          %p469 = pneg %p112
        $region26: #{roberta_with_features.2} parent=11 // pred_check_branch
          %471 = sbr.rel (%p469) target = $region28
        $region27: #{roberta_with_features.2} parent=11 // pred_region
          _
        $region28: #{roberta_with_features.2} parent=11 // pred_fallthru
          _
      $region12: #{roberta_with_features.2} parent=5 // pred_fallthru
        _
      %p472 = scmp.lt.s32.totalorder %s28, 2
      // Predicated region
      $region29: #{roberta_with_features.2} parent=5 // pred_check
        %p473 = pneg %p472
      $region30: #{roberta_with_features.2} parent=5 // pred_check_branch
        %475 = sbr.rel (%p473) target = $region32
      $region31: #{roberta_with_features.2} parent=5 // pred_region
        // Predicated region
        $region33: #{roberta_with_features.2} parent=31 // pred_check
          %p476 = pneg %p132
        $region34: #{roberta_with_features.2} parent=31 // pred_check_branch
          %478 = sbr.rel (%p476) target = $region36
        $region35: #{roberta_with_features.2} parent=31 // pred_region
          %s479 = sand.u32 %s122, 1
          %s480 = scalar_lea.sflag [#allocation3], %s479
          %s481 = sand.u32 %s122, 1
          %s482 = smul.addr %s481, 384
          %s483 = scalar_lea.vmem [#allocation2], %s482
          %s485 = ssub.s32 6144, 6144
          %486 = vsyncadd %s480, %s485
          %s487 = smul.addr %s28, 48
          %s488 = smul.addr %s487, 128
          %s489 = scalar_lea.hbm %s4, %s488
          %s490 = sshll.u32 %s483, 4
          %s491 = int_to_ptr.vmem [resolvable:$true] %s490
          %496 = dma.hbm_to_vmem [thread:$0]  %s489, 6144, %s491, %s480, 384, 384, 24
        $region36: #{roberta_with_features.2} parent=31 // pred_fallthru
          _
        // Predicated region
        $region37: #{roberta_with_features.2} parent=31 // pred_check
          %p497 = pneg %p158
        $region38: #{roberta_with_features.2} parent=31 // pred_check_branch
          %499 = sbr.rel (%p497) target = $region40
        $region39: #{roberta_with_features.2} parent=31 // pred_region
          %p500 = scmp.lt.s32.totalorder %s28, 1
          %s501 = scalar_select %p500, %s28, 1
          %s502 = smul.addr %s501, 3
          %s503 = scalar_lea.vmem %s5, %s502
        $region40: #{roberta_with_features.2} parent=31 // pred_fallthru
          _
        // Predicated region
        $region41: #{roberta_with_features.2} parent=31 // pred_check
          %p504 = pneg %p184
        $region42: #{roberta_with_features.2} parent=31 // pred_check_branch
          %506 = sbr.rel (%p504) target = $region44
        $region43: #{roberta_with_features.2} parent=31 // pred_region
          %p507 = scmp.lt.s32.totalorder %s28, 1
          %s508 = scalar_select %p507, %s28, 1
          %s509 = smul.addr %s508, 16
          %s510 = smul.addr %s509, 8
          %s511 = scalar_lea.vmem %s6, %s510
        $region44: #{roberta_with_features.2} parent=31 // pred_fallthru
          _
        // Predicated region
        $region45: #{roberta_with_features.2} parent=31 // pred_check
          %p512 = pneg %p210
        $region46: #{roberta_with_features.2} parent=31 // pred_check_branch
          %514 = sbr.rel (%p512) target = $region48
        $region47: #{roberta_with_features.2} parent=31 // pred_region
          %p515 = scmp.lt.s32.totalorder %s28, 1
          %s516 = scalar_select %p515, %s28, 1
          %s517 = scalar_lea.vmem %s7, %s516
        $region48: #{roberta_with_features.2} parent=31 // pred_fallthru
          _
        // Predicated region
        $region49: #{roberta_with_features.2} parent=31 // pred_check
          %p518 = pneg %p236
        $region50: #{roberta_with_features.2} parent=31 // pred_check_branch
          %520 = sbr.rel (%p518) target = $region52
        $region51: #{roberta_with_features.2} parent=31 // pred_region
          %p521 = scmp.lt.s32.totalorder %s28, 1
          %s522 = scalar_select %p521, %s28, 1
          %s523 = scalar_lea.vmem %s8, %s522
        $region52: #{roberta_with_features.2} parent=31 // pred_fallthru
          _
        // Predicated region
        $region53: #{roberta_with_features.2} parent=31 // pred_check
          %p524 = pneg %p262
        $region54: #{roberta_with_features.2} parent=31 // pred_check_branch
          %526 = sbr.rel (%p524) target = $region56
        $region55: #{roberta_with_features.2} parent=31 // pred_region
          %p527 = scmp.lt.s32.totalorder %s28, 1
          %s528 = scalar_select %p527, %s28, 1
          %s529 = scalar_lea.vmem %s9, %s528
        $region56: #{roberta_with_features.2} parent=31 // pred_fallthru
          _
        // Predicated region
        $region57: #{roberta_with_features.2} parent=31 // pred_check
          %p530 = pneg %p288
        $region58: #{roberta_with_features.2} parent=31 // pred_check_branch
          %532 = sbr.rel (%p530) target = $region60
        $region59: #{roberta_with_features.2} parent=31 // pred_region
          %s533 = sand.u32 %s28, 1
          %s534 = scalar_lea.sflag [#allocation5], %s533
          %s535 = sand.u32 %s278, 1
          %s536 = smul.addr %s535, 256
          %s537 = scalar_lea.vmem [#allocation4], %s536
          %s539 = ssub.s32 4096, 4096
          %540 = vsyncadd %s534, %s539
          %s541 = smul.addr %s28, 32
          %s542 = smul.addr %s541, 128
          %s543 = scalar_lea.hbm %s10, %s542
          %s544 = sshll.u32 %s537, 4
          %s545 = int_to_ptr.vmem [resolvable:$true] %s544
          %550 = dma.hbm_to_vmem [thread:$0]  %s543, 4096, %s545, %s534, 256, 256, 16
        $region60: #{roberta_with_features.2} parent=31 // pred_fallthru
          _
        // Predicated region
        $region61: #{roberta_with_features.2} parent=31 // pred_check
          %p551 = pneg %p314
        $region62: #{roberta_with_features.2} parent=31 // pred_check_branch
          %553 = sbr.rel (%p551) target = $region64
        $region63: #{roberta_with_features.2} parent=31 // pred_region
          %p554 = scmp.lt.s32.totalorder %s28, 1
          %s555 = scalar_select %p554, %s28, 1
          %s556 = smul.addr %s555, 2
          %s557 = scalar_lea.vmem %s11, %s556
        $region64: #{roberta_with_features.2} parent=31 // pred_fallthru
          _
        // Predicated region
        $region65: #{roberta_with_features.2} parent=31 // pred_check
          %p558 = pneg %p340
        $region66: #{roberta_with_features.2} parent=31 // pred_check_branch
          %560 = sbr.rel (%p558) target = $region68
        $region67: #{roberta_with_features.2} parent=31 // pred_region
          %s561 = sand.u32 %s28, 1
          %s562 = scalar_lea.sflag [#allocation5], %s561
          %s563 = sand.u32 %s330, 1
          %s564 = smul.addr %s563, 256
          %s565 = scalar_lea.vmem [#allocation6], %s564
          %s567 = ssub.s32 4096, 4096
          %568 = vsyncadd %s562, %s567
          %s569 = smul.addr %s28, 32
          %s570 = smul.addr %s569, 128
          %s571 = scalar_lea.hbm %s12, %s570
          %s572 = sshll.u32 %s565, 4
          %s573 = int_to_ptr.vmem [resolvable:$true] %s572
          %578 = dma.hbm_to_vmem [thread:$0]  %s571, 4096, %s573, %s562, 128, 128, 8
        $region68: #{roberta_with_features.2} parent=31 // pred_fallthru
          _
        // Predicated region
        $region69: #{roberta_with_features.2} parent=31 // pred_check
          %p579 = pneg %p366
        $region70: #{roberta_with_features.2} parent=31 // pred_check_branch
          %581 = sbr.rel (%p579) target = $region72
        $region71: #{roberta_with_features.2} parent=31 // pred_region
          %p582 = scmp.lt.s32.totalorder %s28, 1
          %s583 = scalar_select %p582, %s28, 1
          %s584 = scalar_lea.vmem %s13, %s583
        $region72: #{roberta_with_features.2} parent=31 // pred_fallthru
          _
        // Predicated region
        $region73: #{roberta_with_features.2} parent=31 // pred_check
          %p585 = pneg %p392
        $region74: #{roberta_with_features.2} parent=31 // pred_check_branch
          %587 = sbr.rel (%p585) target = $region76
        $region75: #{roberta_with_features.2} parent=31 // pred_region
          %p588 = scmp.lt.s32.totalorder %s28, 1
          %s589 = scalar_select %p588, %s28, 1
          %s590 = scalar_lea.vmem %s14, %s589
        $region76: #{roberta_with_features.2} parent=31 // pred_fallthru
          _
        // Predicated region
        $region77: #{roberta_with_features.2} parent=31 // pred_check
          %p591 = pneg %p418
        $region78: #{roberta_with_features.2} parent=31 // pred_check_branch
          %593 = sbr.rel (%p591) target = $region80
        $region79: #{roberta_with_features.2} parent=31 // pred_region
          %p594 = scmp.lt.s32.totalorder %s28, 1
          %s595 = scalar_select %p594, %s28, 1
          %s596 = scalar_lea.vmem %s15, %s595
        $region80: #{roberta_with_features.2} parent=31 // pred_fallthru
          _
      $region32: #{roberta_with_features.2} parent=5 // pred_fallthru
        _
      %p597 = scmp.le.s32.totalorder 1, %s28
      %p598 = scmp.lt.s32.totalorder %s28, 3
      %p599 = pnand %p597, %p598
      %p600 = pneg %p599
      // Predicated region
      $region81: #{roberta_with_features.2} parent=5 // pred_check
        _
      $region82: #{roberta_with_features.2} parent=5 // pred_check_branch
        %602 = sbr.rel (%p599) target = $region84
      $region83: #{roberta_with_features.2} parent=5 // pred_region
        %s603 = ssub.s32 %s28, 1
        %s604 = sand.u32 %s125, 1
        %s605 = scalar_lea.sflag [#allocation3], %s604
        %s606 = sand.u32 %s125, 1
        %s607 = smul.addr %s606, 384
        %s608 = scalar_lea.vmem [#allocation2], %s607
        // Predicated region
        $region85: #{roberta_with_features.2} parent=83 // pred_check
          %p609 = pneg %p138
        $region86: #{roberta_with_features.2} parent=83 // pred_check_branch
          %611 = sbr.rel (%p609) target = $region88
        $region87: #{roberta_with_features.2} parent=83 // pred_region
          %612 = dma.done %s605, 6144
        $region88: #{roberta_with_features.2} parent=83 // pred_fallthru
          _
        %s613 = sand.u32 %s33, 1
        %s614 = scalar_lea.sflag [#allocation5], %s613
        %s615 = sand.u32 %s281, 1
        %s616 = smul.addr %s615, 256
        %s617 = scalar_lea.vmem [#allocation4], %s616
        // Predicated region
        $region89: #{roberta_with_features.2} parent=83 // pred_check
          %p618 = pneg %p294
        $region90: #{roberta_with_features.2} parent=83 // pred_check_branch
          %620 = sbr.rel (%p618) target = $region92
        $region91: #{roberta_with_features.2} parent=83 // pred_region
          %621 = dma.done %s614, 4096
        $region92: #{roberta_with_features.2} parent=83 // pred_fallthru
          _
        %s622 = sand.u32 %s33, 1
        %s623 = scalar_lea.sflag [#allocation5], %s622
        %s624 = sand.u32 %s333, 1
        %s625 = smul.addr %s624, 256
        %s626 = scalar_lea.vmem [#allocation6], %s625
        // Predicated region
        $region93: #{roberta_with_features.2} parent=83 // pred_check
          %p627 = pneg %p346
        $region94: #{roberta_with_features.2} parent=83 // pred_check_branch
          %629 = sbr.rel (%p627) target = $region96
        $region95: #{roberta_with_features.2} parent=83 // pred_region
          %630 = dma.done %s623, 4096
        $region96: #{roberta_with_features.2} parent=83 // pred_fallthru
          _
        %p631 = pneg %p49
        %p632 = pneg %p46
        %p633 = pneg %p70
        %p634 = pneg %p67
        %p635 = pneg %p91
        %p636 = pneg %p88
        %p637 = pneg %p112
        %p638 = pneg %p109
        %s639 = sand.u32 %s125, 1
        %s640 = scalar_lea.sflag [#allocation3], %s639
        %s641 = sand.u32 %s125, 1
        %s642 = smul.addr %s641, 384
        %s643 = scalar_lea.vmem [#allocation2], %s642
        %p644 = pneg %p138
        %p645 = pneg %p135
        %p646 = scmp.lt.s32.totalorder %s33, 1
        %s647 = scalar_select %p646, %s33, 1
        %s648 = smul.addr %s647, 3
        %s649 = scalar_lea.vmem %s5, %s648
        %p650 = pneg %p164
        %p651 = pneg %p161
        %p652 = scmp.lt.s32.totalorder %s33, 1
        %s653 = scalar_select %p652, %s33, 1
        %s654 = smul.addr %s653, 16
        %s655 = smul.addr %s654, 8
        %s656 = scalar_lea.vmem %s6, %s655
        %p657 = pneg %p190
        %p658 = pneg %p187
        %p659 = scmp.lt.s32.totalorder %s33, 1
        %s660 = scalar_select %p659, %s33, 1
        %s661 = scalar_lea.vmem %s7, %s660
        %p662 = pneg %p216
        %p663 = pneg %p213
        %p664 = scmp.lt.s32.totalorder %s33, 1
        %s665 = scalar_select %p664, %s33, 1
        %s666 = scalar_lea.vmem %s8, %s665
        %p667 = pneg %p242
        %p668 = pneg %p239
        %p669 = scmp.lt.s32.totalorder %s33, 1
        %s670 = scalar_select %p669, %s33, 1
        %s671 = scalar_lea.vmem %s9, %s670
        %p672 = pneg %p268
        %p673 = pneg %p265
        %s674 = sand.u32 %s33, 1
        %s675 = scalar_lea.sflag [#allocation5], %s674
        %s676 = sand.u32 %s281, 1
        %s677 = smul.addr %s676, 256
        %s678 = scalar_lea.vmem [#allocation4], %s677
        %p679 = pneg %p294
        %p680 = pneg %p291
        %p681 = scmp.lt.s32.totalorder %s33, 1
        %s682 = scalar_select %p681, %s33, 1
        %s683 = smul.addr %s682, 2
        %s684 = scalar_lea.vmem %s11, %s683
        %p685 = pneg %p320
        %p686 = pneg %p317
        %s687 = sand.u32 %s33, 1
        %s688 = scalar_lea.sflag [#allocation5], %s687
        %s689 = sand.u32 %s333, 1
        %s690 = smul.addr %s689, 256
        %s691 = scalar_lea.vmem [#allocation6], %s690
        %p692 = pneg %p346
        %p693 = pneg %p343
        %p694 = scmp.lt.s32.totalorder %s33, 1
        %s695 = scalar_select %p694, %s33, 1
        %s696 = scalar_lea.vmem %s13, %s695
        %p697 = pneg %p372
        %p698 = pneg %p369
        %p699 = scmp.lt.s32.totalorder %s33, 1
        %s700 = scalar_select %p699, %s33, 1
        %s701 = scalar_lea.vmem %s14, %s700
        %p702 = pneg %p398
        %p703 = pneg %p395
        %p704 = scmp.lt.s32.totalorder %s33, 1
        %s705 = scalar_select %p704, %s33, 1
        %s706 = scalar_lea.vmem %s15, %s705
        %p707 = pneg %p424
        %p708 = pneg %p421
        %p709 = pneg %p445
        %p710 = pneg %p442
        %p711 = scmp.lt.s32.totalorder %s33, 1
        %s712 = scalar_select %p711, %s33, 1
        %s713 = smul.addr %s712, 3
        %s714 = scalar_lea.vmem %s5, %s713
        %p715 = scmp.lt.s32.totalorder %s33, 1
        %s716 = scalar_select %p715, %s33, 1
        %s717 = smul.addr %s716, 16
        %s718 = smul.addr %s717, 8
        %s719 = scalar_lea.vmem %s6, %s718
        %p720 = scmp.lt.s32.totalorder %s33, 1
        %s721 = scalar_select %p720, %s33, 1
        %s722 = scalar_lea.vmem %s7, %s721
        %p723 = scmp.lt.s32.totalorder %s33, 1
        %s724 = scalar_select %p723, %s33, 1
        %s725 = scalar_lea.vmem %s8, %s724
        %p726 = scmp.lt.s32.totalorder %s33, 1
        %s727 = scalar_select %p726, %s33, 1
        %s728 = scalar_lea.vmem %s9, %s727
        %p729 = scmp.lt.s32.totalorder %s33, 1
        %s730 = scalar_select %p729, %s33, 1
        %s731 = smul.addr %s730, 2
        %s732 = scalar_lea.vmem %s11, %s731
        %p733 = scmp.lt.s32.totalorder %s33, 1
        %s734 = scalar_select %p733, %s33, 1
        %s735 = scalar_lea.vmem %s13, %s734
        %p736 = scmp.lt.s32.totalorder %s33, 1
        %s737 = scalar_select %p736, %s33, 1
        %s738 = scalar_lea.vmem %s14, %s737
        %p739 = scmp.lt.s32.totalorder %s33, 1
        %s740 = scalar_select %p739, %s33, 1
        %s741 = scalar_lea.vmem %s15, %s740
        %p742 = scmp.eq.s32.totalorder %s33, 0
        // Predicated region
        $region97: #{roberta_with_features.2} parent=83 // pred_check
          %p743 = pneg %p742
        $region98: #{roberta_with_features.2} parent=83 // pred_check_branch
          %745 = sbr.rel (%p743) target = $region100
        $region99: #{roberta_with_features.2} parent=83 // pred_region
          %v746 = vld [vmem:[%s0] sm:$0xff]
          %v747 = vld [vmem:[%s0 + $0x8] sm:$0xff]
          %v748 = vld [vmem:[%s2] sm:$0x1]
          %v749 = vld [vmem:[%s3] sm:$0x1]
          %750 = vadd.xlane.f32.xlu0 %v746
          %v751 = vpop.xlane.xlu0 %750
          %752 = vadd.xlane.f32.xlu0 %v747
          %v753 = vpop.xlane.xlu0 %752
          %v754 = vrcp.pop 128.0
          %v755 = vmul.f32 %v751, %v754
          %v756 = vmul.f32 %v753, %v754
          %v757 = vsub.f32 %v746, %v755
          %v758 = vsub.f32 %v747, %v756
          %v759 = vmul.f32 %v757, %v757
          %v760 = vmul.f32 %v758, %v758
          %761 = vadd.xlane.f32.xlu0 %v759
          %v762 = vpop.xlane.xlu0 %761
          %763 = vadd.xlane.f32.xlu0 %v760
          %v764 = vpop.xlane.xlu0 %763
          %v765 = vmul.f32 %v762, %v754
          %v766 = vmul.f32 %v764, %v754
          %v767 = vadd.f32 %v765, 1e-05
          %v768 = vadd.f32 %v766, 1e-05
          %v769 = vrsqrt.pop %v767
          %v770 = vrsqrt.pop %v768
          %v771 = vmul.f32 %v757, %v769
          %v772 = vmul.f32 %v758, %v770
          %v774 = vlaneseq
          %v775 = vshrl.u32 %v774, 7
          %v776 = vsub.s32 0, %v775
          %v777 = vrot.slane %v748, %v776
          %v779 = vmul.f32 %v771, %v777
          %v780 = vmul.f32 %v772, %v777
          %v782 = vlaneseq
          %v783 = vshrl.u32 %v782, 7
          %v784 = vsub.s32 0, %v783
          %v785 = vrot.slane %v749, %v784
          %v787 = vadd.f32 %v779, %v785
          %v788 = vadd.f32 %v780, %v785
          %789 = vst [vmem:[%s16] sm:$0xff] %v787
          %790 = vst [vmem:[%s16 + $0x8] sm:$0xff] %v788
        $region100: #{roberta_with_features.2} parent=83 // pred_fallthru
          _
        %v791 = vld [vmem:[%s16] sm:$0xff]
        %v792 = vld [vmem:[%s16 + $0x8] sm:$0xff]
        %v793 = vld [vmem:[%s608] sm:$0xff]
        %v794 = vld [vmem:[%s608 + $0x8] sm:$0xff]
        %v795 = vld [vmem:[%s608 + $0x10] sm:$0xff]
        %v796 = vld [vmem:[%s608 + $0x18] sm:$0xff]
        %v797 = vld [vmem:[%s608 + $0x20] sm:$0xff]
        %v798 = vld [vmem:[%s608 + $0x28] sm:$0xff]
        %v799 = vld [vmem:[%s608 + $0x30] sm:$0xff]
        %v800 = vld [vmem:[%s608 + $0x38] sm:$0xff]
        %v801 = vld [vmem:[%s608 + $0x40] sm:$0xff]
        %v802 = vld [vmem:[%s608 + $0x48] sm:$0xff]
        %v803 = vld [vmem:[%s608 + $0x50] sm:$0xff]
        %v804 = vld [vmem:[%s608 + $0x58] sm:$0xff]
        %v805 = vld [vmem:[%s608 + $0x60] sm:$0xff]
        %v806 = vld [vmem:[%s608 + $0x68] sm:$0xff]
        %v807 = vld [vmem:[%s608 + $0x70] sm:$0xff]
        %v808 = vld [vmem:[%s608 + $0x78] sm:$0xff]
        %v809 = vld [vmem:[%s608 + $0x80] sm:$0xff]
        %v810 = vld [vmem:[%s608 + $0x88] sm:$0xff]
        %v811 = vld [vmem:[%s608 + $0x90] sm:$0xff]
        %v812 = vld [vmem:[%s608 + $0x98] sm:$0xff]
        %v813 = vld [vmem:[%s608 + $0xa0] sm:$0xff]
        %v814 = vld [vmem:[%s608 + $0xa8] sm:$0xff]
        %v815 = vld [vmem:[%s608 + $0xb0] sm:$0xff]
        %v816 = vld [vmem:[%s608 + $0xb8] sm:$0xff]
        %v817 = vld [vmem:[%s608 + $0xc0] sm:$0xff]
        %v818 = vld [vmem:[%s608 + $0xc8] sm:$0xff]
        %v819 = vld [vmem:[%s608 + $0xd0] sm:$0xff]
        %v820 = vld [vmem:[%s608 + $0xd8] sm:$0xff]
        %v821 = vld [vmem:[%s608 + $0xe0] sm:$0xff]
        %v822 = vld [vmem:[%s608 + $0xe8] sm:$0xff]
        %v823 = vld [vmem:[%s608 + $0xf0] sm:$0xff]
        %v824 = vld [vmem:[%s608 + $0xf8] sm:$0xff]
        %v825 = vld [vmem:[%s608 + $0x100] sm:$0xff]
        %v826 = vld [vmem:[%s608 + $0x108] sm:$0xff]
        %v827 = vld [vmem:[%s608 + $0x110] sm:$0xff]
        %v828 = vld [vmem:[%s608 + $0x118] sm:$0xff]
        %v829 = vld [vmem:[%s608 + $0x120] sm:$0xff]
        %v830 = vld [vmem:[%s608 + $0x128] sm:$0xff]
        %v831 = vld [vmem:[%s608 + $0x130] sm:$0xff]
        %v832 = vld [vmem:[%s608 + $0x138] sm:$0xff]
        %v833 = vld [vmem:[%s608 + $0x140] sm:$0xff]
        %v834 = vld [vmem:[%s608 + $0x148] sm:$0xff]
        %v835 = vld [vmem:[%s608 + $0x150] sm:$0xff]
        %v836 = vld [vmem:[%s608 + $0x158] sm:$0xff]
        %v837 = vld [vmem:[%s608 + $0x160] sm:$0xff]
        %v838 = vld [vmem:[%s608 + $0x168] sm:$0xff]
        %v839 = vld [vmem:[%s608 + $0x170] sm:$0xff]
        %v840 = vld [vmem:[%s608 + $0x178] sm:$0xff]
        %v841 = vld [vmem:[%s714] sm:$0x7]
        %v843 = vlaneseq
        %v844 = vshrl.u32 %v843, 7
        %v845 = vsub.s32 0, %v844
        %v846 = vrot.slane %v841, %v845
        %v847 = vlaneseq
        %v848 = vshrl.u32 %v847, 7
        %v849 = vsub.s32 1, %v848
        %v850 = vrot.slane %v841, %v849
        %v851 = vlaneseq
        %v852 = vshrl.u32 %v851, 7
        %v853 = vsub.s32 2, %v852
        %v854 = vrot.slane %v841, %v853
        %858 = vmatprep.subr.mxu0 %v794
        %859 = vmatpush1.msra.mxu0 %v793
        %860 = vmatprep.subr.mxu0 %v797
        %861 = vmatpush1.msra.mxu0 %v796
        %862 = vmatprep.subr.mxu0 %v800
        %863 = vmatpush1.msra.mxu0 %v799
        %864 = vmatprep.subr.mxu0 %v803
        %865 = vmatpush1.msra.mxu0 %v802
        %866 = vmatprep.subr.mxu0 %v806
        %867 = vmatpush1.msra.mxu0 %v805
        %868 = vmatprep.subr.mxu0 %v809
        %869 = vmatpush1.msra.mxu0 %v808
        %870 = vmatprep.subr.mxu0 %v812
        %871 = vmatpush1.msra.mxu0 %v811
        %872 = vmatprep.subr.mxu0 %v815
        %873 = vmatpush1.msra.mxu0 %v814
        %874 = vmatprep.subr.mxu0 %v818
        %875 = vmatpush1.msra.mxu0 %v817
        %876 = vmatprep.subr.mxu0 %v821
        %877 = vmatpush1.msra.mxu0 %v820
        %878 = vmatprep.subr.mxu0 %v824
        %879 = vmatpush1.msra.mxu0 %v823
        %880 = vmatprep.subr.mxu0 %v827
        %881 = vmatpush1.msra.mxu0 %v826
        %882 = vmatprep.subr.mxu0 %v830
        %883 = vmatpush1.msra.mxu0 %v829
        %884 = vmatprep.subr.mxu0 %v833
        %885 = vmatpush1.msra.mxu0 %v832
        %886 = vmatprep.subr.mxu0 %v836
        %887 = vmatpush1.msra.mxu0 %v835
        %888 = vmatprep.subr.mxu0 %v839
        %889 = vmatpush1.msra.mxu0 %v838
        %890 = vmatprep.subr.mxu0 0.0
        %891 = vmatpush1.msra.mxu0 0.0
        %892 = vmatprep.subr.mxu0 0.0
        %893 = vmatpush1.msra.mxu0 0.0
        %894 = vmatprep.subr.mxu0 0.0
        %895 = vmatpush1.msra.mxu0 0.0
        %896 = vmatprep.subr.mxu0 0.0
        %897 = vmatpush1.msra.mxu0 0.0
        %898 = vmatprep.subr.mxu0 0.0
        %899 = vmatpush1.msra.mxu0 0.0
        %900 = vmatprep.subr.mxu0 0.0
        %901 = vmatpush1.msra.mxu0 0.0
        %902 = vmatprep.subr.mxu0 0.0
        %903 = vmatpush1.msra.mxu0 0.0
        %904 = vmatprep.subr.mxu0 0.0
        %905 = vmatpush1.msra.mxu0 0.0
        %906 = vmatprep.subr.mxu0 0.0
        %907 = vmatpush1.msra.mxu0 0.0
        %908 = vmatprep.subr.mxu0 0.0
        %909 = vmatpush1.msra.mxu0 0.0
        %910 = vmatprep.subr.mxu0 0.0
        %911 = vmatpush1.msra.mxu0 0.0
        %912 = vmatprep.subr.mxu0 0.0
        %913 = vmatpush1.msra.mxu0 0.0
        %914 = vmatprep.subr.mxu0 0.0
        %915 = vmatpush1.msra.mxu0 0.0
        %916 = vmatprep.subr.mxu0 0.0
        %917 = vmatpush1.msra.mxu0 0.0
        %918 = vmatprep.subr.mxu0 0.0
        %919 = vmatpush1.msra.mxu0 0.0
        %920 = vmatprep.subr.mxu0 0.0
        %921 = vmatpush1.msra.mxu0 0.0
        %922 = vmatprep.mubr.f32.mxu0 0.0
        %923 = vmatmul.mubr.f32.gmra.mrb[0].mxu0 %v791
        %v924 = vpop.f32.mrb[0].mxu0
        %v925 = vadd.f32 %v846, %v924
        %v926 = vpop.f32.mrb[0].mxu0
        %v927 = vadd.f32 %v850, %v926
        %928 = vmatprep.mubr.f32.mxu0 0.0
        %929 = vmatmul.mubr.f32.gmra.mrb[0].mxu0 %v792
        %v930 = vpop.f32.mrb[0].mxu0
        %v931 = vadd.f32 %v846, %v930
        %v932 = vpop.f32.mrb[0].mxu0
        %v933 = vadd.f32 %v850, %v932
        %934 = vdwg.mxu0
        %935 = vmatprep.subr.mxu0 0.0
        %936 = vmatpush1.msra.mxu0 %v795
        %937 = vmatprep.subr.mxu0 0.0
        %938 = vmatpush1.msra.mxu0 %v798
        %939 = vmatprep.subr.mxu0 0.0
        %940 = vmatpush1.msra.mxu0 %v801
        %941 = vmatprep.subr.mxu0 0.0
        %942 = vmatpush1.msra.mxu0 %v804
        %943 = vmatprep.subr.mxu0 0.0
        %944 = vmatpush1.msra.mxu0 %v807
        %945 = vmatprep.subr.mxu0 0.0
        %946 = vmatpush1.msra.mxu0 %v810
        %947 = vmatprep.subr.mxu0 0.0
        %948 = vmatpush1.msra.mxu0 %v813
        %949 = vmatprep.subr.mxu0 0.0
        %950 = vmatpush1.msra.mxu0 %v816
        %951 = vmatprep.subr.mxu0 0.0
        %952 = vmatpush1.msra.mxu0 %v819
        %953 = vmatprep.subr.mxu0 0.0
        %954 = vmatpush1.msra.mxu0 %v822
        %955 = vmatprep.subr.mxu0 0.0
        %956 = vmatpush1.msra.mxu0 %v825
        %957 = vmatprep.subr.mxu0 0.0
        %958 = vmatpush1.msra.mxu0 %v828
        %959 = vmatprep.subr.mxu0 0.0
        %960 = vmatpush1.msra.mxu0 %v831
        %961 = vmatprep.subr.mxu0 0.0
        %962 = vmatpush1.msra.mxu0 %v834
        %963 = vmatprep.subr.mxu0 0.0
        %964 = vmatpush1.msra.mxu0 %v837
        %965 = vmatprep.subr.mxu0 0.0
        %966 = vmatpush1.msra.mxu0 %v840
        %967 = vmatprep.subr.mxu0 0.0
        %968 = vmatpush1.msra.mxu0 0.0
        %969 = vmatprep.subr.mxu0 0.0
        %970 = vmatpush1.msra.mxu0 0.0
        %971 = vmatprep.subr.mxu0 0.0
        %972 = vmatpush1.msra.mxu0 0.0
        %973 = vmatprep.subr.mxu0 0.0
        %974 = vmatpush1.msra.mxu0 0.0
        %975 = vmatprep.subr.mxu0 0.0
        %976 = vmatpush1.msra.mxu0 0.0
        %977 = vmatprep.subr.mxu0 0.0
        %978 = vmatpush1.msra.mxu0 0.0
        %979 = vmatprep.subr.mxu0 0.0
        %980 = vmatpush1.msra.mxu0 0.0
        %981 = vmatprep.subr.mxu0 0.0
        %982 = vmatpush1.msra.mxu0 0.0
        %983 = vmatprep.subr.mxu0 0.0
        %984 = vmatpush1.msra.mxu0 0.0
        %985 = vmatprep.subr.mxu0 0.0
        %986 = vmatpush1.msra.mxu0 0.0
        %987 = vmatprep.subr.mxu0 0.0
        %988 = vmatpush1.msra.mxu0 0.0
        %989 = vmatprep.subr.mxu0 0.0
        %990 = vmatpush1.msra.mxu0 0.0
        %991 = vmatprep.subr.mxu0 0.0
        %992 = vmatpush1.msra.mxu0 0.0
        %993 = vmatprep.subr.mxu0 0.0
        %994 = vmatpush1.msra.mxu0 0.0
        %995 = vmatprep.subr.mxu0 0.0
        %996 = vmatpush1.msra.mxu0 0.0
        %997 = vmatprep.subr.mxu0 0.0
        %998 = vmatpush1.msra.mxu0 0.0
        %999 = vmatprep.mubr.f32.mxu0 0.0
        %1000 = vmatmul.mubr.f32.gmra.mrb[0].mxu0 %v791
        %v1001 = vpop.f32.mrb[0].mxu0
        %v1002 = vadd.f32 %v854, %v1001
        %v1003 = vpop.f32.mrb[0].mxu0
        %1004 = vmatprep.mubr.f32.mxu0 0.0
        %1005 = vmatmul.mubr.f32.gmra.mrb[0].mxu0 %v792
        %v1006 = vpop.f32.mrb[0].mxu0
        %v1007 = vadd.f32 %v854, %v1006
        %v1008 = vpop.f32.mrb[0].mxu0
        %1009 = vdwg.mxu0
        %v1010 = vld [vmem:[%s1] sm:$0x1]
        %vm1011 = vcmask 261120
        %v1013 = vsel %vm1011, %v925, 0
        %v1016 = vsel %vm1011, %v927, 0
        %1018 = vmatprep.subr.mxu0 0.0
        %1019 = vmatpush1.xpose.msra.mxu0 %v1016
        %1020 = vmatprep.subr.mxu0 0.0
        %1021 = vmatpush1.xpose.msra.mxu0 0.0
        %1022 = vmatprep.subr.mxu0 0.0
        %1023 = vmatpush1.xpose.msra.mxu0 0.0
        %1024 = vmatprep.subr.mxu0 0.0
        %1025 = vmatpush1.xpose.msra.mxu0 0.0
        %1026 = vmatprep.subr.mxu0 0.0
        %1027 = vmatpush1.xpose.msra.mxu0 0.0
        %1028 = vmatprep.subr.mxu0 0.0
        %1029 = vmatpush1.xpose.msra.mxu0 0.0
        %1030 = vmatprep.subr.mxu0 0.0
        %1031 = vmatpush1.xpose.msra.mxu0 0.0
        %1032 = vmatprep.subr.mxu0 0.0
        %1033 = vmatpush1.xpose.msra.mxu0 0.0
        %1034 = vmatprep.subr.mxu0 0.0
        %1035 = vmatpush1.xpose.msra.mxu0 0.0
        %1036 = vmatprep.subr.mxu0 0.0
        %1037 = vmatpush1.xpose.msra.mxu0 0.0
        %1038 = vmatprep.subr.mxu0 0.0
        %1039 = vmatpush1.xpose.msra.mxu0 0.0
        %1040 = vmatprep.subr.mxu0 0.0
        %1041 = vmatpush1.xpose.msra.mxu0 0.0
        %1042 = vmatprep.subr.mxu0 0.0
        %1043 = vmatpush1.xpose.msra.mxu0 0.0
        %1044 = vmatprep.subr.mxu0 0.0
        %1045 = vmatpush1.xpose.msra.mxu0 0.0
        %1046 = vmatprep.subr.mxu0 0.0
        %1047 = vmatpush1.xpose.msra.mxu0 0.0
        %1048 = vmatprep.subr.mxu0 0.0
        %1049 = vmatpush1.xpose.msra.mxu0 0.0
        %1050 = vmatprep.subr.mxu0 0.0
        %1051 = vmatpush1.xpose.msra.mxu0 0.0
        %1052 = vmatprep.subr.mxu0 0.0
        %1053 = vmatpush1.xpose.msra.mxu0 0.0
        %1054 = vmatprep.subr.mxu0 0.0
        %1055 = vmatpush1.xpose.msra.mxu0 0.0
        %1056 = vmatprep.subr.mxu0 0.0
        %1057 = vmatpush1.xpose.msra.mxu0 0.0
        %1058 = vmatprep.subr.mxu0 0.0
        %1059 = vmatpush1.xpose.msra.mxu0 0.0
        %1060 = vmatprep.subr.mxu0 0.0
        %1061 = vmatpush1.xpose.msra.mxu0 0.0
        %1062 = vmatprep.subr.mxu0 0.0
        %1063 = vmatpush1.xpose.msra.mxu0 0.0
        %1064 = vmatprep.subr.mxu0 0.0
        %1065 = vmatpush1.xpose.msra.mxu0 0.0
        %1066 = vmatprep.subr.mxu0 0.0
        %1067 = vmatpush1.xpose.msra.mxu0 0.0
        %1068 = vmatprep.subr.mxu0 0.0
        %1069 = vmatpush1.xpose.msra.mxu0 0.0
        %1070 = vmatprep.subr.mxu0 0.0
        %1071 = vmatpush1.xpose.msra.mxu0 0.0
        %1072 = vmatprep.subr.mxu0 0.0
        %1073 = vmatpush1.xpose.msra.mxu0 0.0
        %1074 = vmatprep.subr.mxu0 0.0
        %1075 = vmatpush1.xpose.msra.mxu0 0.0
        %1076 = vmatprep.subr.mxu0 0.0
        %1077 = vmatpush1.xpose.msra.mxu0 0.0
        %1078 = vmatprep.subr.mxu0 0.0
        %1079 = vmatpush1.xpose.msra.mxu0 0.0
        %1080 = vmatprep.subr.mxu0 0.0
        %1081 = vmatpush1.xpose.msra.mxu0 0.0
        %1082 = vmatprep.mubr.f32.mxu0 0.0
        %1083 = vmatmul.mubr.f32.gmra.mrb[0].mxu0 %v1013
        %v1084 = vpop.f32.mrb[0].mxu0
        %v1085 = vadd.f32 0.0, %v1084
        %v1086 = vpop.f32.mrb[0].mxu0
        %1087 = vdwg.mxu0
        %v1088 = vmul.f32 %v1085, 0.17677669
        %v1090 = vlaneseq
        %v1091 = vshrl.u32 %v1090, 7
        %v1092 = vsub.s32 0, %v1091
        %v1093 = vrot.slane %v1010, %v1092
        %v1095 = vadd.f32 %v1088, %v1093
        %vm1096 = vcmask 64512
        %v1097 = vsel %vm1096, %v1095, -inf
        %1098 = vmax.xlane.f32.xlu0 %v1097
        %v1099 = vpop.xlane.xlu0 %1098
        %v1100 = vsub.f32 %v1095, %v1099
        %v1101 = vmul.f32 %v1100, 1.442695
        %v1102 = vpow.pop %v1101
        %v1103 = vsel %vm1096, %v1102, 0.0
        %1104 = vadd.xlane.f32.xlu0 %v1103
        %v1105 = vpop.xlane.xlu0 %1104
        %v1106 = vrcp.pop %v1105
        %v1107 = vmul.f32 %v1102, %v1106
        %v1109 = vsel %vm1096, %v1107, 0
        %1111 = vmatprep.subr.mxu0 0.0
        %1112 = vmatpush1.msra.mxu0 %v1002
        %1113 = vmatprep.subr.mxu0 0.0
        %1114 = vmatpush1.msra.mxu0 0.0
        %1115 = vmatprep.subr.mxu0 0.0
        %1116 = vmatpush1.msra.mxu0 0.0
        %1117 = vmatprep.subr.mxu0 0.0
        %1118 = vmatpush1.msra.mxu0 0.0
        %1119 = vmatprep.subr.mxu0 0.0
        %1120 = vmatpush1.msra.mxu0 0.0
        %1121 = vmatprep.subr.mxu0 0.0
        %1122 = vmatpush1.msra.mxu0 0.0
        %1123 = vmatprep.subr.mxu0 0.0
        %1124 = vmatpush1.msra.mxu0 0.0
        %1125 = vmatprep.subr.mxu0 0.0
        %1126 = vmatpush1.msra.mxu0 0.0
        %1127 = vmatprep.subr.mxu0 0.0
        %1128 = vmatpush1.msra.mxu0 0.0
        %1129 = vmatprep.subr.mxu0 0.0
        %1130 = vmatpush1.msra.mxu0 0.0
        %1131 = vmatprep.subr.mxu0 0.0
        %1132 = vmatpush1.msra.mxu0 0.0
        %1133 = vmatprep.subr.mxu0 0.0
        %1134 = vmatpush1.msra.mxu0 0.0
        %1135 = vmatprep.subr.mxu0 0.0
        %1136 = vmatpush1.msra.mxu0 0.0
        %1137 = vmatprep.subr.mxu0 0.0
        %1138 = vmatpush1.msra.mxu0 0.0
        %1139 = vmatprep.subr.mxu0 0.0
        %1140 = vmatpush1.msra.mxu0 0.0
        %1141 = vmatprep.subr.mxu0 0.0
        %1142 = vmatpush1.msra.mxu0 0.0
        %1143 = vmatprep.subr.mxu0 0.0
        %1144 = vmatpush1.msra.mxu0 0.0
        %1145 = vmatprep.subr.mxu0 0.0
        %1146 = vmatpush1.msra.mxu0 0.0
        %1147 = vmatprep.subr.mxu0 0.0
        %1148 = vmatpush1.msra.mxu0 0.0
        %1149 = vmatprep.subr.mxu0 0.0
        %1150 = vmatpush1.msra.mxu0 0.0
        %1151 = vmatprep.subr.mxu0 0.0
        %1152 = vmatpush1.msra.mxu0 0.0
        %1153 = vmatprep.subr.mxu0 0.0
        %1154 = vmatpush1.msra.mxu0 0.0
        %1155 = vmatprep.subr.mxu0 0.0
        %1156 = vmatpush1.msra.mxu0 0.0
        %1157 = vmatprep.subr.mxu0 0.0
        %1158 = vmatpush1.msra.mxu0 0.0
        %1159 = vmatprep.subr.mxu0 0.0
        %1160 = vmatpush1.msra.mxu0 0.0
        %1161 = vmatprep.subr.mxu0 0.0
        %1162 = vmatpush1.msra.mxu0 0.0
        %1163 = vmatprep.subr.mxu0 0.0
        %1164 = vmatpush1.msra.mxu0 0.0
        %1165 = vmatprep.subr.mxu0 0.0
        %1166 = vmatpush1.msra.mxu0 0.0
        %1167 = vmatprep.subr.mxu0 0.0
        %1168 = vmatpush1.msra.mxu0 0.0
        %1169 = vmatprep.subr.mxu0 0.0
        %1170 = vmatpush1.msra.mxu0 0.0
        %1171 = vmatprep.subr.mxu0 0.0
        %1172 = vmatpush1.msra.mxu0 0.0
        %1173 = vmatprep.subr.mxu0 0.0
        %1174 = vmatpush1.msra.mxu0 0.0
        %1175 = vmatprep.mubr.f32.mxu0 0.0
        %1176 = vmatmul.mubr.f32.gmra.mrb[0].mxu0 %v1109
        %v1177 = vpop.f32.mrb[0].mxu0
        %v1178 = vadd.f32 0.0, %v1177
        %v1179 = vpop.f32.mrb[0].mxu0
        %1180 = vdwg.mxu0
        %1181 = vrot.lane.b32.xlu0 %v925, 96
        %v1182 = vpop.permute.xlu0 %1181
        %1183 = vrot.lane.b32.xlu0 %v927, 96
        %v1184 = vpop.permute.xlu0 %1183
        %v1185 = vsel %vm1011, %v1182, 0
        %v1187 = vsel %vm1011, %v1184, 0
        %1189 = vmatprep.subr.mxu0 0.0
        %1190 = vmatpush1.xpose.msra.mxu0 %v1187
        %1191 = vmatprep.subr.mxu0 0.0
        %1192 = vmatpush1.xpose.msra.mxu0 0.0
        %1193 = vmatprep.subr.mxu0 0.0
        %1194 = vmatpush1.xpose.msra.mxu0 0.0
        %1195 = vmatprep.subr.mxu0 0.0
        %1196 = vmatpush1.xpose.msra.mxu0 0.0
        %1197 = vmatprep.subr.mxu0 0.0
        %1198 = vmatpush1.xpose.msra.mxu0 0.0
        %1199 = vmatprep.subr.mxu0 0.0
        %1200 = vmatpush1.xpose.msra.mxu0 0.0
        %1201 = vmatprep.subr.mxu0 0.0
        %1202 = vmatpush1.xpose.msra.mxu0 0.0
        %1203 = vmatprep.subr.mxu0 0.0
        %1204 = vmatpush1.xpose.msra.mxu0 0.0
        %1205 = vmatprep.subr.mxu0 0.0
        %1206 = vmatpush1.xpose.msra.mxu0 0.0
        %1207 = vmatprep.subr.mxu0 0.0
        %1208 = vmatpush1.xpose.msra.mxu0 0.0
        %1209 = vmatprep.subr.mxu0 0.0
        %1210 = vmatpush1.xpose.msra.mxu0 0.0
        %1211 = vmatprep.subr.mxu0 0.0
        %1212 = vmatpush1.xpose.msra.mxu0 0.0
        %1213 = vmatprep.subr.mxu0 0.0
        %1214 = vmatpush1.xpose.msra.mxu0 0.0
        %1215 = vmatprep.subr.mxu0 0.0
        %1216 = vmatpush1.xpose.msra.mxu0 0.0
        %1217 = vmatprep.subr.mxu0 0.0
        %1218 = vmatpush1.xpose.msra.mxu0 0.0
        %1219 = vmatprep.subr.mxu0 0.0
        %1220 = vmatpush1.xpose.msra.mxu0 0.0
        %1221 = vmatprep.subr.mxu0 0.0
        %1222 = vmatpush1.xpose.msra.mxu0 0.0
        %1223 = vmatprep.subr.mxu0 0.0
        %1224 = vmatpush1.xpose.msra.mxu0 0.0
        %1225 = vmatprep.subr.mxu0 0.0
        %1226 = vmatpush1.xpose.msra.mxu0 0.0
        %1227 = vmatprep.subr.mxu0 0.0
        %1228 = vmatpush1.xpose.msra.mxu0 0.0
        %1229 = vmatprep.subr.mxu0 0.0
        %1230 = vmatpush1.xpose.msra.mxu0 0.0
        %1231 = vmatprep.subr.mxu0 0.0
        %1232 = vmatpush1.xpose.msra.mxu0 0.0
        %1233 = vmatprep.subr.mxu0 0.0
        %1234 = vmatpush1.xpose.msra.mxu0 0.0
        %1235 = vmatprep.subr.mxu0 0.0
        %1236 = vmatpush1.xpose.msra.mxu0 0.0
        %1237 = vmatprep.subr.mxu0 0.0
        %1238 = vmatpush1.xpose.msra.mxu0 0.0
        %1239 = vmatprep.subr.mxu0 0.0
        %1240 = vmatpush1.xpose.msra.mxu0 0.0
        %1241 = vmatprep.subr.mxu0 0.0
        %1242 = vmatpush1.xpose.msra.mxu0 0.0
        %1243 = vmatprep.subr.mxu0 0.0
        %1244 = vmatpush1.xpose.msra.mxu0 0.0
        %1245 = vmatprep.subr.mxu0 0.0
        %1246 = vmatpush1.xpose.msra.mxu0 0.0
        %1247 = vmatprep.subr.mxu0 0.0
        %1248 = vmatpush1.xpose.msra.mxu0 0.0
        %1249 = vmatprep.subr.mxu0 0.0
        %1250 = vmatpush1.xpose.msra.mxu0 0.0
        %1251 = vmatprep.subr.mxu0 0.0
        %1252 = vmatpush1.xpose.msra.mxu0 0.0
        %1253 = vmatprep.mubr.f32.mxu0 0.0
        %1254 = vmatmul.mubr.f32.gmra.mrb[0].mxu0 %v1185
        %v1255 = vpop.f32.mrb[0].mxu0
        %v1256 = vadd.f32 0.0, %v1255
        %v1257 = vpop.f32.mrb[0].mxu0
        %1258 = vdwg.mxu0
        %v1259 = vmul.f32 %v1256, 0.17677669
        %v1260 = vadd.f32 %v1259, %v1093
        %v1261 = vsel %vm1096, %v1260, -inf
        %1262 = vmax.xlane.f32.xlu0 %v1261
        %v1263 = vpop.xlane.xlu0 %1262
        %v1264 = vsub.f32 %v1260, %v1263
        %v1265 = vmul.f32 %v1264, 1.442695
        %v1266 = vpow.pop %v1265
        %v1267 = vsel %vm1096, %v1266, 0.0
        %1268 = vadd.xlane.f32.xlu0 %v1267
        %v1269 = vpop.xlane.xlu0 %1268
        %v1270 = vrcp.pop %v1269
        %v1271 = vmul.f32 %v1266, %v1270
        %1273 = vrot.lane.b32.xlu0 %v1002, 96
        %v1274 = vpop.permute.xlu0 %1273
        %v1277 = vsel %vm1096, %v1271, 0
        %1279 = vmatprep.subr.mxu0 0.0
        %1280 = vmatpush1.msra.mxu0 %v1274
        %1281 = vmatprep.subr.mxu0 0.0
        %1282 = vmatpush1.msra.mxu0 0.0
        %1283 = vmatprep.subr.mxu0 0.0
        %1284 = vmatpush1.msra.mxu0 0.0
        %1285 = vmatprep.subr.mxu0 0.0
        %1286 = vmatpush1.msra.mxu0 0.0
        %1287 = vmatprep.subr.mxu0 0.0
        %1288 = vmatpush1.msra.mxu0 0.0
        %1289 = vmatprep.subr.mxu0 0.0
        %1290 = vmatpush1.msra.mxu0 0.0
        %1291 = vmatprep.subr.mxu0 0.0
        %1292 = vmatpush1.msra.mxu0 0.0
        %1293 = vmatprep.subr.mxu0 0.0
        %1294 = vmatpush1.msra.mxu0 0.0
        %1295 = vmatprep.subr.mxu0 0.0
        %1296 = vmatpush1.msra.mxu0 0.0
        %1297 = vmatprep.subr.mxu0 0.0
        %1298 = vmatpush1.msra.mxu0 0.0
        %1299 = vmatprep.subr.mxu0 0.0
        %1300 = vmatpush1.msra.mxu0 0.0
        %1301 = vmatprep.subr.mxu0 0.0
        %1302 = vmatpush1.msra.mxu0 0.0
        %1303 = vmatprep.subr.mxu0 0.0
        %1304 = vmatpush1.msra.mxu0 0.0
        %1305 = vmatprep.subr.mxu0 0.0
        %1306 = vmatpush1.msra.mxu0 0.0
        %1307 = vmatprep.subr.mxu0 0.0
        %1308 = vmatpush1.msra.mxu0 0.0
        %1309 = vmatprep.subr.mxu0 0.0
        %1310 = vmatpush1.msra.mxu0 0.0
        %1311 = vmatprep.subr.mxu0 0.0
        %1312 = vmatpush1.msra.mxu0 0.0
        %1313 = vmatprep.subr.mxu0 0.0
        %1314 = vmatpush1.msra.mxu0 0.0
        %1315 = vmatprep.subr.mxu0 0.0
        %1316 = vmatpush1.msra.mxu0 0.0
        %1317 = vmatprep.subr.mxu0 0.0
        %1318 = vmatpush1.msra.mxu0 0.0
        %1319 = vmatprep.subr.mxu0 0.0
        %1320 = vmatpush1.msra.mxu0 0.0
        %1321 = vmatprep.subr.mxu0 0.0
        %1322 = vmatpush1.msra.mxu0 0.0
        %1323 = vmatprep.subr.mxu0 0.0
        %1324 = vmatpush1.msra.mxu0 0.0
        %1325 = vmatprep.subr.mxu0 0.0
        %1326 = vmatpush1.msra.mxu0 0.0
        %1327 = vmatprep.subr.mxu0 0.0
        %1328 = vmatpush1.msra.mxu0 0.0
        %1329 = vmatprep.subr.mxu0 0.0
        %1330 = vmatpush1.msra.mxu0 0.0
        %1331 = vmatprep.subr.mxu0 0.0
        %1332 = vmatpush1.msra.mxu0 0.0
        %1333 = vmatprep.subr.mxu0 0.0
        %1334 = vmatpush1.msra.mxu0 0.0
        %1335 = vmatprep.subr.mxu0 0.0
        %1336 = vmatpush1.msra.mxu0 0.0
        %1337 = vmatprep.subr.mxu0 0.0
        %1338 = vmatpush1.msra.mxu0 0.0
        %1339 = vmatprep.subr.mxu0 0.0
        %1340 = vmatpush1.msra.mxu0 0.0
        %1341 = vmatprep.subr.mxu0 0.0
        %1342 = vmatpush1.msra.mxu0 0.0
        %1343 = vmatprep.mubr.f32.mxu0 0.0
        %1344 = vmatmul.mubr.f32.gmra.mrb[0].mxu0 %v1277
        %v1345 = vpop.f32.mrb[0].mxu0
        %v1346 = vadd.f32 0.0, %v1345
        %v1347 = vpop.f32.mrb[0].mxu0
        %1348 = vdwg.mxu0
        %1349 = vrot.lane.b32.xlu0 %v925, 64
        %v1350 = vpop.permute.xlu0 %1349
        %1351 = vrot.lane.b32.xlu0 %v927, 64
        %v1352 = vpop.permute.xlu0 %1351
        %v1353 = vsel %vm1011, %v1350, 0
        %v1355 = vsel %vm1011, %v1352, 0
        %1357 = vmatprep.subr.mxu0 0.0
        %1358 = vmatpush1.xpose.msra.mxu0 %v1355
        %1359 = vmatprep.subr.mxu0 0.0
        %1360 = vmatpush1.xpose.msra.mxu0 0.0
        %1361 = vmatprep.subr.mxu0 0.0
        %1362 = vmatpush1.xpose.msra.mxu0 0.0
        %1363 = vmatprep.subr.mxu0 0.0
        %1364 = vmatpush1.xpose.msra.mxu0 0.0
        %1365 = vmatprep.subr.mxu0 0.0
        %1366 = vmatpush1.xpose.msra.mxu0 0.0
        %1367 = vmatprep.subr.mxu0 0.0
        %1368 = vmatpush1.xpose.msra.mxu0 0.0
        %1369 = vmatprep.subr.mxu0 0.0
        %1370 = vmatpush1.xpose.msra.mxu0 0.0
        %1371 = vmatprep.subr.mxu0 0.0
        %1372 = vmatpush1.xpose.msra.mxu0 0.0
        %1373 = vmatprep.subr.mxu0 0.0
        %1374 = vmatpush1.xpose.msra.mxu0 0.0
        %1375 = vmatprep.subr.mxu0 0.0
        %1376 = vmatpush1.xpose.msra.mxu0 0.0
        %1377 = vmatprep.subr.mxu0 0.0
        %1378 = vmatpush1.xpose.msra.mxu0 0.0
        %1379 = vmatprep.subr.mxu0 0.0
        %1380 = vmatpush1.xpose.msra.mxu0 0.0
        %1381 = vmatprep.subr.mxu0 0.0
        %1382 = vmatpush1.xpose.msra.mxu0 0.0
        %1383 = vmatprep.subr.mxu0 0.0
        %1384 = vmatpush1.xpose.msra.mxu0 0.0
        %1385 = vmatprep.subr.mxu0 0.0
        %1386 = vmatpush1.xpose.msra.mxu0 0.0
        %1387 = vmatprep.subr.mxu0 0.0
        %1388 = vmatpush1.xpose.msra.mxu0 0.0
        %1389 = vmatprep.subr.mxu0 0.0
        %1390 = vmatpush1.xpose.msra.mxu0 0.0
        %1391 = vmatprep.subr.mxu0 0.0
        %1392 = vmatpush1.xpose.msra.mxu0 0.0
        %1393 = vmatprep.subr.mxu0 0.0
        %1394 = vmatpush1.xpose.msra.mxu0 0.0
        %1395 = vmatprep.subr.mxu0 0.0
        %1396 = vmatpush1.xpose.msra.mxu0 0.0
        %1397 = vmatprep.subr.mxu0 0.0
        %1398 = vmatpush1.xpose.msra.mxu0 0.0
        %1399 = vmatprep.subr.mxu0 0.0
        %1400 = vmatpush1.xpose.msra.mxu0 0.0
        %1401 = vmatprep.subr.mxu0 0.0
        %1402 = vmatpush1.xpose.msra.mxu0 0.0
        %1403 = vmatprep.subr.mxu0 0.0
        %1404 = vmatpush1.xpose.msra.mxu0 0.0
        %1405 = vmatprep.subr.mxu0 0.0
        %1406 = vmatpush1.xpose.msra.mxu0 0.0
        %1407 = vmatprep.subr.mxu0 0.0
        %1408 = vmatpush1.xpose.msra.mxu0 0.0
        %1409 = vmatprep.subr.mxu0 0.0
        %1410 = vmatpush1.xpose.msra.mxu0 0.0
        %1411 = vmatprep.subr.mxu0 0.0
        %1412 = vmatpush1.xpose.msra.mxu0 0.0
        %1413 = vmatprep.subr.mxu0 0.0
        %1414 = vmatpush1.xpose.msra.mxu0 0.0
        %1415 = vmatprep.subr.mxu0 0.0
        %1416 = vmatpush1.xpose.msra.mxu0 0.0
        %1417 = vmatprep.subr.mxu0 0.0
        %1418 = vmatpush1.xpose.msra.mxu0 0.0
        %1419 = vmatprep.subr.mxu0 0.0
        %1420 = vmatpush1.xpose.msra.mxu0 0.0
        %1421 = vmatprep.mubr.f32.mxu0 0.0
        %1422 = vmatmul.mubr.f32.gmra.mrb[0].mxu0 %v1353
        %v1423 = vpop.f32.mrb[0].mxu0
        %v1424 = vadd.f32 0.0, %v1423
        %v1425 = vpop.f32.mrb[0].mxu0
        %1426 = vdwg.mxu0
        %v1427 = vmul.f32 %v1424, 0.17677669
        %v1428 = vadd.f32 %v1427, %v1093
        %v1429 = vsel %vm1096, %v1428, -inf
        %1430 = vmax.xlane.f32.xlu0 %v1429
        %v1431 = vpop.xlane.xlu0 %1430
        %v1432 = vsub.f32 %v1428, %v1431
        %v1433 = vmul.f32 %v1432, 1.442695
        %v1434 = vpow.pop %v1433
        %v1435 = vsel %vm1096, %v1434, 0.0
        %1436 = vadd.xlane.f32.xlu0 %v1435
        %v1437 = vpop.xlane.xlu0 %1436
        %v1438 = vrcp.pop %v1437
        %v1439 = vmul.f32 %v1434, %v1438
        %1440 = vrot.lane.b32.xlu0 %v1002, 64
        %v1441 = vpop.permute.xlu0 %1440
        %v1444 = vsel %vm1096, %v1439, 0
        %1446 = vmatprep.subr.mxu0 0.0
        %1447 = vmatpush1.msra.mxu0 %v1441
        %1448 = vmatprep.subr.mxu0 0.0
        %1449 = vmatpush1.msra.mxu0 0.0
        %1450 = vmatprep.subr.mxu0 0.0
        %1451 = vmatpush1.msra.mxu0 0.0
        %1452 = vmatprep.subr.mxu0 0.0
        %1453 = vmatpush1.msra.mxu0 0.0
        %1454 = vmatprep.subr.mxu0 0.0
        %1455 = vmatpush1.msra.mxu0 0.0
        %1456 = vmatprep.subr.mxu0 0.0
        %1457 = vmatpush1.msra.mxu0 0.0
        %1458 = vmatprep.subr.mxu0 0.0
        %1459 = vmatpush1.msra.mxu0 0.0
        %1460 = vmatprep.subr.mxu0 0.0
        %1461 = vmatpush1.msra.mxu0 0.0
        %1462 = vmatprep.subr.mxu0 0.0
        %1463 = vmatpush1.msra.mxu0 0.0
        %1464 = vmatprep.subr.mxu0 0.0
        %1465 = vmatpush1.msra.mxu0 0.0
        %1466 = vmatprep.subr.mxu0 0.0
        %1467 = vmatpush1.msra.mxu0 0.0
        %1468 = vmatprep.subr.mxu0 0.0
        %1469 = vmatpush1.msra.mxu0 0.0
        %1470 = vmatprep.subr.mxu0 0.0
        %1471 = vmatpush1.msra.mxu0 0.0
        %1472 = vmatprep.subr.mxu0 0.0
        %1473 = vmatpush1.msra.mxu0 0.0
        %1474 = vmatprep.subr.mxu0 0.0
        %1475 = vmatpush1.msra.mxu0 0.0
        %1476 = vmatprep.subr.mxu0 0.0
        %1477 = vmatpush1.msra.mxu0 0.0
        %1478 = vmatprep.subr.mxu0 0.0
        %1479 = vmatpush1.msra.mxu0 0.0
        %1480 = vmatprep.subr.mxu0 0.0
        %1481 = vmatpush1.msra.mxu0 0.0
        %1482 = vmatprep.subr.mxu0 0.0
        %1483 = vmatpush1.msra.mxu0 0.0
        %1484 = vmatprep.subr.mxu0 0.0
        %1485 = vmatpush1.msra.mxu0 0.0
        %1486 = vmatprep.subr.mxu0 0.0
        %1487 = vmatpush1.msra.mxu0 0.0
        %1488 = vmatprep.subr.mxu0 0.0
        %1489 = vmatpush1.msra.mxu0 0.0
        %1490 = vmatprep.subr.mxu0 0.0
        %1491 = vmatpush1.msra.mxu0 0.0
        %1492 = vmatprep.subr.mxu0 0.0
        %1493 = vmatpush1.msra.mxu0 0.0
        %1494 = vmatprep.subr.mxu0 0.0
        %1495 = vmatpush1.msra.mxu0 0.0
        %1496 = vmatprep.subr.mxu0 0.0
        %1497 = vmatpush1.msra.mxu0 0.0
        %1498 = vmatprep.subr.mxu0 0.0
        %1499 = vmatpush1.msra.mxu0 0.0
        %1500 = vmatprep.subr.mxu0 0.0
        %1501 = vmatpush1.msra.mxu0 0.0
        %1502 = vmatprep.subr.mxu0 0.0
        %1503 = vmatpush1.msra.mxu0 0.0
        %1504 = vmatprep.subr.mxu0 0.0
        %1505 = vmatpush1.msra.mxu0 0.0
        %1506 = vmatprep.subr.mxu0 0.0
        %1507 = vmatpush1.msra.mxu0 0.0
        %1508 = vmatprep.subr.mxu0 0.0
        %1509 = vmatpush1.msra.mxu0 0.0
        %1510 = vmatprep.mubr.f32.mxu0 0.0
        %1511 = vmatmul.mubr.f32.gmra.mrb[0].mxu0 %v1444
        %v1512 = vpop.f32.mrb[0].mxu0
        %v1513 = vadd.f32 0.0, %v1512
        %v1514 = vpop.f32.mrb[0].mxu0
        %1515 = vdwg.mxu0
        %1516 = vrot.lane.b32.xlu0 %v925, 32
        %v1517 = vpop.permute.xlu0 %1516
        %1518 = vrot.lane.b32.xlu0 %v927, 32
        %v1519 = vpop.permute.xlu0 %1518
        %v1520 = vsel %vm1011, %v1517, 0
        %v1522 = vsel %vm1011, %v1519, 0
        %1524 = vmatprep.subr.mxu0 0.0
        %1525 = vmatpush1.xpose.msra.mxu0 %v1522
        %1526 = vmatprep.subr.mxu0 0.0
        %1527 = vmatpush1.xpose.msra.mxu0 0.0
        %1528 = vmatprep.subr.mxu0 0.0
        %1529 = vmatpush1.xpose.msra.mxu0 0.0
        %1530 = vmatprep.subr.mxu0 0.0
        %1531 = vmatpush1.xpose.msra.mxu0 0.0
        %1532 = vmatprep.subr.mxu0 0.0
        %1533 = vmatpush1.xpose.msra.mxu0 0.0
        %1534 = vmatprep.subr.mxu0 0.0
        %1535 = vmatpush1.xpose.msra.mxu0 0.0
        %1536 = vmatprep.subr.mxu0 0.0
        %1537 = vmatpush1.xpose.msra.mxu0 0.0
        %1538 = vmatprep.subr.mxu0 0.0
        %1539 = vmatpush1.xpose.msra.mxu0 0.0
        %1540 = vmatprep.subr.mxu0 0.0
        %1541 = vmatpush1.xpose.msra.mxu0 0.0
        %1542 = vmatprep.subr.mxu0 0.0
        %1543 = vmatpush1.xpose.msra.mxu0 0.0
        %1544 = vmatprep.subr.mxu0 0.0
        %1545 = vmatpush1.xpose.msra.mxu0 0.0
        %1546 = vmatprep.subr.mxu0 0.0
        %1547 = vmatpush1.xpose.msra.mxu0 0.0
        %1548 = vmatprep.subr.mxu0 0.0
        %1549 = vmatpush1.xpose.msra.mxu0 0.0
        %1550 = vmatprep.subr.mxu0 0.0
        %1551 = vmatpush1.xpose.msra.mxu0 0.0
        %1552 = vmatprep.subr.mxu0 0.0
        %1553 = vmatpush1.xpose.msra.mxu0 0.0
        %1554 = vmatprep.subr.mxu0 0.0
        %1555 = vmatpush1.xpose.msra.mxu0 0.0
        %1556 = vmatprep.subr.mxu0 0.0
        %1557 = vmatpush1.xpose.msra.mxu0 0.0
        %1558 = vmatprep.subr.mxu0 0.0
        %1559 = vmatpush1.xpose.msra.mxu0 0.0
        %1560 = vmatprep.subr.mxu0 0.0
        %1561 = vmatpush1.xpose.msra.mxu0 0.0
        %1562 = vmatprep.subr.mxu0 0.0
        %1563 = vmatpush1.xpose.msra.mxu0 0.0
        %1564 = vmatprep.subr.mxu0 0.0
        %1565 = vmatpush1.xpose.msra.mxu0 0.0
        %1566 = vmatprep.subr.mxu0 0.0
        %1567 = vmatpush1.xpose.msra.mxu0 0.0
        %1568 = vmatprep.subr.mxu0 0.0
        %1569 = vmatpush1.xpose.msra.mxu0 0.0
        %1570 = vmatprep.subr.mxu0 0.0
        %1571 = vmatpush1.xpose.msra.mxu0 0.0
        %1572 = vmatprep.subr.mxu0 0.0
        %1573 = vmatpush1.xpose.msra.mxu0 0.0
        %1574 = vmatprep.subr.mxu0 0.0
        %1575 = vmatpush1.xpose.msra.mxu0 0.0
        %1576 = vmatprep.subr.mxu0 0.0
        %1577 = vmatpush1.xpose.msra.mxu0 0.0
        %1578 = vmatprep.subr.mxu0 0.0
        %1579 = vmatpush1.xpose.msra.mxu0 0.0
        %1580 = vmatprep.subr.mxu0 0.0
        %1581 = vmatpush1.xpose.msra.mxu0 0.0
        %1582 = vmatprep.subr.mxu0 0.0
        %1583 = vmatpush1.xpose.msra.mxu0 0.0
        %1584 = vmatprep.subr.mxu0 0.0
        %1585 = vmatpush1.xpose.msra.mxu0 0.0
        %1586 = vmatprep.subr.mxu0 0.0
        %1587 = vmatpush1.xpose.msra.mxu0 0.0
        %1588 = vmatprep.mubr.f32.mxu0 0.0
        %1589 = vmatmul.mubr.f32.gmra.mrb[0].mxu0 %v1520
        %v1590 = vpop.f32.mrb[0].mxu0
        %v1591 = vadd.f32 0.0, %v1590
        %v1592 = vpop.f32.mrb[0].mxu0
        %1593 = vdwg.mxu0
        %v1594 = vmul.f32 %v1591, 0.17677669
        %v1595 = vadd.f32 %v1594, %v1093
        %v1596 = vsel %vm1096, %v1595, -inf
        %1597 = vmax.xlane.f32.xlu0 %v1596
        %v1598 = vpop.xlane.xlu0 %1597
        %v1599 = vsub.f32 %v1595, %v1598
        %v1600 = vmul.f32 %v1599, 1.442695
        %v1601 = vpow.pop %v1600
        %v1602 = vsel %vm1096, %v1601, 0.0
        %1603 = vadd.xlane.f32.xlu0 %v1602
        %v1604 = vpop.xlane.xlu0 %1603
        %v1605 = vrcp.pop %v1604
        %v1606 = vmul.f32 %v1601, %v1605
        %1607 = vrot.lane.b32.xlu0 %v1002, 32
        %v1608 = vpop.permute.xlu0 %1607
        %v1611 = vsel %vm1096, %v1606, 0
        %1613 = vmatprep.subr.mxu0 0.0
        %1614 = vmatpush1.msra.mxu0 %v1608
        %1615 = vmatprep.subr.mxu0 0.0
        %1616 = vmatpush1.msra.mxu0 0.0
        %1617 = vmatprep.subr.mxu0 0.0
        %1618 = vmatpush1.msra.mxu0 0.0
        %1619 = vmatprep.subr.mxu0 0.0
        %1620 = vmatpush1.msra.mxu0 0.0
        %1621 = vmatprep.subr.mxu0 0.0
        %1622 = vmatpush1.msra.mxu0 0.0
        %1623 = vmatprep.subr.mxu0 0.0
        %1624 = vmatpush1.msra.mxu0 0.0
        %1625 = vmatprep.subr.mxu0 0.0
        %1626 = vmatpush1.msra.mxu0 0.0
        %1627 = vmatprep.subr.mxu0 0.0
        %1628 = vmatpush1.msra.mxu0 0.0
        %1629 = vmatprep.subr.mxu0 0.0
        %1630 = vmatpush1.msra.mxu0 0.0
        %1631 = vmatprep.subr.mxu0 0.0
        %1632 = vmatpush1.msra.mxu0 0.0
        %1633 = vmatprep.subr.mxu0 0.0
        %1634 = vmatpush1.msra.mxu0 0.0
        %1635 = vmatprep.subr.mxu0 0.0
        %1636 = vmatpush1.msra.mxu0 0.0
        %1637 = vmatprep.subr.mxu0 0.0
        %1638 = vmatpush1.msra.mxu0 0.0
        %1639 = vmatprep.subr.mxu0 0.0
        %1640 = vmatpush1.msra.mxu0 0.0
        %1641 = vmatprep.subr.mxu0 0.0
        %1642 = vmatpush1.msra.mxu0 0.0
        %1643 = vmatprep.subr.mxu0 0.0
        %1644 = vmatpush1.msra.mxu0 0.0
        %1645 = vmatprep.subr.mxu0 0.0
        %1646 = vmatpush1.msra.mxu0 0.0
        %1647 = vmatprep.subr.mxu0 0.0
        %1648 = vmatpush1.msra.mxu0 0.0
        %1649 = vmatprep.subr.mxu0 0.0
        %1650 = vmatpush1.msra.mxu0 0.0
        %1651 = vmatprep.subr.mxu0 0.0
        %1652 = vmatpush1.msra.mxu0 0.0
        %1653 = vmatprep.subr.mxu0 0.0
        %1654 = vmatpush1.msra.mxu0 0.0
        %1655 = vmatprep.subr.mxu0 0.0
        %1656 = vmatpush1.msra.mxu0 0.0
        %1657 = vmatprep.subr.mxu0 0.0
        %1658 = vmatpush1.msra.mxu0 0.0
        %1659 = vmatprep.subr.mxu0 0.0
        %1660 = vmatpush1.msra.mxu0 0.0
        %1661 = vmatprep.subr.mxu0 0.0
        %1662 = vmatpush1.msra.mxu0 0.0
        %1663 = vmatprep.subr.mxu0 0.0
        %1664 = vmatpush1.msra.mxu0 0.0
        %1665 = vmatprep.subr.mxu0 0.0
        %1666 = vmatpush1.msra.mxu0 0.0
        %1667 = vmatprep.subr.mxu0 0.0
        %1668 = vmatpush1.msra.mxu0 0.0
        %1669 = vmatprep.subr.mxu0 0.0
        %1670 = vmatpush1.msra.mxu0 0.0
        %1671 = vmatprep.subr.mxu0 0.0
        %1672 = vmatpush1.msra.mxu0 0.0
        %1673 = vmatprep.subr.mxu0 0.0
        %1674 = vmatpush1.msra.mxu0 0.0
        %1675 = vmatprep.subr.mxu0 0.0
        %1676 = vmatpush1.msra.mxu0 0.0
        %1677 = vmatprep.mubr.f32.mxu0 0.0
        %1678 = vmatmul.mubr.f32.gmra.mrb[0].mxu0 %v1611
        %v1679 = vpop.f32.mrb[0].mxu0
        %v1680 = vadd.f32 0.0, %v1679
        %v1681 = vpop.f32.mrb[0].mxu0
        %1682 = vdwg.mxu0
        %1684 = vrot.lane.b32.xlu0 %v1346, 32
        %v1685 = vpop.permute.xlu0 %1684
        %1688 = vrot.lane.b32.xlu0 %v1513, 64
        %v1689 = vpop.permute.xlu0 %1688
        %1692 = vrot.lane.b32.xlu0 %v1680, 96
        %v1693 = vpop.permute.xlu0 %1692
        %v1695 = vsel %vm1011, %v1178, %v1685
        %vm1696 = vcmask 523264
        %v1697 = vsel %vm1696, %v1695, %v1689
        %vm1698 = vcmask 785408
        %v1699 = vsel %vm1698, %v1697, %v1693
        %s1700 = scalar_lea.vmem %s1, 1
        %v1701 = vld [vmem:[%s1700] sm:$0x1]
        %v1703 = vsel %vm1011, %v931, 0
        %v1706 = vsel %vm1011, %v933, 0
        %1708 = vmatprep.subr.mxu0 0.0
        %1709 = vmatpush1.xpose.msra.mxu0 %v1706
        %1710 = vmatprep.subr.mxu0 0.0
        %1711 = vmatpush1.xpose.msra.mxu0 0.0
        %1712 = vmatprep.subr.mxu0 0.0
        %1713 = vmatpush1.xpose.msra.mxu0 0.0
        %1714 = vmatprep.subr.mxu0 0.0
        %1715 = vmatpush1.xpose.msra.mxu0 0.0
        %1716 = vmatprep.subr.mxu0 0.0
        %1717 = vmatpush1.xpose.msra.mxu0 0.0
        %1718 = vmatprep.subr.mxu0 0.0
        %1719 = vmatpush1.xpose.msra.mxu0 0.0
        %1720 = vmatprep.subr.mxu0 0.0
        %1721 = vmatpush1.xpose.msra.mxu0 0.0
        %1722 = vmatprep.subr.mxu0 0.0
        %1723 = vmatpush1.xpose.msra.mxu0 0.0
        %1724 = vmatprep.subr.mxu0 0.0
        %1725 = vmatpush1.xpose.msra.mxu0 0.0
        %1726 = vmatprep.subr.mxu0 0.0
        %1727 = vmatpush1.xpose.msra.mxu0 0.0
        %1728 = vmatprep.subr.mxu0 0.0
        %1729 = vmatpush1.xpose.msra.mxu0 0.0
        %1730 = vmatprep.subr.mxu0 0.0
        %1731 = vmatpush1.xpose.msra.mxu0 0.0
        %1732 = vmatprep.subr.mxu0 0.0
        %1733 = vmatpush1.xpose.msra.mxu0 0.0
        %1734 = vmatprep.subr.mxu0 0.0
        %1735 = vmatpush1.xpose.msra.mxu0 0.0
        %1736 = vmatprep.subr.mxu0 0.0
        %1737 = vmatpush1.xpose.msra.mxu0 0.0
        %1738 = vmatprep.subr.mxu0 0.0
        %1739 = vmatpush1.xpose.msra.mxu0 0.0
        %1740 = vmatprep.subr.mxu0 0.0
        %1741 = vmatpush1.xpose.msra.mxu0 0.0
        %1742 = vmatprep.subr.mxu0 0.0
        %1743 = vmatpush1.xpose.msra.mxu0 0.0
        %1744 = vmatprep.subr.mxu0 0.0
        %1745 = vmatpush1.xpose.msra.mxu0 0.0
        %1746 = vmatprep.subr.mxu0 0.0
        %1747 = vmatpush1.xpose.msra.mxu0 0.0
        %1748 = vmatprep.subr.mxu0 0.0
        %1749 = vmatpush1.xpose.msra.mxu0 0.0
        %1750 = vmatprep.subr.mxu0 0.0
        %1751 = vmatpush1.xpose.msra.mxu0 0.0
        %1752 = vmatprep.subr.mxu0 0.0
        %1753 = vmatpush1.xpose.msra.mxu0 0.0
        %1754 = vmatprep.subr.mxu0 0.0
        %1755 = vmatpush1.xpose.msra.mxu0 0.0
        %1756 = vmatprep.subr.mxu0 0.0
        %1757 = vmatpush1.xpose.msra.mxu0 0.0
        %1758 = vmatprep.subr.mxu0 0.0
        %1759 = vmatpush1.xpose.msra.mxu0 0.0
        %1760 = vmatprep.subr.mxu0 0.0
        %1761 = vmatpush1.xpose.msra.mxu0 0.0
        %1762 = vmatprep.subr.mxu0 0.0
        %1763 = vmatpush1.xpose.msra.mxu0 0.0
        %1764 = vmatprep.subr.mxu0 0.0
        %1765 = vmatpush1.xpose.msra.mxu0 0.0
        %1766 = vmatprep.subr.mxu0 0.0
        %1767 = vmatpush1.xpose.msra.mxu0 0.0
        %1768 = vmatprep.subr.mxu0 0.0
        %1769 = vmatpush1.xpose.msra.mxu0 0.0
        %1770 = vmatprep.subr.mxu0 0.0
        %1771 = vmatpush1.xpose.msra.mxu0 0.0
        %1772 = vmatprep.mubr.f32.mxu0 0.0
        %1773 = vmatmul.mubr.f32.gmra.mrb[0].mxu0 %v1703
        %v1774 = vpop.f32.mrb[0].mxu0
        %v1775 = vadd.f32 0.0, %v1774
        %v1776 = vpop.f32.mrb[0].mxu0
        %1777 = vdwg.mxu0
        %v1778 = vmul.f32 %v1775, 0.17677669
        %v1780 = vlaneseq
        %v1781 = vshrl.u32 %v1780, 7
        %v1782 = vsub.s32 0, %v1781
        %v1783 = vrot.slane %v1701, %v1782
        %v1785 = vadd.f32 %v1778, %v1783
        %v1786 = vsel %vm1096, %v1785, -inf
        %1787 = vmax.xlane.f32.xlu0 %v1786
        %v1788 = vpop.xlane.xlu0 %1787
        %v1789 = vsub.f32 %v1785, %v1788
        %v1790 = vmul.f32 %v1789, 1.442695
        %v1791 = vpow.pop %v1790
        %v1792 = vsel %vm1096, %v1791, 0.0
        %1793 = vadd.xlane.f32.xlu0 %v1792
        %v1794 = vpop.xlane.xlu0 %1793
        %v1795 = vrcp.pop %v1794
        %v1796 = vmul.f32 %v1791, %v1795
        %v1798 = vsel %vm1096, %v1796, 0
        %1800 = vmatprep.subr.mxu0 0.0
        %1801 = vmatpush1.msra.mxu0 %v1007
        %1802 = vmatprep.subr.mxu0 0.0
        %1803 = vmatpush1.msra.mxu0 0.0
        %1804 = vmatprep.subr.mxu0 0.0
        %1805 = vmatpush1.msra.mxu0 0.0
        %1806 = vmatprep.subr.mxu0 0.0
        %1807 = vmatpush1.msra.mxu0 0.0
        %1808 = vmatprep.subr.mxu0 0.0
        %1809 = vmatpush1.msra.mxu0 0.0
        %1810 = vmatprep.subr.mxu0 0.0
        %1811 = vmatpush1.msra.mxu0 0.0
        %1812 = vmatprep.subr.mxu0 0.0
        %1813 = vmatpush1.msra.mxu0 0.0
        %1814 = vmatprep.subr.mxu0 0.0
        %1815 = vmatpush1.msra.mxu0 0.0
        %1816 = vmatprep.subr.mxu0 0.0
        %1817 = vmatpush1.msra.mxu0 0.0
        %1818 = vmatprep.subr.mxu0 0.0
        %1819 = vmatpush1.msra.mxu0 0.0
        %1820 = vmatprep.subr.mxu0 0.0
        %1821 = vmatpush1.msra.mxu0 0.0
        %1822 = vmatprep.subr.mxu0 0.0
        %1823 = vmatpush1.msra.mxu0 0.0
        %1824 = vmatprep.subr.mxu0 0.0
        %1825 = vmatpush1.msra.mxu0 0.0
        %1826 = vmatprep.subr.mxu0 0.0
        %1827 = vmatpush1.msra.mxu0 0.0
        %1828 = vmatprep.subr.mxu0 0.0
        %1829 = vmatpush1.msra.mxu0 0.0
        %1830 = vmatprep.subr.mxu0 0.0
        %1831 = vmatpush1.msra.mxu0 0.0
        %1832 = vmatprep.subr.mxu0 0.0
        %1833 = vmatpush1.msra.mxu0 0.0
        %1834 = vmatprep.subr.mxu0 0.0
        %1835 = vmatpush1.msra.mxu0 0.0
        %1836 = vmatprep.subr.mxu0 0.0
        %1837 = vmatpush1.msra.mxu0 0.0
        %1838 = vmatprep.subr.mxu0 0.0
        %1839 = vmatpush1.msra.mxu0 0.0
        %1840 = vmatprep.subr.mxu0 0.0
        %1841 = vmatpush1.msra.mxu0 0.0
        %1842 = vmatprep.subr.mxu0 0.0
        %1843 = vmatpush1.msra.mxu0 0.0
        %1844 = vmatprep.subr.mxu0 0.0
        %1845 = vmatpush1.msra.mxu0 0.0
        %1846 = vmatprep.subr.mxu0 0.0
        %1847 = vmatpush1.msra.mxu0 0.0
        %1848 = vmatprep.subr.mxu0 0.0
        %1849 = vmatpush1.msra.mxu0 0.0
        %1850 = vmatprep.subr.mxu0 0.0
        %1851 = vmatpush1.msra.mxu0 0.0
        %1852 = vmatprep.subr.mxu0 0.0
        %1853 = vmatpush1.msra.mxu0 0.0
        %1854 = vmatprep.subr.mxu0 0.0
        %1855 = vmatpush1.msra.mxu0 0.0
        %1856 = vmatprep.subr.mxu0 0.0
        %1857 = vmatpush1.msra.mxu0 0.0
        %1858 = vmatprep.subr.mxu0 0.0
        %1859 = vmatpush1.msra.mxu0 0.0
        %1860 = vmatprep.subr.mxu0 0.0
        %1861 = vmatpush1.msra.mxu0 0.0
        %1862 = vmatprep.subr.mxu0 0.0
        %1863 = vmatpush1.msra.mxu0 0.0
        %1864 = vmatprep.mubr.f32.mxu0 0.0
        %1865 = vmatmul.mubr.f32.gmra.mrb[0].mxu0 %v1798
        %v1866 = vpop.f32.mrb[0].mxu0
        %v1867 = vadd.f32 0.0, %v1866
        %v1868 = vpop.f32.mrb[0].mxu0
        %1869 = vdwg.mxu0
        %1870 = vrot.lane.b32.xlu0 %v931, 96
        %v1871 = vpop.permute.xlu0 %1870
        %1872 = vrot.lane.b32.xlu0 %v933, 96
        %v1873 = vpop.permute.xlu0 %1872
        %v1874 = vsel %vm1011, %v1871, 0
        %v1876 = vsel %vm1011, %v1873, 0
        %1878 = vmatprep.subr.mxu0 0.0
        %1879 = vmatpush1.xpose.msra.mxu0 %v1876
        %1880 = vmatprep.subr.mxu0 0.0
        %1881 = vmatpush1.xpose.msra.mxu0 0.0
        %1882 = vmatprep.subr.mxu0 0.0
        %1883 = vmatpush1.xpose.msra.mxu0 0.0
        %1884 = vmatprep.subr.mxu0 0.0
        %1885 = vmatpush1.xpose.msra.mxu0 0.0
        %1886 = vmatprep.subr.mxu0 0.0
        %1887 = vmatpush1.xpose.msra.mxu0 0.0
        %1888 = vmatprep.subr.mxu0 0.0
        %1889 = vmatpush1.xpose.msra.mxu0 0.0
        %1890 = vmatprep.subr.mxu0 0.0
        %1891 = vmatpush1.xpose.msra.mxu0 0.0
        %1892 = vmatprep.subr.mxu0 0.0
        %1893 = vmatpush1.xpose.msra.mxu0 0.0
        %1894 = vmatprep.subr.mxu0 0.0
        %1895 = vmatpush1.xpose.msra.mxu0 0.0
        %1896 = vmatprep.subr.mxu0 0.0
        %1897 = vmatpush1.xpose.msra.mxu0 0.0
        %1898 = vmatprep.subr.mxu0 0.0
        %1899 = vmatpush1.xpose.msra.mxu0 0.0
        %1900 = vmatprep.subr.mxu0 0.0
        %1901 = vmatpush1.xpose.msra.mxu0 0.0
        %1902 = vmatprep.subr.mxu0 0.0
        %1903 = vmatpush1.xpose.msra.mxu0 0.0
        %1904 = vmatprep.subr.mxu0 0.0
        %1905 = vmatpush1.xpose.msra.mxu0 0.0
        %1906 = vmatprep.subr.mxu0 0.0
        %1907 = vmatpush1.xpose.msra.mxu0 0.0
        %1908 = vmatprep.subr.mxu0 0.0
        %1909 = vmatpush1.xpose.msra.mxu0 0.0
        %1910 = vmatprep.subr.mxu0 0.0
        %1911 = vmatpush1.xpose.msra.mxu0 0.0
        %1912 = vmatprep.subr.mxu0 0.0
        %1913 = vmatpush1.xpose.msra.mxu0 0.0
        %1914 = vmatprep.subr.mxu0 0.0
        %1915 = vmatpush1.xpose.msra.mxu0 0.0
        %1916 = vmatprep.subr.mxu0 0.0
        %1917 = vmatpush1.xpose.msra.mxu0 0.0
        %1918 = vmatprep.subr.mxu0 0.0
        %1919 = vmatpush1.xpose.msra.mxu0 0.0
        %1920 = vmatprep.subr.mxu0 0.0
        %1921 = vmatpush1.xpose.msra.mxu0 0.0
        %1922 = vmatprep.subr.mxu0 0.0
        %1923 = vmatpush1.xpose.msra.mxu0 0.0
        %1924 = vmatprep.subr.mxu0 0.0
        %1925 = vmatpush1.xpose.msra.mxu0 0.0
        %1926 = vmatprep.subr.mxu0 0.0
        %1927 = vmatpush1.xpose.msra.mxu0 0.0
        %1928 = vmatprep.subr.mxu0 0.0
        %1929 = vmatpush1.xpose.msra.mxu0 0.0
        %1930 = vmatprep.subr.mxu0 0.0
        %1931 = vmatpush1.xpose.msra.mxu0 0.0
        %1932 = vmatprep.subr.mxu0 0.0
        %1933 = vmatpush1.xpose.msra.mxu0 0.0
        %1934 = vmatprep.subr.mxu0 0.0
        %1935 = vmatpush1.xpose.msra.mxu0 0.0
        %1936 = vmatprep.subr.mxu0 0.0
        %1937 = vmatpush1.xpose.msra.mxu0 0.0
        %1938 = vmatprep.subr.mxu0 0.0
        %1939 = vmatpush1.xpose.msra.mxu0 0.0
        %1940 = vmatprep.subr.mxu0 0.0
        %1941 = vmatpush1.xpose.msra.mxu0 0.0
        %1942 = vmatprep.mubr.f32.mxu0 0.0
        %1943 = vmatmul.mubr.f32.gmra.mrb[0].mxu0 %v1874
        %v1944 = vpop.f32.mrb[0].mxu0
        %v1945 = vadd.f32 0.0, %v1944
        %v1946 = vpop.f32.mrb[0].mxu0
        %1947 = vdwg.mxu0
        %v1948 = vmul.f32 %v1945, 0.17677669
        %v1949 = vadd.f32 %v1948, %v1783
        %v1950 = vsel %vm1096, %v1949, -inf
        %1951 = vmax.xlane.f32.xlu0 %v1950
        %v1952 = vpop.xlane.xlu0 %1951
        %v1953 = vsub.f32 %v1949, %v1952
        %v1954 = vmul.f32 %v1953, 1.442695
        %v1955 = vpow.pop %v1954
        %v1956 = vsel %vm1096, %v1955, 0.0
        %1957 = vadd.xlane.f32.xlu0 %v1956
        %v1958 = vpop.xlane.xlu0 %1957
        %v1959 = vrcp.pop %v1958
        %v1960 = vmul.f32 %v1955, %v1959
        %1962 = vrot.lane.b32.xlu0 %v1007, 96
        %v1963 = vpop.permute.xlu0 %1962
        %v1966 = vsel %vm1096, %v1960, 0
        %1968 = vmatprep.subr.mxu0 0.0
        %1969 = vmatpush1.msra.mxu0 %v1963
        %1970 = vmatprep.subr.mxu0 0.0
        %1971 = vmatpush1.msra.mxu0 0.0
        %1972 = vmatprep.subr.mxu0 0.0
        %1973 = vmatpush1.msra.mxu0 0.0
        %1974 = vmatprep.subr.mxu0 0.0
        %1975 = vmatpush1.msra.mxu0 0.0
        %1976 = vmatprep.subr.mxu0 0.0
        %1977 = vmatpush1.msra.mxu0 0.0
        %1978 = vmatprep.subr.mxu0 0.0
        %1979 = vmatpush1.msra.mxu0 0.0
        %1980 = vmatprep.subr.mxu0 0.0
        %1981 = vmatpush1.msra.mxu0 0.0
        %1982 = vmatprep.subr.mxu0 0.0
        %1983 = vmatpush1.msra.mxu0 0.0
        %1984 = vmatprep.subr.mxu0 0.0
        %1985 = vmatpush1.msra.mxu0 0.0
        %1986 = vmatprep.subr.mxu0 0.0
        %1987 = vmatpush1.msra.mxu0 0.0
        %1988 = vmatprep.subr.mxu0 0.0
        %1989 = vmatpush1.msra.mxu0 0.0
        %1990 = vmatprep.subr.mxu0 0.0
        %1991 = vmatpush1.msra.mxu0 0.0
        %1992 = vmatprep.subr.mxu0 0.0
        %1993 = vmatpush1.msra.mxu0 0.0
        %1994 = vmatprep.subr.mxu0 0.0
        %1995 = vmatpush1.msra.mxu0 0.0
        %1996 = vmatprep.subr.mxu0 0.0
        %1997 = vmatpush1.msra.mxu0 0.0
        %1998 = vmatprep.subr.mxu0 0.0
        %1999 = vmatpush1.msra.mxu0 0.0
        %2000 = vmatprep.subr.mxu0 0.0
        %2001 = vmatpush1.msra.mxu0 0.0
        %2002 = vmatprep.subr.mxu0 0.0
        %2003 = vmatpush1.msra.mxu0 0.0
        %2004 = vmatprep.subr.mxu0 0.0
        %2005 = vmatpush1.msra.mxu0 0.0
        %2006 = vmatprep.subr.mxu0 0.0
        %2007 = vmatpush1.msra.mxu0 0.0
        %2008 = vmatprep.subr.mxu0 0.0
        %2009 = vmatpush1.msra.mxu0 0.0
        %2010 = vmatprep.subr.mxu0 0.0
        %2011 = vmatpush1.msra.mxu0 0.0
        %2012 = vmatprep.subr.mxu0 0.0
        %2013 = vmatpush1.msra.mxu0 0.0
        %2014 = vmatprep.subr.mxu0 0.0
        %2015 = vmatpush1.msra.mxu0 0.0
        %2016 = vmatprep.subr.mxu0 0.0
        %2017 = vmatpush1.msra.mxu0 0.0
        %2018 = vmatprep.subr.mxu0 0.0
        %2019 = vmatpush1.msra.mxu0 0.0
        %2020 = vmatprep.subr.mxu0 0.0
        %2021 = vmatpush1.msra.mxu0 0.0
        %2022 = vmatprep.subr.mxu0 0.0
        %2023 = vmatpush1.msra.mxu0 0.0
        %2024 = vmatprep.subr.mxu0 0.0
        %2025 = vmatpush1.msra.mxu0 0.0
        %2026 = vmatprep.subr.mxu0 0.0
        %2027 = vmatpush1.msra.mxu0 0.0
        %2028 = vmatprep.subr.mxu0 0.0
        %2029 = vmatpush1.msra.mxu0 0.0
        %2030 = vmatprep.subr.mxu0 0.0
        %2031 = vmatpush1.msra.mxu0 0.0
        %2032 = vmatprep.mubr.f32.mxu0 0.0
        %2033 = vmatmul.mubr.f32.gmra.mrb[0].mxu0 %v1966
        %v2034 = vpop.f32.mrb[0].mxu0
        %v2035 = vadd.f32 0.0, %v2034
        %v2036 = vpop.f32.mrb[0].mxu0
        %2037 = vdwg.mxu0
        %2038 = vrot.lane.b32.xlu0 %v931, 64
        %v2039 = vpop.permute.xlu0 %2038
        %2040 = vrot.lane.b32.xlu0 %v933, 64
        %v2041 = vpop.permute.xlu0 %2040
        %v2042 = vsel %vm1011, %v2039, 0
        %v2044 = vsel %vm1011, %v2041, 0
        %2046 = vmatprep.subr.mxu0 0.0
        %2047 = vmatpush1.xpose.msra.mxu0 %v2044
        %2048 = vmatprep.subr.mxu0 0.0
        %2049 = vmatpush1.xpose.msra.mxu0 0.0
        %2050 = vmatprep.subr.mxu0 0.0
        %2051 = vmatpush1.xpose.msra.mxu0 0.0
        %2052 = vmatprep.subr.mxu0 0.0
        %2053 = vmatpush1.xpose.msra.mxu0 0.0
        %2054 = vmatprep.subr.mxu0 0.0
        %2055 = vmatpush1.xpose.msra.mxu0 0.0
        %2056 = vmatprep.subr.mxu0 0.0
        %2057 = vmatpush1.xpose.msra.mxu0 0.0
        %2058 = vmatprep.subr.mxu0 0.0
        %2059 = vmatpush1.xpose.msra.mxu0 0.0
        %2060 = vmatprep.subr.mxu0 0.0
        %2061 = vmatpush1.xpose.msra.mxu0 0.0
        %2062 = vmatprep.subr.mxu0 0.0
        %2063 = vmatpush1.xpose.msra.mxu0 0.0
        %2064 = vmatprep.subr.mxu0 0.0
        %2065 = vmatpush1.xpose.msra.mxu0 0.0
        %2066 = vmatprep.subr.mxu0 0.0
        %2067 = vmatpush1.xpose.msra.mxu0 0.0
        %2068 = vmatprep.subr.mxu0 0.0
        %2069 = vmatpush1.xpose.msra.mxu0 0.0
        %2070 = vmatprep.subr.mxu0 0.0
        %2071 = vmatpush1.xpose.msra.mxu0 0.0
        %2072 = vmatprep.subr.mxu0 0.0
        %2073 = vmatpush1.xpose.msra.mxu0 0.0
        %2074 = vmatprep.subr.mxu0 0.0
        %2075 = vmatpush1.xpose.msra.mxu0 0.0
        %2076 = vmatprep.subr.mxu0 0.0
        %2077 = vmatpush1.xpose.msra.mxu0 0.0
        %2078 = vmatprep.subr.mxu0 0.0
        %2079 = vmatpush1.xpose.msra.mxu0 0.0
        %2080 = vmatprep.subr.mxu0 0.0
        %2081 = vmatpush1.xpose.msra.mxu0 0.0
        %2082 = vmatprep.subr.mxu0 0.0
        %2083 = vmatpush1.xpose.msra.mxu0 0.0
        %2084 = vmatprep.subr.mxu0 0.0
        %2085 = vmatpush1.xpose.msra.mxu0 0.0
        %2086 = vmatprep.subr.mxu0 0.0
        %2087 = vmatpush1.xpose.msra.mxu0 0.0
        %2088 = vmatprep.subr.mxu0 0.0
        %2089 = vmatpush1.xpose.msra.mxu0 0.0
        %2090 = vmatprep.subr.mxu0 0.0
        %2091 = vmatpush1.xpose.msra.mxu0 0.0
        %2092 = vmatprep.subr.mxu0 0.0
        %2093 = vmatpush1.xpose.msra.mxu0 0.0
        %2094 = vmatprep.subr.mxu0 0.0
        %2095 = vmatpush1.xpose.msra.mxu0 0.0
        %2096 = vmatprep.subr.mxu0 0.0
        %2097 = vmatpush1.xpose.msra.mxu0 0.0
        %2098 = vmatprep.subr.mxu0 0.0
        %2099 = vmatpush1.xpose.msra.mxu0 0.0
        %2100 = vmatprep.subr.mxu0 0.0
        %2101 = vmatpush1.xpose.msra.mxu0 0.0
        %2102 = vmatprep.subr.mxu0 0.0
        %2103 = vmatpush1.xpose.msra.mxu0 0.0
        %2104 = vmatprep.subr.mxu0 0.0
        %2105 = vmatpush1.xpose.msra.mxu0 0.0
        %2106 = vmatprep.subr.mxu0 0.0
        %2107 = vmatpush1.xpose.msra.mxu0 0.0
        %2108 = vmatprep.subr.mxu0 0.0
        %2109 = vmatpush1.xpose.msra.mxu0 0.0
        %2110 = vmatprep.mubr.f32.mxu0 0.0
        %2111 = vmatmul.mubr.f32.gmra.mrb[0].mxu0 %v2042
        %v2112 = vpop.f32.mrb[0].mxu0
        %v2113 = vadd.f32 0.0, %v2112
        %v2114 = vpop.f32.mrb[0].mxu0
        %2115 = vdwg.mxu0
        %v2116 = vmul.f32 %v2113, 0.17677669
        %v2117 = vadd.f32 %v2116, %v1783
        %v2118 = vsel %vm1096, %v2117, -inf
        %2119 = vmax.xlane.f32.xlu0 %v2118
        %v2120 = vpop.xlane.xlu0 %2119
        %v2121 = vsub.f32 %v2117, %v2120
        %v2122 = vmul.f32 %v2121, 1.442695
        %v2123 = vpow.pop %v2122
        %v2124 = vsel %vm1096, %v2123, 0.0
        %2125 = vadd.xlane.f32.xlu0 %v2124
        %v2126 = vpop.xlane.xlu0 %2125
        %v2127 = vrcp.pop %v2126
        %v2128 = vmul.f32 %v2123, %v2127
        %2129 = vrot.lane.b32.xlu0 %v1007, 64
        %v2130 = vpop.permute.xlu0 %2129
        %v2133 = vsel %vm1096, %v2128, 0
        %2135 = vmatprep.subr.mxu0 0.0
        %2136 = vmatpush1.msra.mxu0 %v2130
        %2137 = vmatprep.subr.mxu0 0.0
        %2138 = vmatpush1.msra.mxu0 0.0
        %2139 = vmatprep.subr.mxu0 0.0
        %2140 = vmatpush1.msra.mxu0 0.0
        %2141 = vmatprep.subr.mxu0 0.0
        %2142 = vmatpush1.msra.mxu0 0.0
        %2143 = vmatprep.subr.mxu0 0.0
        %2144 = vmatpush1.msra.mxu0 0.0
        %2145 = vmatprep.subr.mxu0 0.0
        %2146 = vmatpush1.msra.mxu0 0.0
        %2147 = vmatprep.subr.mxu0 0.0
        %2148 = vmatpush1.msra.mxu0 0.0
        %2149 = vmatprep.subr.mxu0 0.0
        %2150 = vmatpush1.msra.mxu0 0.0
        %2151 = vmatprep.subr.mxu0 0.0
        %2152 = vmatpush1.msra.mxu0 0.0
        %2153 = vmatprep.subr.mxu0 0.0
        %2154 = vmatpush1.msra.mxu0 0.0
        %2155 = vmatprep.subr.mxu0 0.0
        %2156 = vmatpush1.msra.mxu0 0.0
        %2157 = vmatprep.subr.mxu0 0.0
        %2158 = vmatpush1.msra.mxu0 0.0
        %2159 = vmatprep.subr.mxu0 0.0
        %2160 = vmatpush1.msra.mxu0 0.0
        %2161 = vmatprep.subr.mxu0 0.0
        %2162 = vmatpush1.msra.mxu0 0.0
        %2163 = vmatprep.subr.mxu0 0.0
        %2164 = vmatpush1.msra.mxu0 0.0
        %2165 = vmatprep.subr.mxu0 0.0
        %2166 = vmatpush1.msra.mxu0 0.0
        %2167 = vmatprep.subr.mxu0 0.0
        %2168 = vmatpush1.msra.mxu0 0.0
        %2169 = vmatprep.subr.mxu0 0.0
        %2170 = vmatpush1.msra.mxu0 0.0
        %2171 = vmatprep.subr.mxu0 0.0
        %2172 = vmatpush1.msra.mxu0 0.0
        %2173 = vmatprep.subr.mxu0 0.0
        %2174 = vmatpush1.msra.mxu0 0.0
        %2175 = vmatprep.subr.mxu0 0.0
        %2176 = vmatpush1.msra.mxu0 0.0
        %2177 = vmatprep.subr.mxu0 0.0
        %2178 = vmatpush1.msra.mxu0 0.0
        %2179 = vmatprep.subr.mxu0 0.0
        %2180 = vmatpush1.msra.mxu0 0.0
        %2181 = vmatprep.subr.mxu0 0.0
        %2182 = vmatpush1.msra.mxu0 0.0
        %2183 = vmatprep.subr.mxu0 0.0
        %2184 = vmatpush1.msra.mxu0 0.0
        %2185 = vmatprep.subr.mxu0 0.0
        %2186 = vmatpush1.msra.mxu0 0.0
        %2187 = vmatprep.subr.mxu0 0.0
        %2188 = vmatpush1.msra.mxu0 0.0
        %2189 = vmatprep.subr.mxu0 0.0
        %2190 = vmatpush1.msra.mxu0 0.0
        %2191 = vmatprep.subr.mxu0 0.0
        %2192 = vmatpush1.msra.mxu0 0.0
        %2193 = vmatprep.subr.mxu0 0.0
        %2194 = vmatpush1.msra.mxu0 0.0
        %2195 = vmatprep.subr.mxu0 0.0
        %2196 = vmatpush1.msra.mxu0 0.0
        %2197 = vmatprep.subr.mxu0 0.0
        %2198 = vmatpush1.msra.mxu0 0.0
        %2199 = vmatprep.mubr.f32.mxu0 0.0
        %2200 = vmatmul.mubr.f32.gmra.mrb[0].mxu0 %v2133
        %v2201 = vpop.f32.mrb[0].mxu0
        %v2202 = vadd.f32 0.0, %v2201
        %v2203 = vpop.f32.mrb[0].mxu0
        %2204 = vdwg.mxu0
        %2205 = vrot.lane.b32.xlu0 %v931, 32
        %v2206 = vpop.permute.xlu0 %2205
        %2207 = vrot.lane.b32.xlu0 %v933, 32
        %v2208 = vpop.permute.xlu0 %2207
        %v2209 = vsel %vm1011, %v2206, 0
        %v2211 = vsel %vm1011, %v2208, 0
        %2213 = vmatprep.subr.mxu0 0.0
        %2214 = vmatpush1.xpose.msra.mxu0 %v2211
        %2215 = vmatprep.subr.mxu0 0.0
        %2216 = vmatpush1.xpose.msra.mxu0 0.0
        %2217 = vmatprep.subr.mxu0 0.0
        %2218 = vmatpush1.xpose.msra.mxu0 0.0
        %2219 = vmatprep.subr.mxu0 0.0
        %2220 = vmatpush1.xpose.msra.mxu0 0.0
        %2221 = vmatprep.subr.mxu0 0.0
        %2222 = vmatpush1.xpose.msra.mxu0 0.0
        %2223 = vmatprep.subr.mxu0 0.0
        %2224 = vmatpush1.xpose.msra.mxu0 0.0
        %2225 = vmatprep.subr.mxu0 0.0
        %2226 = vmatpush1.xpose.msra.mxu0 0.0
        %2227 = vmatprep.subr.mxu0 0.0
        %2228 = vmatpush1.xpose.msra.mxu0 0.0
        %2229 = vmatprep.subr.mxu0 0.0
        %2230 = vmatpush1.xpose.msra.mxu0 0.0
        %2231 = vmatprep.subr.mxu0 0.0
        %2232 = vmatpush1.xpose.msra.mxu0 0.0
        %2233 = vmatprep.subr.mxu0 0.0
        %2234 = vmatpush1.xpose.msra.mxu0 0.0
        %2235 = vmatprep.subr.mxu0 0.0
        %2236 = vmatpush1.xpose.msra.mxu0 0.0
        %2237 = vmatprep.subr.mxu0 0.0
        %2238 = vmatpush1.xpose.msra.mxu0 0.0
        %2239 = vmatprep.subr.mxu0 0.0
        %2240 = vmatpush1.xpose.msra.mxu0 0.0
        %2241 = vmatprep.subr.mxu0 0.0
        %2242 = vmatpush1.xpose.msra.mxu0 0.0
        %2243 = vmatprep.subr.mxu0 0.0
        %2244 = vmatpush1.xpose.msra.mxu0 0.0
        %2245 = vmatprep.subr.mxu0 0.0
        %2246 = vmatpush1.xpose.msra.mxu0 0.0
        %2247 = vmatprep.subr.mxu0 0.0
        %2248 = vmatpush1.xpose.msra.mxu0 0.0
        %2249 = vmatprep.subr.mxu0 0.0
        %2250 = vmatpush1.xpose.msra.mxu0 0.0
        %2251 = vmatprep.subr.mxu0 0.0
        %2252 = vmatpush1.xpose.msra.mxu0 0.0
        %2253 = vmatprep.subr.mxu0 0.0
        %2254 = vmatpush1.xpose.msra.mxu0 0.0
        %2255 = vmatprep.subr.mxu0 0.0
        %2256 = vmatpush1.xpose.msra.mxu0 0.0
        %2257 = vmatprep.subr.mxu0 0.0
        %2258 = vmatpush1.xpose.msra.mxu0 0.0
        %2259 = vmatprep.subr.mxu0 0.0
        %2260 = vmatpush1.xpose.msra.mxu0 0.0
        %2261 = vmatprep.subr.mxu0 0.0
        %2262 = vmatpush1.xpose.msra.mxu0 0.0
        %2263 = vmatprep.subr.mxu0 0.0
        %2264 = vmatpush1.xpose.msra.mxu0 0.0
        %2265 = vmatprep.subr.mxu0 0.0
        %2266 = vmatpush1.xpose.msra.mxu0 0.0
        %2267 = vmatprep.subr.mxu0 0.0
        %2268 = vmatpush1.xpose.msra.mxu0 0.0
        %2269 = vmatprep.subr.mxu0 0.0
        %2270 = vmatpush1.xpose.msra.mxu0 0.0
        %2271 = vmatprep.subr.mxu0 0.0
        %2272 = vmatpush1.xpose.msra.mxu0 0.0
        %2273 = vmatprep.subr.mxu0 0.0
        %2274 = vmatpush1.xpose.msra.mxu0 0.0
        %2275 = vmatprep.subr.mxu0 0.0
        %2276 = vmatpush1.xpose.msra.mxu0 0.0
        %2277 = vmatprep.mubr.f32.mxu0 0.0
        %2278 = vmatmul.mubr.f32.gmra.mrb[0].mxu0 %v2209
        %v2279 = vpop.f32.mrb[0].mxu0
        %v2280 = vadd.f32 0.0, %v2279
        %v2281 = vpop.f32.mrb[0].mxu0
        %2282 = vdwg.mxu0
        %v2283 = vmul.f32 %v2280, 0.17677669
        %v2284 = vadd.f32 %v2283, %v1783
        %v2285 = vsel %vm1096, %v2284, -inf
        %2286 = vmax.xlane.f32.xlu0 %v2285
        %v2287 = vpop.xlane.xlu0 %2286
        %v2288 = vsub.f32 %v2284, %v2287
        %v2289 = vmul.f32 %v2288, 1.442695
        %v2290 = vpow.pop %v2289
        %v2291 = vsel %vm1096, %v2290, 0.0
        %2292 = vadd.xlane.f32.xlu0 %v2291
        %v2293 = vpop.xlane.xlu0 %2292
        %v2294 = vrcp.pop %v2293
        %v2295 = vmul.f32 %v2290, %v2294
        %2296 = vrot.lane.b32.xlu0 %v1007, 32
        %v2297 = vpop.permute.xlu0 %2296
        %v2300 = vsel %vm1096, %v2295, 0
        %2302 = vmatprep.subr.mxu0 0.0
        %2303 = vmatpush1.msra.mxu0 %v2297
        %2304 = vmatprep.subr.mxu0 0.0
        %2305 = vmatpush1.msra.mxu0 0.0
        %2306 = vmatprep.subr.mxu0 0.0
        %2307 = vmatpush1.msra.mxu0 0.0
        %2308 = vmatprep.subr.mxu0 0.0
        %2309 = vmatpush1.msra.mxu0 0.0
        %2310 = vmatprep.subr.mxu0 0.0
        %2311 = vmatpush1.msra.mxu0 0.0
        %2312 = vmatprep.subr.mxu0 0.0
        %2313 = vmatpush1.msra.mxu0 0.0
        %2314 = vmatprep.subr.mxu0 0.0
        %2315 = vmatpush1.msra.mxu0 0.0
        %2316 = vmatprep.subr.mxu0 0.0
        %2317 = vmatpush1.msra.mxu0 0.0
        %2318 = vmatprep.subr.mxu0 0.0
        %2319 = vmatpush1.msra.mxu0 0.0
        %2320 = vmatprep.subr.mxu0 0.0
        %2321 = vmatpush1.msra.mxu0 0.0
        %2322 = vmatprep.subr.mxu0 0.0
        %2323 = vmatpush1.msra.mxu0 0.0
        %2324 = vmatprep.subr.mxu0 0.0
        %2325 = vmatpush1.msra.mxu0 0.0
        %2326 = vmatprep.subr.mxu0 0.0
        %2327 = vmatpush1.msra.mxu0 0.0
        %2328 = vmatprep.subr.mxu0 0.0
        %2329 = vmatpush1.msra.mxu0 0.0
        %2330 = vmatprep.subr.mxu0 0.0
        %2331 = vmatpush1.msra.mxu0 0.0
        %2332 = vmatprep.subr.mxu0 0.0
        %2333 = vmatpush1.msra.mxu0 0.0
        %2334 = vmatprep.subr.mxu0 0.0
        %2335 = vmatpush1.msra.mxu0 0.0
        %2336 = vmatprep.subr.mxu0 0.0
        %2337 = vmatpush1.msra.mxu0 0.0
        %2338 = vmatprep.subr.mxu0 0.0
        %2339 = vmatpush1.msra.mxu0 0.0
        %2340 = vmatprep.subr.mxu0 0.0
        %2341 = vmatpush1.msra.mxu0 0.0
        %2342 = vmatprep.subr.mxu0 0.0
        %2343 = vmatpush1.msra.mxu0 0.0
        %2344 = vmatprep.subr.mxu0 0.0
        %2345 = vmatpush1.msra.mxu0 0.0
        %2346 = vmatprep.subr.mxu0 0.0
        %2347 = vmatpush1.msra.mxu0 0.0
        %2348 = vmatprep.subr.mxu0 0.0
        %2349 = vmatpush1.msra.mxu0 0.0
        %2350 = vmatprep.subr.mxu0 0.0
        %2351 = vmatpush1.msra.mxu0 0.0
        %2352 = vmatprep.subr.mxu0 0.0
        %2353 = vmatpush1.msra.mxu0 0.0
        %2354 = vmatprep.subr.mxu0 0.0
        %2355 = vmatpush1.msra.mxu0 0.0
        %2356 = vmatprep.subr.mxu0 0.0
        %2357 = vmatpush1.msra.mxu0 0.0
        %2358 = vmatprep.subr.mxu0 0.0
        %2359 = vmatpush1.msra.mxu0 0.0
        %2360 = vmatprep.subr.mxu0 0.0
        %2361 = vmatpush1.msra.mxu0 0.0
        %2362 = vmatprep.subr.mxu0 0.0
        %2363 = vmatpush1.msra.mxu0 0.0
        %2364 = vmatprep.subr.mxu0 0.0
        %2365 = vmatpush1.msra.mxu0 0.0
        %2366 = vmatprep.mubr.f32.mxu0 0.0
        %2367 = vmatmul.mubr.f32.gmra.mrb[0].mxu0 %v2300
        %v2368 = vpop.f32.mrb[0].mxu0
        %v2369 = vadd.f32 0.0, %v2368
        %v2370 = vpop.f32.mrb[0].mxu0
        %2371 = vdwg.mxu0
        %2373 = vrot.lane.b32.xlu0 %v2035, 32
        %v2374 = vpop.permute.xlu0 %2373
        %2377 = vrot.lane.b32.xlu0 %v2202, 64
        %v2378 = vpop.permute.xlu0 %2377
        %2381 = vrot.lane.b32.xlu0 %v2369, 96
        %v2382 = vpop.permute.xlu0 %2381
        %v2384 = vsel %vm1011, %v1867, %v2374
        %v2385 = vsel %vm1696, %v2384, %v2378
        %v2386 = vsel %vm1698, %v2385, %v2382
        %v2387 = vld [vmem:[%s719] sm:$0xff]
        %v2388 = vld [vmem:[%s719 + $0x8] sm:$0xff]
        %v2389 = vld [vmem:[%s719 + $0x10] sm:$0xff]
        %v2390 = vld [vmem:[%s719 + $0x18] sm:$0xff]
        %v2391 = vld [vmem:[%s719 + $0x20] sm:$0xff]
        %v2392 = vld [vmem:[%s719 + $0x28] sm:$0xff]
        %v2393 = vld [vmem:[%s719 + $0x30] sm:$0xff]
        %v2394 = vld [vmem:[%s719 + $0x38] sm:$0xff]
        %v2395 = vld [vmem:[%s719 + $0x40] sm:$0xff]
        %v2396 = vld [vmem:[%s719 + $0x48] sm:$0xff]
        %v2397 = vld [vmem:[%s719 + $0x50] sm:$0xff]
        %v2398 = vld [vmem:[%s719 + $0x58] sm:$0xff]
        %v2399 = vld [vmem:[%s719 + $0x60] sm:$0xff]
        %v2400 = vld [vmem:[%s719 + $0x68] sm:$0xff]
        %v2401 = vld [vmem:[%s719 + $0x70] sm:$0xff]
        %v2402 = vld [vmem:[%s719 + $0x78] sm:$0xff]
        %v2403 = vld [vmem:[%s722] sm:$0x1]
        %v2405 = vlaneseq
        %v2406 = vshrl.u32 %v2405, 7
        %v2407 = vsub.s32 0, %v2406
        %v2408 = vrot.slane %v2403, %v2407
        %2410 = vmatprep.subr.mxu0 0.0
        %2411 = vmatpush1.msra.mxu0 %v2387
        %2412 = vmatprep.subr.mxu0 0.0
        %2413 = vmatpush1.msra.mxu0 %v2388
        %2414 = vmatprep.subr.mxu0 0.0
        %2415 = vmatpush1.msra.mxu0 %v2389
        %2416 = vmatprep.subr.mxu0 0.0
        %2417 = vmatpush1.msra.mxu0 %v2390
        %2418 = vmatprep.subr.mxu0 0.0
        %2419 = vmatpush1.msra.mxu0 %v2391
        %2420 = vmatprep.subr.mxu0 0.0
        %2421 = vmatpush1.msra.mxu0 %v2392
        %2422 = vmatprep.subr.mxu0 0.0
        %2423 = vmatpush1.msra.mxu0 %v2393
        %2424 = vmatprep.subr.mxu0 0.0
        %2425 = vmatpush1.msra.mxu0 %v2394
        %2426 = vmatprep.subr.mxu0 0.0
        %2427 = vmatpush1.msra.mxu0 %v2395
        %2428 = vmatprep.subr.mxu0 0.0
        %2429 = vmatpush1.msra.mxu0 %v2396
        %2430 = vmatprep.subr.mxu0 0.0
        %2431 = vmatpush1.msra.mxu0 %v2397
        %2432 = vmatprep.subr.mxu0 0.0
        %2433 = vmatpush1.msra.mxu0 %v2398
        %2434 = vmatprep.subr.mxu0 0.0
        %2435 = vmatpush1.msra.mxu0 %v2399
        %2436 = vmatprep.subr.mxu0 0.0
        %2437 = vmatpush1.msra.mxu0 %v2400
        %2438 = vmatprep.subr.mxu0 0.0
        %2439 = vmatpush1.msra.mxu0 %v2401
        %2440 = vmatprep.subr.mxu0 0.0
        %2441 = vmatpush1.msra.mxu0 %v2402
        %2442 = vmatprep.subr.mxu0 0.0
        %2443 = vmatpush1.msra.mxu0 0.0
        %2444 = vmatprep.subr.mxu0 0.0
        %2445 = vmatpush1.msra.mxu0 0.0
        %2446 = vmatprep.subr.mxu0 0.0
        %2447 = vmatpush1.msra.mxu0 0.0
        %2448 = vmatprep.subr.mxu0 0.0
        %2449 = vmatpush1.msra.mxu0 0.0
        %2450 = vmatprep.subr.mxu0 0.0
        %2451 = vmatpush1.msra.mxu0 0.0
        %2452 = vmatprep.subr.mxu0 0.0
        %2453 = vmatpush1.msra.mxu0 0.0
        %2454 = vmatprep.subr.mxu0 0.0
        %2455 = vmatpush1.msra.mxu0 0.0
        %2456 = vmatprep.subr.mxu0 0.0
        %2457 = vmatpush1.msra.mxu0 0.0
        %2458 = vmatprep.subr.mxu0 0.0
        %2459 = vmatpush1.msra.mxu0 0.0
        %2460 = vmatprep.subr.mxu0 0.0
        %2461 = vmatpush1.msra.mxu0 0.0
        %2462 = vmatprep.subr.mxu0 0.0
        %2463 = vmatpush1.msra.mxu0 0.0
        %2464 = vmatprep.subr.mxu0 0.0
        %2465 = vmatpush1.msra.mxu0 0.0
        %2466 = vmatprep.subr.mxu0 0.0
        %2467 = vmatpush1.msra.mxu0 0.0
        %2468 = vmatprep.subr.mxu0 0.0
        %2469 = vmatpush1.msra.mxu0 0.0
        %2470 = vmatprep.subr.mxu0 0.0
        %2471 = vmatpush1.msra.mxu0 0.0
        %2472 = vmatprep.subr.mxu0 0.0
        %2473 = vmatpush1.msra.mxu0 0.0
        %2474 = vmatprep.mubr.f32.mxu0 0.0
        %2475 = vmatmul.mubr.f32.gmra.mrb[0].mxu0 %v1699
        %v2476 = vpop.f32.mrb[0].mxu0
        %v2477 = vadd.f32 %v2408, %v2476
        %v2478 = vpop.f32.mrb[0].mxu0
        %2479 = vmatprep.mubr.f32.mxu0 0.0
        %2480 = vmatmul.mubr.f32.gmra.mrb[0].mxu0 %v2386
        %v2481 = vpop.f32.mrb[0].mxu0
        %v2482 = vadd.f32 %v2408, %v2481
        %v2483 = vpop.f32.mrb[0].mxu0
        %2484 = vdwg.mxu0
        %v2485 = vadd.f32 %v791, %v2477
        %v2486 = vadd.f32 %v792, %v2482
        %v2487 = vld [vmem:[%s725] sm:$0x1]
        %v2488 = vld [vmem:[%s728] sm:$0x1]
        %2489 = vadd.xlane.f32.xlu0 %v2485
        %v2490 = vpop.xlane.xlu0 %2489
        %2491 = vadd.xlane.f32.xlu0 %v2486
        %v2492 = vpop.xlane.xlu0 %2491
        %v2493 = vrcp.pop 128.0
        %v2494 = vmul.f32 %v2490, %v2493
        %v2495 = vmul.f32 %v2492, %v2493
        %v2496 = vsub.f32 %v2485, %v2494
        %v2497 = vsub.f32 %v2486, %v2495
        %v2498 = vmul.f32 %v2496, %v2496
        %v2499 = vmul.f32 %v2497, %v2497
        %2500 = vadd.xlane.f32.xlu0 %v2498
        %v2501 = vpop.xlane.xlu0 %2500
        %2502 = vadd.xlane.f32.xlu0 %v2499
        %v2503 = vpop.xlane.xlu0 %2502
        %v2504 = vmul.f32 %v2501, %v2493
        %v2505 = vmul.f32 %v2503, %v2493
        %v2506 = vadd.f32 %v2504, 1e-05
        %v2507 = vadd.f32 %v2505, 1e-05
        %v2508 = vrsqrt.pop %v2506
        %v2509 = vrsqrt.pop %v2507
        %v2510 = vmul.f32 %v2496, %v2508
        %v2511 = vmul.f32 %v2497, %v2509
        %v2513 = vlaneseq
        %v2514 = vshrl.u32 %v2513, 7
        %v2515 = vsub.s32 0, %v2514
        %v2516 = vrot.slane %v2487, %v2515
        %v2518 = vmul.f32 %v2510, %v2516
        %v2519 = vmul.f32 %v2511, %v2516
        %v2521 = vlaneseq
        %v2522 = vshrl.u32 %v2521, 7
        %v2523 = vsub.s32 0, %v2522
        %v2524 = vrot.slane %v2488, %v2523
        %v2526 = vadd.f32 %v2518, %v2524
        %v2527 = vadd.f32 %v2519, %v2524
        %v2528 = vld [vmem:[%s617] sm:$0xff]
        %v2529 = vld [vmem:[%s617 + $0x8] sm:$0xff]
        %v2530 = vld [vmem:[%s617 + $0x10] sm:$0xff]
        %v2531 = vld [vmem:[%s617 + $0x18] sm:$0xff]
        %v2532 = vld [vmem:[%s617 + $0x20] sm:$0xff]
        %v2533 = vld [vmem:[%s617 + $0x28] sm:$0xff]
        %v2534 = vld [vmem:[%s617 + $0x30] sm:$0xff]
        %v2535 = vld [vmem:[%s617 + $0x38] sm:$0xff]
        %v2536 = vld [vmem:[%s617 + $0x40] sm:$0xff]
        %v2537 = vld [vmem:[%s617 + $0x48] sm:$0xff]
        %v2538 = vld [vmem:[%s617 + $0x50] sm:$0xff]
        %v2539 = vld [vmem:[%s617 + $0x58] sm:$0xff]
        %v2540 = vld [vmem:[%s617 + $0x60] sm:$0xff]
        %v2541 = vld [vmem:[%s617 + $0x68] sm:$0xff]
        %v2542 = vld [vmem:[%s617 + $0x70] sm:$0xff]
        %v2543 = vld [vmem:[%s617 + $0x78] sm:$0xff]
        %v2544 = vld [vmem:[%s617 + $0x80] sm:$0xff]
        %v2545 = vld [vmem:[%s617 + $0x88] sm:$0xff]
        %v2546 = vld [vmem:[%s617 + $0x90] sm:$0xff]
        %v2547 = vld [vmem:[%s617 + $0x98] sm:$0xff]
        %v2548 = vld [vmem:[%s617 + $0xa0] sm:$0xff]
        %v2549 = vld [vmem:[%s617 + $0xa8] sm:$0xff]
        %v2550 = vld [vmem:[%s617 + $0xb0] sm:$0xff]
        %v2551 = vld [vmem:[%s617 + $0xb8] sm:$0xff]
        %v2552 = vld [vmem:[%s617 + $0xc0] sm:$0xff]
        %v2553 = vld [vmem:[%s617 + $0xc8] sm:$0xff]
        %v2554 = vld [vmem:[%s617 + $0xd0] sm:$0xff]
        %v2555 = vld [vmem:[%s617 + $0xd8] sm:$0xff]
        %v2556 = vld [vmem:[%s617 + $0xe0] sm:$0xff]
        %v2557 = vld [vmem:[%s617 + $0xe8] sm:$0xff]
        %v2558 = vld [vmem:[%s617 + $0xf0] sm:$0xff]
        %v2559 = vld [vmem:[%s617 + $0xf8] sm:$0xff]
        %v2560 = vld [vmem:[%s732] sm:$0x3]
        %v2562 = vlaneseq
        %v2563 = vshrl.u32 %v2562, 7
        %v2564 = vsub.s32 0, %v2563
        %v2565 = vrot.slane %v2560, %v2564
        %v2566 = vlaneseq
        %v2567 = vshrl.u32 %v2566, 7
        %v2568 = vsub.s32 1, %v2567
        %v2569 = vrot.slane %v2560, %v2568
        %2572 = vmatprep.subr.mxu0 %v2529
        %2573 = vmatpush1.msra.mxu0 %v2528
        %2574 = vmatprep.subr.mxu0 %v2531
        %2575 = vmatpush1.msra.mxu0 %v2530
        %2576 = vmatprep.subr.mxu0 %v2533
        %2577 = vmatpush1.msra.mxu0 %v2532
        %2578 = vmatprep.subr.mxu0 %v2535
        %2579 = vmatpush1.msra.mxu0 %v2534
        %2580 = vmatprep.subr.mxu0 %v2537
        %2581 = vmatpush1.msra.mxu0 %v2536
        %2582 = vmatprep.subr.mxu0 %v2539
        %2583 = vmatpush1.msra.mxu0 %v2538
        %2584 = vmatprep.subr.mxu0 %v2541
        %2585 = vmatpush1.msra.mxu0 %v2540
        %2586 = vmatprep.subr.mxu0 %v2543
        %2587 = vmatpush1.msra.mxu0 %v2542
        %2588 = vmatprep.subr.mxu0 %v2545
        %2589 = vmatpush1.msra.mxu0 %v2544
        %2590 = vmatprep.subr.mxu0 %v2547
        %2591 = vmatpush1.msra.mxu0 %v2546
        %2592 = vmatprep.subr.mxu0 %v2549
        %2593 = vmatpush1.msra.mxu0 %v2548
        %2594 = vmatprep.subr.mxu0 %v2551
        %2595 = vmatpush1.msra.mxu0 %v2550
        %2596 = vmatprep.subr.mxu0 %v2553
        %2597 = vmatpush1.msra.mxu0 %v2552
        %2598 = vmatprep.subr.mxu0 %v2555
        %2599 = vmatpush1.msra.mxu0 %v2554
        %2600 = vmatprep.subr.mxu0 %v2557
        %2601 = vmatpush1.msra.mxu0 %v2556
        %2602 = vmatprep.subr.mxu0 %v2559
        %2603 = vmatpush1.msra.mxu0 %v2558
        %2604 = vmatprep.subr.mxu0 0.0
        %2605 = vmatpush1.msra.mxu0 0.0
        %2606 = vmatprep.subr.mxu0 0.0
        %2607 = vmatpush1.msra.mxu0 0.0
        %2608 = vmatprep.subr.mxu0 0.0
        %2609 = vmatpush1.msra.mxu0 0.0
        %2610 = vmatprep.subr.mxu0 0.0
        %2611 = vmatpush1.msra.mxu0 0.0
        %2612 = vmatprep.subr.mxu0 0.0
        %2613 = vmatpush1.msra.mxu0 0.0
        %2614 = vmatprep.subr.mxu0 0.0
        %2615 = vmatpush1.msra.mxu0 0.0
        %2616 = vmatprep.subr.mxu0 0.0
        %2617 = vmatpush1.msra.mxu0 0.0
        %2618 = vmatprep.subr.mxu0 0.0
        %2619 = vmatpush1.msra.mxu0 0.0
        %2620 = vmatprep.subr.mxu0 0.0
        %2621 = vmatpush1.msra.mxu0 0.0
        %2622 = vmatprep.subr.mxu0 0.0
        %2623 = vmatpush1.msra.mxu0 0.0
        %2624 = vmatprep.subr.mxu0 0.0
        %2625 = vmatpush1.msra.mxu0 0.0
        %2626 = vmatprep.subr.mxu0 0.0
        %2627 = vmatpush1.msra.mxu0 0.0
        %2628 = vmatprep.subr.mxu0 0.0
        %2629 = vmatpush1.msra.mxu0 0.0
        %2630 = vmatprep.subr.mxu0 0.0
        %2631 = vmatpush1.msra.mxu0 0.0
        %2632 = vmatprep.subr.mxu0 0.0
        %2633 = vmatpush1.msra.mxu0 0.0
        %2634 = vmatprep.subr.mxu0 0.0
        %2635 = vmatpush1.msra.mxu0 0.0
        %2636 = vmatprep.mubr.f32.mxu0 0.0
        %2637 = vmatmul.mubr.f32.gmra.mrb[0].mxu0 %v2526
        %v2638 = vpop.f32.mrb[0].mxu0
        %v2639 = vadd.f32 %v2565, %v2638
        %v2640 = vpop.f32.mrb[0].mxu0
        %v2641 = vadd.f32 %v2569, %v2640
        %2642 = vmatprep.mubr.f32.mxu0 0.0
        %2643 = vmatmul.mubr.f32.gmra.mrb[0].mxu0 %v2527
        %v2644 = vpop.f32.mrb[0].mxu0
        %v2645 = vadd.f32 %v2565, %v2644
        %v2646 = vpop.f32.mrb[0].mxu0
        %v2647 = vadd.f32 %v2569, %v2646
        %2648 = vdwg.mxu0
        %v2649 = vmul.f32 %v2639, %v2639
        %v2650 = vmul.f32 %v2641, %v2641
        %v2651 = vmul.f32 %v2645, %v2645
        %v2652 = vmul.f32 %v2647, %v2647
        %v2653 = vmul.f32 %v2639, %v2649
        %v2654 = vmul.f32 %v2641, %v2650
        %v2655 = vmul.f32 %v2645, %v2651
        %v2656 = vmul.f32 %v2647, %v2652
        %v2657 = vmul.f32 %v2653, 0.044715
        %v2658 = vmul.f32 %v2654, 0.044715
        %v2659 = vmul.f32 %v2655, 0.044715
        %v2660 = vmul.f32 %v2656, 0.044715
        %v2661 = vadd.f32 %v2639, %v2657
        %v2662 = vadd.f32 %v2641, %v2658
        %v2663 = vadd.f32 %v2645, %v2659
        %v2664 = vadd.f32 %v2647, %v2660
        %v2665 = vmul.f32 %v2661, 0.7978846
        %v2666 = vmul.f32 %v2662, 0.7978846
        %v2667 = vmul.f32 %v2663, 0.7978846
        %v2668 = vmul.f32 %v2664, 0.7978846
        %v2669 = vtanh.pop %v2665
        %v2670 = vtanh.pop %v2666
        %v2671 = vtanh.pop %v2667
        %v2672 = vtanh.pop %v2668
        %v2673 = vadd.f32 %v2669, 1.0
        %v2674 = vadd.f32 %v2670, 1.0
        %v2675 = vadd.f32 %v2671, 1.0
        %v2676 = vadd.f32 %v2672, 1.0
        %v2677 = vmul.f32 %v2673, 0.5
        %v2678 = vmul.f32 %v2674, 0.5
        %v2679 = vmul.f32 %v2675, 0.5
        %v2680 = vmul.f32 %v2676, 0.5
        %v2681 = vmul.f32 %v2639, %v2677
        %v2682 = vmul.f32 %v2641, %v2678
        %v2683 = vmul.f32 %v2645, %v2679
        %v2684 = vmul.f32 %v2647, %v2680
        %v2685 = vld [vmem:[%s626] sm:$0xff]
        %v2686 = vld [vmem:[%s626 + $0x8] sm:$0xff]
        %v2687 = vld [vmem:[%s626 + $0x10] sm:$0xff]
        %v2688 = vld [vmem:[%s626 + $0x18] sm:$0xff]
        %v2689 = vld [vmem:[%s626 + $0x20] sm:$0xff]
        %v2690 = vld [vmem:[%s626 + $0x28] sm:$0xff]
        %v2691 = vld [vmem:[%s626 + $0x30] sm:$0xff]
        %v2692 = vld [vmem:[%s626 + $0x38] sm:$0xff]
        %v2693 = vld [vmem:[%s626 + $0x40] sm:$0xff]
        %v2694 = vld [vmem:[%s626 + $0x48] sm:$0xff]
        %v2695 = vld [vmem:[%s626 + $0x50] sm:$0xff]
        %v2696 = vld [vmem:[%s626 + $0x58] sm:$0xff]
        %v2697 = vld [vmem:[%s626 + $0x60] sm:$0xff]
        %v2698 = vld [vmem:[%s626 + $0x68] sm:$0xff]
        %v2699 = vld [vmem:[%s626 + $0x70] sm:$0xff]
        %v2700 = vld [vmem:[%s626 + $0x78] sm:$0xff]
        %v2701 = vld [vmem:[%s626 + $0x80] sm:$0xff]
        %v2702 = vld [vmem:[%s626 + $0x88] sm:$0xff]
        %v2703 = vld [vmem:[%s626 + $0x90] sm:$0xff]
        %v2704 = vld [vmem:[%s626 + $0x98] sm:$0xff]
        %v2705 = vld [vmem:[%s626 + $0xa0] sm:$0xff]
        %v2706 = vld [vmem:[%s626 + $0xa8] sm:$0xff]
        %v2707 = vld [vmem:[%s626 + $0xb0] sm:$0xff]
        %v2708 = vld [vmem:[%s626 + $0xb8] sm:$0xff]
        %v2709 = vld [vmem:[%s626 + $0xc0] sm:$0xff]
        %v2710 = vld [vmem:[%s626 + $0xc8] sm:$0xff]
        %v2711 = vld [vmem:[%s626 + $0xd0] sm:$0xff]
        %v2712 = vld [vmem:[%s626 + $0xd8] sm:$0xff]
        %v2713 = vld [vmem:[%s626 + $0xe0] sm:$0xff]
        %v2714 = vld [vmem:[%s626 + $0xe8] sm:$0xff]
        %v2715 = vld [vmem:[%s626 + $0xf0] sm:$0xff]
        %v2716 = vld [vmem:[%s626 + $0xf8] sm:$0xff]
        %v2717 = vld [vmem:[%s735] sm:$0x1]
        %v2719 = vlaneseq
        %v2720 = vshrl.u32 %v2719, 7
        %v2721 = vsub.s32 0, %v2720
        %v2722 = vrot.slane %v2717, %v2721
        %2724 = vmatprep.subr.mxu0 0.0
        %2725 = vmatpush1.msra.mxu0 %v2685
        %2726 = vmatprep.subr.mxu0 0.0
        %2727 = vmatpush1.msra.mxu0 %v2686
        %2728 = vmatprep.subr.mxu0 0.0
        %2729 = vmatpush1.msra.mxu0 %v2687
        %2730 = vmatprep.subr.mxu0 0.0
        %2731 = vmatpush1.msra.mxu0 %v2688
        %2732 = vmatprep.subr.mxu0 0.0
        %2733 = vmatpush1.msra.mxu0 %v2689
        %2734 = vmatprep.subr.mxu0 0.0
        %2735 = vmatpush1.msra.mxu0 %v2690
        %2736 = vmatprep.subr.mxu0 0.0
        %2737 = vmatpush1.msra.mxu0 %v2691
        %2738 = vmatprep.subr.mxu0 0.0
        %2739 = vmatpush1.msra.mxu0 %v2692
        %2740 = vmatprep.subr.mxu0 0.0
        %2741 = vmatpush1.msra.mxu0 %v2693
        %2742 = vmatprep.subr.mxu0 0.0
        %2743 = vmatpush1.msra.mxu0 %v2694
        %2744 = vmatprep.subr.mxu0 0.0
        %2745 = vmatpush1.msra.mxu0 %v2695
        %2746 = vmatprep.subr.mxu0 0.0
        %2747 = vmatpush1.msra.mxu0 %v2696
        %2748 = vmatprep.subr.mxu0 0.0
        %2749 = vmatpush1.msra.mxu0 %v2697
        %2750 = vmatprep.subr.mxu0 0.0
        %2751 = vmatpush1.msra.mxu0 %v2698
        %2752 = vmatprep.subr.mxu0 0.0
        %2753 = vmatpush1.msra.mxu0 %v2699
        %2754 = vmatprep.subr.mxu0 0.0
        %2755 = vmatpush1.msra.mxu0 %v2700
        %2756 = vmatprep.subr.mxu0 0.0
        %2757 = vmatpush1.msra.mxu0 %v2701
        %2758 = vmatprep.subr.mxu0 0.0
        %2759 = vmatpush1.msra.mxu0 %v2702
        %2760 = vmatprep.subr.mxu0 0.0
        %2761 = vmatpush1.msra.mxu0 %v2703
        %2762 = vmatprep.subr.mxu0 0.0
        %2763 = vmatpush1.msra.mxu0 %v2704
        %2764 = vmatprep.subr.mxu0 0.0
        %2765 = vmatpush1.msra.mxu0 %v2705
        %2766 = vmatprep.subr.mxu0 0.0
        %2767 = vmatpush1.msra.mxu0 %v2706
        %2768 = vmatprep.subr.mxu0 0.0
        %2769 = vmatpush1.msra.mxu0 %v2707
        %2770 = vmatprep.subr.mxu0 0.0
        %2771 = vmatpush1.msra.mxu0 %v2708
        %2772 = vmatprep.subr.mxu0 0.0
        %2773 = vmatpush1.msra.mxu0 %v2709
        %2774 = vmatprep.subr.mxu0 0.0
        %2775 = vmatpush1.msra.mxu0 %v2710
        %2776 = vmatprep.subr.mxu0 0.0
        %2777 = vmatpush1.msra.mxu0 %v2711
        %2778 = vmatprep.subr.mxu0 0.0
        %2779 = vmatpush1.msra.mxu0 %v2712
        %2780 = vmatprep.subr.mxu0 0.0
        %2781 = vmatpush1.msra.mxu0 %v2713
        %2782 = vmatprep.subr.mxu0 0.0
        %2783 = vmatpush1.msra.mxu0 %v2714
        %2784 = vmatprep.subr.mxu0 0.0
        %2785 = vmatpush1.msra.mxu0 %v2715
        %2786 = vmatprep.subr.mxu0 0.0
        %2787 = vmatpush1.msra.mxu0 %v2716
        %2788 = vmatprep.mubr.f32.mxu0 %v2682
        %2789 = vmatmul.mubr.f32.gmra.mrb[0].mxu0 %v2681
        %v2790 = vpop.f32.mrb[0].mxu0
        %v2791 = vadd.f32 %v2722, %v2790
        %v2792 = vpop.f32.mrb[0].mxu0
        %2793 = vmatprep.mubr.f32.mxu0 %v2684
        %2794 = vmatmul.mubr.f32.gmra.mrb[0].mxu0 %v2683
        %v2795 = vpop.f32.mrb[0].mxu0
        %v2796 = vadd.f32 %v2722, %v2795
        %v2797 = vpop.f32.mrb[0].mxu0
        %2798 = vdwg.mxu0
        %v2799 = vadd.f32 %v2526, %v2791
        %v2800 = vadd.f32 %v2527, %v2796
        %v2801 = vld [vmem:[%s738] sm:$0x1]
        %v2802 = vld [vmem:[%s741] sm:$0x1]
        %2803 = vadd.xlane.f32.xlu0 %v2799
        %v2804 = vpop.xlane.xlu0 %2803
        %2805 = vadd.xlane.f32.xlu0 %v2800
        %v2806 = vpop.xlane.xlu0 %2805
        %v2807 = vmul.f32 %v2804, %v2493
        %v2808 = vmul.f32 %v2806, %v2493
        %v2809 = vsub.f32 %v2799, %v2807
        %v2810 = vsub.f32 %v2800, %v2808
        %v2811 = vmul.f32 %v2809, %v2809
        %v2812 = vmul.f32 %v2810, %v2810
        %2813 = vadd.xlane.f32.xlu0 %v2811
        %v2814 = vpop.xlane.xlu0 %2813
        %2815 = vadd.xlane.f32.xlu0 %v2812
        %v2816 = vpop.xlane.xlu0 %2815
        %v2817 = vmul.f32 %v2814, %v2493
        %v2818 = vmul.f32 %v2816, %v2493
        %v2819 = vadd.f32 %v2817, 1e-05
        %v2820 = vadd.f32 %v2818, 1e-05
        %v2821 = vrsqrt.pop %v2819
        %v2822 = vrsqrt.pop %v2820
        %v2823 = vmul.f32 %v2809, %v2821
        %v2824 = vmul.f32 %v2810, %v2822
        %v2826 = vlaneseq
        %v2827 = vshrl.u32 %v2826, 7
        %v2828 = vsub.s32 0, %v2827
        %v2829 = vrot.slane %v2801, %v2828
        %v2831 = vmul.f32 %v2823, %v2829
        %v2832 = vmul.f32 %v2824, %v2829
        %v2834 = vlaneseq
        %v2835 = vshrl.u32 %v2834, 7
        %v2836 = vsub.s32 0, %v2835
        %v2837 = vrot.slane %v2802, %v2836
        %v2839 = vadd.f32 %v2831, %v2837
        %v2840 = vadd.f32 %v2832, %v2837
        %2841 = vst [vmem:[%s16] sm:$0xff] %v2839
        %2842 = vst [vmem:[%s16 + $0x8] sm:$0xff] %v2840
        // Predicated region
        $region101: #{roberta_with_features.2} parent=83 // pred_check
          %p2843 = pneg %p442
        $region102: #{roberta_with_features.2} parent=83 // pred_check_branch
          %2845 = sbr.rel (%p2843) target = $region104
        $region103: #{roberta_with_features.2} parent=83 // pred_region
          _
        $region104: #{roberta_with_features.2} parent=83 // pred_fallthru
          _
        // Predicated region
        $region105: #{roberta_with_features.2} parent=83 // pred_check
          %p2846 = pneg %p442
        $region106: #{roberta_with_features.2} parent=83 // pred_check_branch
          %2848 = sbr.rel (%p2846) target = $region108
        $region107: #{roberta_with_features.2} parent=83 // pred_region
          _
        $region108: #{roberta_with_features.2} parent=83 // pred_fallthru
          _
      $region84: #{roberta_with_features.2} parent=5 // pred_fallthru
        _
      %p2849 = scmp.le.s32.totalorder 2, %s28
      // Predicated region
      $region109: #{roberta_with_features.2} parent=5 // pred_check
        %p2850 = pneg %p2849
      $region110: #{roberta_with_features.2} parent=5 // pred_check_branch
        %2852 = sbr.rel (%p2850) target = $region112
      $region111: #{roberta_with_features.2} parent=5 // pred_region
        %s2853 = ssub.s32 %s28, 2
      $region112: #{roberta_with_features.2} parent=5 // pred_fallthru
        _
    $region6: #{roberta_with_features.2} parent=1 // loop_footer
      %s32 = sadd.s32 1, %s28
    $region7: #{roberta_with_features.2} parent=1 // loop_footer_branch
      %27 = sbr.rel target = $region3
    $region8: #{roberta_with_features.2} parent=1 // loop_exit
      _
    %2854 = vsyncpa [#allocation3], 1
    %s2855 = scalar_lea.sflag [#allocation3], 1
    %2856 = vsyncpa %s2855, 1
    %2857 = vsyncpa [#allocation5], 1
    %s2858 = scalar_lea.sflag [#allocation5], 1
    %2859 = vsyncpa %s2858, 1

</llo_original>
